<compile_context>
chip_gen: v7x
topology: tpu7x:2x2x1
jax: 0.10.0
libtpu: 0.0.40
codegen_flags: <defaults>
</compile_context>

<pallas_src>
import math

import jax
import jax.numpy as jnp
from jax import lax
from jax.experimental import pallas as pl
from jax.experimental.pallas import tpu as pltpu


# ----------------------------------------------------------------------------
# Generic fused linear (+bias, +activation) kernel, tiled over rows.
# ----------------------------------------------------------------------------
def _make_linear_kernel(has_bias, activation, use_bf16):
    def kernel(x_ref, w_ref, *rest):
        if has_bias:
            b_ref, o_ref = rest
        else:
            (o_ref,) = rest
        x = x_ref[...]
        w = w_ref[...]
        if use_bf16:
            x = x.astype(jnp.bfloat16)
            w = w.astype(jnp.bfloat16)
        acc = jnp.dot(x, w, preferred_element_type=jnp.float32)
        if has_bias:
            acc = acc + b_ref[...]
        if activation == "relu":
            acc = jnp.maximum(acc, 0.0)
        o_ref[...] = acc.astype(o_ref.dtype)

    return kernel


def pallas_linear(x, w, b=None, activation=None, block_m=256, use_bf16=True):
    """x: (M, K) f32, w: (K, N) f32, optional b: (N,) -> (M, N) f32."""
    m, k = x.shape
    n = w.shape[1]
    tm = m if (m <= block_m or m % block_m != 0) else block_m
    in_specs = [pl.BlockSpec((tm, k), lambda i: (i, 0)),
                pl.BlockSpec((k, n), lambda i: (0, 0))]
    args = [x, w]
    if b is not None:
        in_specs.append(pl.BlockSpec((1, n), lambda i: (0, 0)))
        args.append(b.reshape(1, n))
    return pl.pallas_call(
        _make_linear_kernel(b is not None, activation, use_bf16),
        grid=(m // tm,),
        in_specs=in_specs,
        out_specs=pl.BlockSpec((tm, n), lambda i: (i, 0)),
        out_shape=jax.ShapeDtypeStruct((m, n), jnp.float32),
        compiler_params=pltpu.CompilerParams(dimension_semantics=("parallel",)),
    )(*args)


# ----------------------------------------------------------------------------
# Fused: feature @ W_out + b + residual, then LayerNorm (post_norm attn path).
# ----------------------------------------------------------------------------
def _make_proj_res_ln_kernel(use_bf16):
    def kernel(f_ref, r_ref, w_ref, b_ref, g_ref, beta_ref, o_ref):
        f = f_ref[...]
        w = w_ref[...]
        if use_bf16:
            f = f.astype(jnp.bfloat16)
            w = w.astype(jnp.bfloat16)
        h = jnp.dot(f, w, preferred_element_type=jnp.float32)
        h = h + b_ref[...] + r_ref[...]
        mu = jnp.mean(h, axis=-1, keepdims=True)
        xc = h - mu
        var = jnp.mean(xc * xc, axis=-1, keepdims=True)
        o_ref[...] = xc * lax.rsqrt(var + 1e-5) * g_ref[...] + beta_ref[...]

    return kernel


def pallas_proj_residual_layernorm(feat, res, w, b, g, beta, block_m=256,
                                   use_bf16=True):
    """LayerNorm(feat @ w + b + res), torch default eps=1e-5."""
    m, k = feat.shape
    d = w.shape[1]
    tm = m if (m <= block_m or m % block_m != 0) else block_m
    return pl.pallas_call(
        _make_proj_res_ln_kernel(use_bf16),
        grid=(m // tm,),
        in_specs=[pl.BlockSpec((tm, k), lambda i: (i, 0)),
                  pl.BlockSpec((tm, d), lambda i: (i, 0)),
                  pl.BlockSpec((k, d), lambda i: (0, 0)),
                  pl.BlockSpec((1, d), lambda i: (0, 0)),
                  pl.BlockSpec((1, d), lambda i: (0, 0)),
                  pl.BlockSpec((1, d), lambda i: (0, 0))],
        out_specs=pl.BlockSpec((tm, d), lambda i: (i, 0)),
        out_shape=jax.ShapeDtypeStruct((m, d), jnp.float32),
        compiler_params=pltpu.CompilerParams(dimension_semantics=("parallel",)),
    )(feat, res, w, b.reshape(1, d), g.reshape(1, d), beta.reshape(1, d))


# ----------------------------------------------------------------------------
# Fused FeedForward block: (Linear+ReLU, Linear+ReLU, Linear) + residual + LN.
# ----------------------------------------------------------------------------
def _make_ff_res_ln_kernel(use_bf16):
    def kernel(x_ref, w1_ref, b1_ref, w2_ref, b2_ref, w3_ref, b3_ref,
               g_ref, beta_ref, o_ref):
        x = x_ref[...]

        def mm(a, w_ref_):
            w = w_ref_[...]
            if use_bf16:
                return jnp.dot(a.astype(jnp.bfloat16), w.astype(jnp.bfloat16),
                               preferred_element_type=jnp.float32)
            return jnp.dot(a, w, preferred_element_type=jnp.float32)

        h = jnp.maximum(mm(x, w1_ref) + b1_ref[...], 0.0)
        h = jnp.maximum(mm(h, w2_ref) + b2_ref[...], 0.0)
        h = mm(h, w3_ref) + b3_ref[...]
        h = h + x  # residual
        mu = jnp.mean(h, axis=-1, keepdims=True)
        xc = h - mu
        var = jnp.mean(xc * xc, axis=-1, keepdims=True)
        o_ref[...] = xc * lax.rsqrt(var + 1e-5) * g_ref[...] + beta_ref[...]

    return kernel


def pallas_ff_residual_layernorm(x, w1, b1, w2, b2, w3, b3, g, beta,
                                 block_m=256, use_bf16=True):
    m, d = x.shape
    dh = w1.shape[1]
    tm = m if (m <= block_m or m % block_m != 0) else block_m
    full = lambda r, c: pl.BlockSpec((r, c), lambda i: (0, 0))
    return pl.pallas_call(
        _make_ff_res_ln_kernel(use_bf16),
        grid=(m // tm,),
        in_specs=[pl.BlockSpec((tm, d), lambda i: (i, 0)),
                  full(d, dh), full(1, dh),
                  full(dh, dh), full(1, dh),
                  full(dh, d), full(1, d),
                  full(1, d), full(1, d)],
        out_specs=pl.BlockSpec((tm, d), lambda i: (i, 0)),
        out_shape=jax.ShapeDtypeStruct((m, d), jnp.float32),
        compiler_params=pltpu.CompilerParams(dimension_semantics=("parallel",)),
    )(x, w1, b1.reshape(1, dh), w2, b2.reshape(1, dh), w3, b3.reshape(1, d),
      g.reshape(1, d), beta.reshape(1, d))


# ----------------------------------------------------------------------------
# IPA attention core: grid over batch, all heads in-block.
# Fuses: scalar QK^T, point-distance logits (norm expansion), pairwise bias,
# softmax, attn@V, attn@V_point, attn-weighted pairwise aggregation.
# ----------------------------------------------------------------------------
def _make_ipa_attn_kernel(heads, dk, dv, pq, pv, dp):
    dc = dk + 3 * pq
    pv3 = pv * 3

    def kernel(qcat_ref, kcat_ref, qn_ref, knt_ref, vs_ref, vpg_ref, pwt_ref,
               wp_ref, bp_ref, os_ref, op_ref, opr_ref):
        qcat = qcat_ref[0]            # (n, h*dc)   [qs*scalar_scale | 2*qp_scaled]
        kcat = kcat_ref[0]            # (n, h*dc)   [ks              | kp_scaled]
        qn = qn_ref[0]                # (n, h)      ||qp_scaled||^2
        knt = knt_ref[0]              # (h, n)      ||kp_scaled||^2
        vs = vs_ref[0]                # (n, h*dv)
        vpg = vpg_ref[0]              # (n, h*pv*3) global-frame point values
        pwt = pwt_ref[0]              # (dp, n, n)  pairwise repr, channel-major

        for hh in range(heads):
            qc = qcat[:, hh * dc:(hh + 1) * dc].astype(jnp.bfloat16)
            kc = kcat[:, hh * dc:(hh + 1) * dc].astype(jnp.bfloat16)
            # One MXU dot yields scalar-QK logits AND the point cross term.
            logits = lax.dot_general(
                qc, kc, (((1,), (1,)), ((), ())),
                preferred_element_type=jnp.float32)
            # -||q - k||^2 = 2 q.k - ||q||^2 - ||k||^2  (2 q.k already in logits)
            logits = logits - qn[:, hh:hh + 1] - knt[hh:hh + 1, :]
            # pairwise attention bias for this head (weights pre-scaled).
            logits = logits + bp_ref[hh]
            for d in range(dp):
                logits = logits + pwt[d] * wp_ref[d, hh]
            # TODO(synk): optional boolean key-padding mask (masked_fill with
            #             -finfo.max) is not implemented; mask=None here.

            # softmax over keys (f32)
            mx = jnp.max(logits, axis=-1, keepdims=True)
            e = jnp.exp(logits - mx)
            s = jnp.sum(e, axis=-1, keepdims=True)
            attn = e * pl.reciprocal(s, approx=True)

            # aggregations kept in f32 (mirrors the torch disable_tf32 block).
            os_ref[0, :, hh * dv:(hh + 1) * dv] = jnp.dot(
                attn, vs[:, hh * dv:(hh + 1) * dv],
                preferred_element_type=jnp.float32)
            op_ref[0, :, hh * pv3:(hh + 1) * pv3] = jnp.dot(
                attn, vpg[:, hh * pv3:(hh + 1) * pv3],
                preferred_element_type=jnp.float32)
            # results_pairwise: sum_j attn[i,j] * pairwise[i,j,d], emitted as
            # (dp, n) (lane-dense); transposed back to (n, h*dp) outside.
            opr_ref[0, hh * dp:(hh + 1) * dp, :] = jnp.sum(
                attn[None, :, :] * pwt, axis=-1)

    return kernel


def ipa_attention_core(q_cat, k_cat, qn, kn_t, v_s, v_pg, pairwise_t,
                       wp_s, bp_s, cfg):
    b, n, _ = q_cat.shape
    h, dk, dv = cfg["heads"], cfg["dk"], cfg["dv"]
    pq, pv, dp = cfg["pq"], cfg["pv"], cfg["dp"]
    dc = dk + 3 * pq

    def vspec(d):
        return pl.BlockSpec((1, n, d), lambda g: (g, 0, 0))

    smem = pl.BlockSpec(memory_space=pltpu.MemorySpace.SMEM)
    kernel = _make_ipa_attn_kernel(h, dk, dv, pq, pv, dp)
    return pl.pallas_call(
        kernel,
        grid=(b,),
        in_specs=[vspec(h * dc), vspec(h * dc), vspec(h),
                  pl.BlockSpec((1, h, n), lambda g: (g, 0, 0)),
                  vspec(h * dv), vspec(h * pv * 3),
                  pl.BlockSpec((1, dp, n, n), lambda g: (g, 0, 0, 0)),
                  smem, smem],
        out_specs=[vspec(h * dv), vspec(h * pv * 3),
                   pl.BlockSpec((1, h * dp, n), lambda g: (g, 0, 0))],
        out_shape=[jax.ShapeDtypeStruct((b, n, h * dv), jnp.float32),
                   jax.ShapeDtypeStruct((b, n, h * pv * 3), jnp.float32),
                   jax.ShapeDtypeStruct((b, h * dp, n), jnp.float32)],
        compiler_params=pltpu.CompilerParams(dimension_semantics=("parallel",)),
    )(q_cat, k_cat, qn, kn_t, v_s, v_pg, pairwise_t, wp_s, bp_s)


# ----------------------------------------------------------------------------
# Plain-JAX glue (quaternions, module plumbing)
# ----------------------------------------------------------------------------
def quaternion_to_matrix(q):
    # pytorch3d convention: q = (w, x, y, z)
    r, i, j, k = q[..., 0], q[..., 1], q[..., 2], q[..., 3]
    two_s = 2.0 / jnp.sum(q * q, axis=-1)
    o = jnp.stack([
        1 - two_s * (j * j + k * k), two_s * (i * j - k * r), two_s * (i * k + j * r),
        two_s * (i * j + k * r), 1 - two_s * (i * i + k * k), two_s * (j * k - i * r),
        two_s * (i * k - j * r), two_s * (j * k + i * r), 1 - two_s * (i * i + j * j),
    ], axis=-1)
    return o.reshape(q.shape[:-1] + (3, 3))


def quaternion_multiply(a, b):
    aw, ax, ay, az = (a[..., i] for i in range(4))
    bw, bx, by, bz = (b[..., i] for i in range(4))
    ow = aw * bw - ax * bx - ay * by - az * bz
    ox = aw * bx + ax * bw + ay * bz - az * by
    oy = aw * by - ax * bz + ay * bw + az * bx
    oz = aw * bz + ax * by - ay * bx + az * bw
    q = jnp.stack([ow, ox, oy, oz], axis=-1)
    # pytorch3d standardizes the sign (w >= 0)
    return jnp.where(q[..., :1] < 0, -q, q)


def invariant_point_attention_features(x, pairwise, rotations, translations,
                                       p, cfg):
    """Returns the concatenated IPA feature slab (b*n, h*(dv + pv*4 + dp))."""
    b, n, dim = x.shape
    h, dk, dv = cfg["heads"], cfg["dk"], cfg["dv"]
    pq, pv, dp = cfg["pq"], cfg["pv"], cfg["dp"]
    eps = 1e-8
    num_logits = 3
    scalar_scale = (num_logits * dk) ** -0.5
    point_scale = (num_logits * pq * (9.0 / 2.0)) ** -0.5
    pair_scale = num_logits ** -0.5

    x2 = x.reshape(b * n, dim)

    # --- fused (bias-free) scalar + point QKV projection: one wide GEMM ------
    w_qkv = jnp.concatenate([p["wq_s"], p["wk_s"], p["wv_s"],
                             p["wq_p"], p["wk_p"], p["wv_p"]], axis=1)
    qkv = pallas_linear(x2, w_qkv)                              # (b*n, total)

    sizes = [h * dk, h * dk, h * dv, h * pq * 3, h * pq * 3, h * pv * 3]
    offs = [0]
    for s in sizes:
        offs.append(offs[-1] + s)
    q_s = qkv[:, offs[0]:offs[1]].reshape(b, n, h, dk)
    k_s = qkv[:, offs[1]:offs[2]].reshape(b, n, h, dk)
    v_s = qkv[:, offs[2]:offs[3]].reshape(b, n, h * dv)
    q_p = qkv[:, offs[3]:offs[4]].reshape(b, n, h, pq, 3)
    k_p = qkv[:, offs[4]:offs[5]].reshape(b, n, h, pq, 3)
    v_p = qkv[:, offs[5]:offs[6]].reshape(b, n, h, pv, 3)

    # --- local -> global frame (per batch; no per-head rotation repeat) ------
    trans5 = translations[:, :, None, None, :]
    to_global = lambda pt: jnp.einsum("bnhdc,bncr->bnhdr", pt, rotations) + trans5
    q_pg, k_pg, v_pg = to_global(q_p), to_global(k_p), to_global(v_p)

    # fold sqrt(0.5 * softplus(point_weight_h) * point_scale) into q/k points
    s_h = jnp.sqrt(0.5 * jax.nn.softplus(p["point_weights"]) * point_scale)
    q_ps = q_pg * s_h[None, None, :, None, None]
    k_ps = k_pg * s_h[None, None, :, None, None]

    dc = dk + 3 * pq
    q_cat = jnp.concatenate(
        [q_s * scalar_scale, 2.0 * q_ps.reshape(b, n, h, pq * 3)],
        axis=-1).reshape(b, n, h * dc)
    k_cat = jnp.concatenate(
        [k_s, k_ps.reshape(b, n, h, pq * 3)], axis=-1).reshape(b, n, h * dc)
    qn = jnp.sum(q_ps ** 2, axis=(-2, -1))                      # (b, n, h)
    kn_t = jnp.transpose(jnp.sum(k_ps ** 2, axis=(-2, -1)), (0, 2, 1))  # (b,h,n)

    # pairwise repr in channel-major layout for the in-kernel bias + aggregation
    pairwise_t = jnp.transpose(pairwise, (0, 3, 1, 2))          # (b, dp, n, n)
    wp_s = p["w_pair"] * pair_scale                             # (dp, h)  SMEM
    bp_s = p["b_pair"] * pair_scale                             # (h,)     SMEM

    o_s, o_p, o_pair_t = ipa_attention_core(
        q_cat, k_cat, qn, kn_t, v_s, v_pg.reshape(b, n, h * pv * 3),
        pairwise_t, wp_s, bp_s, cfg)

    # back to local frame:  (p - t) @ R^T
    res_points = jnp.einsum("bnhdc,bnrc->bnhdr",
                            o_p.reshape(b, n, h, pv, 3) - trans5, rotations)
    res_norm = jnp.sqrt(jnp.sum(res_points ** 2, axis=-1) + eps)   # (b,n,h,pv)

    feats = jnp.concatenate([
        o_s,                                                       # (b,n,h*dv)
        res_points.reshape(b, n, h * pv * 3),
        res_norm.reshape(b, n, h * pv),
        jnp.transpose(o_pair_t, (0, 2, 1)),                        # (b,n,h*dp)
    ], axis=-1)
    return feats.reshape(b * n, -1)


def ipa_block(x, pairwise, rotations, translations, p, cfg):
    b, n, dim = x.shape
    # post_norm = True path
    feats = invariant_point_attention_features(
        x, pairwise, rotations, translations, p["attn"], cfg)
    # fused: to_out projection + residual add + attn LayerNorm
    x2 = pallas_proj_residual_layernorm(
        feats, x.reshape(b * n, dim), p["attn"]["w_out"], p["attn"]["b_out"],
        p["attn_norm_g"], p["attn_norm_b"])
    # fused: FeedForward (3 linears, 2 ReLUs) + residual add + ff LayerNorm
    x3 = pallas_ff_residual_layernorm(
        x2, p["ff_w1"], p["ff_b1"], p["ff_w2"], p["ff_b2"],
        p["ff_w3"], p["ff_b3"], p["ff_norm_g"], p["ff_norm_b"])
    return x3.reshape(b, n, dim)


def ipa_transformer_forward(params, single_repr, pairwise_repr, cfg,
                            translations=None, quaternions=None):
    b, n, dim = single_repr.shape
    x = single_repr.astype(jnp.float32)
    if quaternions is None:
        quaternions = jnp.tile(jnp.array([1.0, 0.0, 0.0, 0.0], jnp.float32),
                               (b, n, 1))
    if translations is None:
        translations = jnp.zeros((b, n, 3), jnp.float32)
    rotations = quaternion_to_matrix(quaternions)

    # TODO(synk): the AF2 `quat_affine.QuatAffine` / FAPE-loss (`criterion`,
    #             `backbone_frames`, `use_fape`) path is not translatable
    #             in-script; the coherent quaternion-update path (shown in the
    #             module's own commented reference code) is implemented instead.
    points_global = None
    for lp in params["layers"]:
        x = ipa_block(x, pairwise_repr, rotations, translations, lp["block"], cfg)

        # fused to_update + to_points projection (one tiny GEMM)
        w_upd = jnp.concatenate([lp["to_update_w"], params["to_points_w"]], axis=1)
        b_upd = jnp.concatenate([lp["to_update_b"], params["to_points_b"]], axis=0)
        act = pallas_linear(x.reshape(b * n, dim), w_upd, b_upd).reshape(b, n, 9)
        q_upd, t_upd, points_local = act[..., :3], act[..., 3:6], act[..., 6:9]

        q_upd4 = jnp.concatenate([jnp.ones((b, n, 1), jnp.float32), q_upd], axis=-1)
        quaternions = quaternion_multiply(quaternions, q_upd4)
        rotations = quaternion_to_matrix(quaternions)
        translations = translations + jnp.einsum("bnc,bncr->bnr", t_upd, rotations)

        points_global = jnp.einsum("bnc,bncd->bnd", points_local, rotations) \
            + translations
    return points_global, x, translations, quaternions


# ----------------------------------------------------------------------------
# Deterministic parameter init
# ----------------------------------------------------------------------------
def init_params(key, cfg, depth):
    dim, h = cfg["dim"], cfg["heads"]
    dk, dv, pq, pv, dp = cfg["dk"], cfg["dv"], cfg["pq"], cfg["pv"], cfg["dp"]
    keys = iter(jax.random.split(key, 32 * depth + 8))

    def W(din, dout, scale=0.05):
        return jax.random.normal(next(keys), (din, dout), jnp.float32) * scale

    def B(dout):
        return jnp.zeros((dout,), jnp.float32)

    out_in = h * (dv + dp + pv * 4)
    softplus_inv_one = float(math.log(math.e - 1.0))
    layers = []
    for _ in range(depth):
        attn = dict(
            wq_s=W(dim, h * dk), wk_s=W(dim, h * dk), wv_s=W(dim, h * dv),
            wq_p=W(dim, h * pq * 3), wk_p=W(dim, h * pq * 3), wv_p=W(dim, h * pv * 3),
            point_weights=jnp.full((h,), softplus_inv_one, jnp.float32),
            w_pair=W(dp, h), b_pair=B(h),
            w_out=W(out_in, dim), b_out=B(dim),
        )
        block = dict(
            attn=attn,
            attn_norm_g=jnp.ones((dim,), jnp.float32),
            attn_norm_b=jnp.zeros((dim,), jnp.float32),
            ff_w1=W(dim, dim), ff_b1=B(dim),
            ff_w2=W(dim, dim), ff_b2=B(dim),
            ff_w3=W(dim, dim), ff_b3=B(dim),
            ff_norm_g=jnp.ones((dim,), jnp.float32),
            ff_norm_b=jnp.zeros((dim,), jnp.float32),
        )
        layers.append(dict(block=block, to_update_w=W(dim, 6), to_update_b=B(6)))
    return dict(layers=layers, to_points_w=W(dim, 3), to_points_b=B(3))


# ----------------------------------------------------------------------------
# main
# ----------------------------------------------------------------------------
if __name__ == "__main__":
    cfg = dict(dim=32, heads=4, dk=8, dv=8, pq=4, pv=4, dp=8)
    depth = 2
    b, n = 2, 8

    key = jax.random.PRNGKey(0)
    k_params, k_single, k_pair = jax.random.split(key, 3)
    params = init_params(k_params, cfg, depth)
    single_repr = jax.random.normal(k_single, (b, n, cfg["dim"]), jnp.float32)
    pairwise_repr = jax.random.normal(k_pair, (b, n, n, cfg["dp"]), jnp.float32)

    fwd = jax.jit(lambda p, s, pw: ipa_transformer_forward(p, s, pw, cfg))
    points_global, x_out, translations, quaternions = fwd(
        params, single_repr, pairwise_repr)
    jax.block_until_ready((points_global, x_out, translations, quaternions))

    assert points_global.shape == (b, n, 3)
    assert x_out.shape == (b, n, cfg["dim"])
    assert translations.shape == (b, n, 3)
    assert quaternions.shape == (b, n, 4)
    print("KERNEL_OK")
</pallas_src>

<mosaic_0001>
module attributes {stable_mosaic.version = 11 : i64} {
  func.func @kernel(%arg0: i32, %arg1: memref<16x32xf32, #tpu.memory_space<vmem>>, %arg2: memref<32x240xf32, #tpu.memory_space<vmem>>, %arg3: memref<16x240xf32, #tpu.memory_space<vmem>>) attributes {dimension_semantics = [#tpu.dimension_semantics<parallel>], iteration_bounds = array<i64: 1>, scalar_prefetch = 0 : i64, scratch_operands = 0 : i64, tpu.core_type = #tpu.core_type<tc>, window_params = [{transform_indices = @transform_0, window_bounds = array<i64: 16, 32>}, {pipeline_mode = #tpu.pipeline_mode<synchronous>, transform_indices = @transform_1, window_bounds = array<i64: 32, 240>}, {transform_indices = @transform_2, window_bounds = array<i64: 16, 240>}]} {
    %c0 = arith.constant 0 : index
    %c0_0 = arith.constant 0 : index
    %0 = vector.load %arg1[%c0, %c0_0] : memref<16x32xf32, #tpu.memory_space<vmem>>, vector<16x32xf32>
    %c0_1 = arith.constant 0 : index
    %c0_2 = arith.constant 0 : index
    %1 = vector.load %arg2[%c0_1, %c0_2] : memref<32x240xf32, #tpu.memory_space<vmem>>, vector<32x240xf32>
    %2 = arith.truncf %0 : vector<16x32xf32> to vector<16x32xbf16>
    %3 = arith.truncf %1 : vector<32x240xf32> to vector<32x240xbf16>
    %cst = arith.constant dense<0.000000e+00> : vector<16x240xf32>
    %4 = tpu.matmul %2, %3, %cst {dimension_numbers = #tpu.dot_dimension_numbers<[1], [0], [0], [1], [0, 0, 1, 1], [], []>} : vector<16x32xbf16>, vector<32x240xbf16>, vector<16x240xf32> -> vector<16x240xf32>
    %c0_3 = arith.constant 0 : index
    %c0_4 = arith.constant 0 : index
    %5 = vector.load %arg3[%c0_3, %c0_4] : memref<16x240xf32, #tpu.memory_space<vmem>>, vector<16x240xf32>
    tpu.vector_store %arg3[%c0_3, %c0_4], %4 {strides = array<i32>} : memref<16x240xf32, #tpu.memory_space<vmem>>, vector<16x240xf32>,
    return
  }
  func.func @transform_0(%arg0: i32) -> (i32, i32) {
    %c0_i32 = arith.constant 0 : i32
    %c0_i32_0 = arith.constant 0 : i32
    return %arg0, %c0_i32 : i32, i32
  }
  func.func @transform_1(%arg0: i32) -> (i32, i32) {
    %c0_i32 = arith.constant 0 : i32
    %c0_i32_0 = arith.constant 0 : i32
    %c0_i32_1 = arith.constant 0 : i32
    return %c0_i32, %c0_i32_0 : i32, i32
  }
  func.func @transform_2(%arg0: i32) -> (i32, i32) {
    %c0_i32 = arith.constant 0 : i32
    %c0_i32_0 = arith.constant 0 : i32
    return %arg0, %c0_i32 : i32, i32
  }
}

module attributes {stable_mosaic.version = 11 : i64} {
  func.func @kernel(%arg0: i32, %arg1: memref<1x8x80xf32, #tpu.memory_space<vmem>>, %arg2: memref<1x8x80xf32, #tpu.memory_space<vmem>>, %arg3: memref<1x8x4xf32, #tpu.memory_space<vmem>>, %arg4: memref<1x4x8xf32, #tpu.memory_space<vmem>>, %arg5: memref<1x8x32xf32, #tpu.memory_space<vmem>>, %arg6: memref<1x8x48xf32, #tpu.memory_space<vmem>>, %arg7: memref<1x8x8x8xf32, #tpu.memory_space<vmem>>, %arg8: memref<8x4xf32, #tpu.memory_space<smem>>, %arg9: memref<4xf32, #tpu.memory_space<smem>>, %arg10: memref<1x8x32xf32, #tpu.memory_space<vmem>>, %arg11: memref<1x8x48xf32, #tpu.memory_space<vmem>>, %arg12: memref<1x32x8xf32, #tpu.memory_space<vmem>>) attributes {dimension_semantics = [#tpu.dimension_semantics<parallel>], iteration_bounds = array<i64: 2>, scalar_prefetch = 0 : i64, scratch_operands = 0 : i64, tpu.core_type = #tpu.core_type<tc>, window_params = [{transform_indices = @transform_0, window_bounds = array<i64: 1, 8, 80>}, {transform_indices = @transform_1, window_bounds = array<i64: 1, 8, 80>}, {transform_indices = @transform_2, window_bounds = array<i64: 1, 8, 4>}, {transform_indices = @transform_3, window_bounds = array<i64: 1, 4, 8>}, {transform_indices = @transform_4, window_bounds = array<i64: 1, 8, 32>}, {transform_indices = @transform_5, window_bounds = array<i64: 1, 8, 48>}, {transform_indices = @transform_6, window_bounds = array<i64: 1, 8, 8, 8>}, {transform_indices = @transform_7, window_bounds = array<i64: 8, 4>}, {transform_indices = @transform_8, window_bounds = array<i64: 4>}, {transform_indices = @transform_9, window_bounds = array<i64: 1, 8, 32>}, {transform_indices = @transform_10, window_bounds = array<i64: 1, 8, 48>}, {transform_indices = @transform_11, window_bounds = array<i64: 1, 32, 8>}]} {
    %c0 = arith.constant 0 : index
    %c0_0 = arith.constant 0 : index
    %c0_1 = arith.constant 0 : index
    %0 = vector.load %arg1[%c0, %c0_0, %c0_1] : memref<1x8x80xf32, #tpu.memory_space<vmem>>, vector<1x8x80xf32>
    %1 = vector.shape_cast %0 : vector<1x8x80xf32> to vector<8x80xf32>
    %c0_2 = arith.constant 0 : index
    %c0_3 = arith.constant 0 : index
    %c0_4 = arith.constant 0 : index
    %2 = vector.load %arg2[%c0_2, %c0_3, %c0_4] : memref<1x8x80xf32, #tpu.memory_space<vmem>>, vector<1x8x80xf32>
    %3 = vector.shape_cast %2 : vector<1x8x80xf32> to vector<8x80xf32>
    %c0_5 = arith.constant 0 : index
    %c0_6 = arith.constant 0 : index
    %c0_7 = arith.constant 0 : index
    %4 = vector.load %arg3[%c0_5, %c0_6, %c0_7] : memref<1x8x4xf32, #tpu.memory_space<vmem>>, vector<1x8x4xf32>
    %5 = vector.shape_cast %4 : vector<1x8x4xf32> to vector<8x4xf32>
    %c0_8 = arith.constant 0 : index
    %c0_9 = arith.constant 0 : index
    %c0_10 = arith.constant 0 : index
    %6 = vector.load %arg4[%c0_8, %c0_9, %c0_10] : memref<1x4x8xf32, #tpu.memory_space<vmem>>, vector<1x4x8xf32>
    %7 = vector.shape_cast %6 : vector<1x4x8xf32> to vector<4x8xf32>
    %c0_11 = arith.constant 0 : index
    %c0_12 = arith.constant 0 : index
    %c0_13 = arith.constant 0 : index
    %8 = vector.load %arg5[%c0_11, %c0_12, %c0_13] : memref<1x8x32xf32, #tpu.memory_space<vmem>>, vector<1x8x32xf32>
    %9 = vector.shape_cast %8 : vector<1x8x32xf32> to vector<8x32xf32>
    %c0_14 = arith.constant 0 : index
    %c0_15 = arith.constant 0 : index
    %c0_16 = arith.constant 0 : index
    %10 = vector.load %arg6[%c0_14, %c0_15, %c0_16] : memref<1x8x48xf32, #tpu.memory_space<vmem>>, vector<1x8x48xf32>
    %11 = vector.shape_cast %10 : vector<1x8x48xf32> to vector<8x48xf32>
    %c0_17 = arith.constant 0 : index
    %c0_18 = arith.constant 0 : index
    %c0_19 = arith.constant 0 : index
    %c0_20 = arith.constant 0 : index
    %12 = vector.load %arg7[%c0_17, %c0_18, %c0_19, %c0_20] : memref<1x8x8x8xf32, #tpu.memory_space<vmem>>, vector<1x8x8x8xf32>
    %13 = vector.shape_cast %12 : vector<1x8x8x8xf32> to vector<8x8x8xf32>
    %14 = vector.extract_strided_slice %1 {offsets = [0, 0], sizes = [8, 20], strides = [1, 1]} : vector<8x80xf32> to vector<8x20xf32>
    %15 = arith.truncf %14 : vector<8x20xf32> to vector<8x20xbf16>
    %16 = vector.extract_strided_slice %3 {offsets = [0, 0], sizes = [8, 20], strides = [1, 1]} : vector<8x80xf32> to vector<8x20xf32>
    %17 = arith.truncf %16 : vector<8x20xf32> to vector<8x20xbf16>
    %cst = arith.constant dense<0.000000e+00> : vector<8x8xf32>
    %18 = tpu.matmul %15, %17, %cst {dimension_numbers = #tpu.dot_dimension_numbers<[1], [1], [0], [0], [0, 0, 1, 0], [], []>} : vector<8x20xbf16>, vector<8x20xbf16>, vector<8x8xf32> -> vector<8x8xf32>
    %19 = vector.extract_strided_slice %5 {offsets = [0, 0], sizes = [8, 1], strides = [1, 1]} : vector<8x4xf32> to vector<8x1xf32>
    %20 = vector.broadcast %19 : vector<8x1xf32> to vector<8x8xf32>
    %21 = arith.subf %18, %20 : vector<8x8xf32>
    %22 = vector.extract_strided_slice %7 {offsets = [0, 0], sizes = [1, 8], strides = [1, 1]} : vector<4x8xf32> to vector<1x8xf32>
    %23 = vector.broadcast %22 : vector<1x8xf32> to vector<8x8xf32>
    %24 = arith.subf %21, %23 : vector<8x8xf32>
    %c0_21 = arith.constant 0 : index
    %25 = memref.load %arg9[%c0_21] : memref<4xf32, #tpu.memory_space<smem>>
    %26 = vector.broadcast %25 : f32 to vector<8x8xf32>
    %27 = arith.addf %24, %26 : vector<8x8xf32>
    %28 = vector.extract_strided_slice %13 {offsets = [0, 0, 0], sizes = [1, 8, 8], strides = [1, 1, 1]} : vector<8x8x8xf32> to vector<1x8x8xf32>
    %29 = vector.shape_cast %28 : vector<1x8x8xf32> to vector<8x8xf32>
    %c0_22 = arith.constant 0 : index
    %c0_23 = arith.constant 0 : index
    %30 = memref.load %arg8[%c0_22, %c0_23] : memref<8x4xf32, #tpu.memory_space<smem>>
    %31 = vector.broadcast %30 : f32 to vector<8x8xf32>
    %32 = arith.mulf %29, %31 : vector<8x8xf32>
    %33 = arith.addf %27, %32 : vector<8x8xf32>
    %34 = vector.extract_strided_slice %13 {offsets = [1, 0, 0], sizes = [1, 8, 8], strides = [1, 1, 1]} : vector<8x8x8xf32> to vector<1x8x8xf32>
    %35 = vector.shape_cast %34 : vector<1x8x8xf32> to vector<8x8xf32>
    %c1 = arith.constant 1 : index
    %c0_24 = arith.constant 0 : index
    %36 = memref.load %arg8[%c1, %c0_24] : memref<8x4xf32, #tpu.memory_space<smem>>
    %37 = vector.broadcast %36 : f32 to vector<8x8xf32>
    %38 = arith.mulf %35, %37 : vector<8x8xf32>
    %39 = arith.addf %33, %38 : vector<8x8xf32>
    %40 = vector.extract_strided_slice %13 {offsets = [2, 0, 0], sizes = [1, 8, 8], strides = [1, 1, 1]} : vector<8x8x8xf32> to vector<1x8x8xf32>
    %41 = vector.shape_cast %40 : vector<1x8x8xf32> to vector<8x8xf32>
    %c2 = arith.constant 2 : index
    %c0_25 = arith.constant 0 : index
    %42 = memref.load %arg8[%c2, %c0_25] : memref<8x4xf32, #tpu.memory_space<smem>>
    %43 = vector.broadcast %42 : f32 to vector<8x8xf32>
    %44 = arith.mulf %41, %43 : vector<8x8xf32>
    %45 = arith.addf %39, %44 : vector<8x8xf32>
    %46 = vector.extract_strided_slice %13 {offsets = [3, 0, 0], sizes = [1, 8, 8], strides = [1, 1, 1]} : vector<8x8x8xf32> to vector<1x8x8xf32>
    %47 = vector.shape_cast %46 : vector<1x8x8xf32> to vector<8x8xf32>
    %c3 = arith.constant 3 : index
    %c0_26 = arith.constant 0 : index
    %48 = memref.load %arg8[%c3, %c0_26] : memref<8x4xf32, #tpu.memory_space<smem>>
    %49 = vector.broadcast %48 : f32 to vector<8x8xf32>
    %50 = arith.mulf %47, %49 : vector<8x8xf32>
    %51 = arith.addf %45, %50 : vector<8x8xf32>
    %52 = vector.extract_strided_slice %13 {offsets = [4, 0, 0], sizes = [1, 8, 8], strides = [1, 1, 1]} : vector<8x8x8xf32> to vector<1x8x8xf32>
    %53 = vector.shape_cast %52 : vector<1x8x8xf32> to vector<8x8xf32>
    %c4 = arith.constant 4 : index
    %c0_27 = arith.constant 0 : index
    %54 = memref.load %arg8[%c4, %c0_27] : memref<8x4xf32, #tpu.memory_space<smem>>
    %55 = vector.broadcast %54 : f32 to vector<8x8xf32>
    %56 = arith.mulf %53, %55 : vector<8x8xf32>
    %57 = arith.addf %51, %56 : vector<8x8xf32>
    %58 = vector.extract_strided_slice %13 {offsets = [5, 0, 0], sizes = [1, 8, 8], strides = [1, 1, 1]} : vector<8x8x8xf32> to vector<1x8x8xf32>
    %59 = vector.shape_cast %58 : vector<1x8x8xf32> to vector<8x8xf32>
    %c5 = arith.constant 5 : index
    %c0_28 = arith.constant 0 : index
    %60 = memref.load %arg8[%c5, %c0_28] : memref<8x4xf32, #tpu.memory_space<smem>>
    %61 = vector.broadcast %60 : f32 to vector<8x8xf32>
    %62 = arith.mulf %59, %61 : vector<8x8xf32>
    %63 = arith.addf %57, %62 : vector<8x8xf32>
    %64 = vector.extract_strided_slice %13 {offsets = [6, 0, 0], sizes = [1, 8, 8], strides = [1, 1, 1]} : vector<8x8x8xf32> to vector<1x8x8xf32>
    %65 = vector.shape_cast %64 : vector<1x8x8xf32> to vector<8x8xf32>
    %c6 = arith.constant 6 : index
    %c0_29 = arith.constant 0 : index
    %66 = memref.load %arg8[%c6, %c0_29] : memref<8x4xf32, #tpu.memory_space<smem>>
    %67 = vector.broadcast %66 : f32 to vector<8x8xf32>
    %68 = arith.mulf %65, %67 : vector<8x8xf32>
    %69 = arith.addf %63, %68 : vector<8x8xf32>
    %70 = vector.extract_strided_slice %13 {offsets = [7, 0, 0], sizes = [1, 8, 8], strides = [1, 1, 1]} : vector<8x8x8xf32> to vector<1x8x8xf32>
    %71 = vector.shape_cast %70 : vector<1x8x8xf32> to vector<8x8xf32>
    %c7 = arith.constant 7 : index
    %c0_30 = arith.constant 0 : index
    %72 = memref.load %arg8[%c7, %c0_30] : memref<8x4xf32, #tpu.memory_space<smem>>
    %73 = vector.broadcast %72 : f32 to vector<8x8xf32>
    %74 = arith.mulf %71, %73 : vector<8x8xf32>
    %75 = arith.addf %69, %74 : vector<8x8xf32>
    %cst_31 = arith.constant dense<0xFF800000> : vector<8xf32>
    %76 = vector.multi_reduction <maximumf>, %75, %cst_31 [1] : vector<8x8xf32> to vector<8xf32>
    %77 = vector.shape_cast %76 : vector<8xf32> to vector<8x1xf32>
    %78 = vector.broadcast %77 : vector<8x1xf32> to vector<8x8xf32>
    %79 = arith.subf %75, %78 : vector<8x8xf32>
    %80 = math.exp %79 : vector<8x8xf32>
    %cst_32 = arith.constant dense<0.000000e+00> : vector<8xf32>
    %81 = vector.multi_reduction <add>, %80, %cst_32 [1] : vector<8x8xf32> to vector<8xf32>
    %82 = vector.shape_cast %81 : vector<8xf32> to vector<8x1xf32>
    %83 = tpu.reciprocal %82 {approx = true} : vector<8x1xf32> -> vector<8x1xf32>
    %84 = vector.broadcast %83 : vector<8x1xf32> to vector<8x8xf32>
    %85 = arith.mulf %80, %84 : vector<8x8xf32>
    %86 = vector.extract_strided_slice %9 {offsets = [0, 0], sizes = [8, 8], strides = [1, 1]} : vector<8x32xf32> to vector<8x8xf32>
    %cst_33 = arith.constant dense<0.000000e+00> : vector<8x8xf32>
    %87 = tpu.matmul %85, %86, %cst_33 {dimension_numbers = #tpu.dot_dimension_numbers<[1], [0], [0], [1], [0, 0, 1, 1], [], []>} : vector<8x8xf32>, vector<8x8xf32>, vector<8x8xf32> -> vector<8x8xf32>
    %c0_34 = arith.constant 0 : index
    %c0_35 = arith.constant 0 : index
    %c0_36 = arith.constant 0 : index
    %88 = vector.load %arg10[%c0_34, %c0_35, %c0_36] : memref<1x8x32xf32, #tpu.memory_space<vmem>>, vector<1x8x8xf32>
    %89 = vector.shape_cast %88 : vector<1x8x8xf32> to vector<8x8xf32>
    %90 = vector.shape_cast %87 : vector<8x8xf32> to vector<1x8x8xf32>
    tpu.vector_store %arg10[%c0_34, %c0_35, %c0_36], %90 {strides = array<i32>} : memref<1x8x32xf32, #tpu.memory_space<vmem>>, vector<1x8x8xf32>,
    %91 = vector.extract_strided_slice %11 {offsets = [0, 0], sizes = [8, 12], strides = [1, 1]} : vector<8x48xf32> to vector<8x12xf32>
    %cst_37 = arith.constant dense<0.000000e+00> : vector<8x12xf32>
    %92 = tpu.matmul %85, %91, %cst_37 {dimension_numbers = #tpu.dot_dimension_numbers<[1], [0], [0], [1], [0, 0, 1, 1], [], []>} : vector<8x8xf32>, vector<8x12xf32>, vector<8x12xf32> -> vector<8x12xf32>
    %c0_38 = arith.constant 0 : index
    %c0_39 = arith.constant 0 : index
    %c0_40 = arith.constant 0 : index
    %93 = vector.load %arg11[%c0_38, %c0_39, %c0_40] : memref<1x8x48xf32, #tpu.memory_space<vmem>>, vector<1x8x12xf32>
    %94 = vector.shape_cast %93 : vector<1x8x12xf32> to vector<8x12xf32>
    %95 = vector.shape_cast %92 : vector<8x12xf32> to vector<1x8x12xf32>
    tpu.vector_store %arg11[%c0_38, %c0_39, %c0_40], %95 {strides = array<i32>} : memref<1x8x48xf32, #tpu.memory_space<vmem>>, vector<1x8x12xf32>,
    %96 = vector.shape_cast %85 : vector<8x8xf32> to vector<1x8x8xf32>
    %97 = vector.broadcast %96 : vector<1x8x8xf32> to vector<8x8x8xf32>
    %98 = arith.mulf %97, %13 : vector<8x8x8xf32>
    %cst_41 = arith.constant dense<0.000000e+00> : vector<8x8xf32>
    %99 = vector.multi_reduction <add>, %98, %cst_41 [2] : vector<8x8x8xf32> to vector<8x8xf32>
    %c0_42 = arith.constant 0 : index
    %c0_43 = arith.constant 0 : index
    %c0_44 = arith.constant 0 : index
    %100 = vector.load %arg12[%c0_42, %c0_43, %c0_44] : memref<1x32x8xf32, #tpu.memory_space<vmem>>, vector<1x8x8xf32>
    %101 = vector.shape_cast %100 : vector<1x8x8xf32> to vector<8x8xf32>
    %102 = vector.shape_cast %99 : vector<8x8xf32> to vector<1x8x8xf32>
    tpu.vector_store %arg12[%c0_42, %c0_43, %c0_44], %102 {strides = array<i32>} : memref<1x32x8xf32, #tpu.memory_space<vmem>>, vector<1x8x8xf32>,
    %103 = vector.extract_strided_slice %1 {offsets = [0, 20], sizes = [8, 20], strides = [1, 1]} : vector<8x80xf32> to vector<8x20xf32>
    %104 = arith.truncf %103 : vector<8x20xf32> to vector<8x20xbf16>
    %105 = vector.extract_strided_slice %3 {offsets = [0, 20], sizes = [8, 20], strides = [1, 1]} : vector<8x80xf32> to vector<8x20xf32>
    %106 = arith.truncf %105 : vector<8x20xf32> to vector<8x20xbf16>
    %cst_45 = arith.constant dense<0.000000e+00> : vector<8x8xf32>
    %107 = tpu.matmul %104, %106, %cst_45 {dimension_numbers = #tpu.dot_dimension_numbers<[1], [1], [0], [0], [0, 0, 1, 0], [], []>} : vector<8x20xbf16>, vector<8x20xbf16>, vector<8x8xf32> -> vector<8x8xf32>
    %108 = vector.extract_strided_slice %5 {offsets = [0, 1], sizes = [8, 1], strides = [1, 1]} : vector<8x4xf32> to vector<8x1xf32>
    %109 = vector.broadcast %108 : vector<8x1xf32> to vector<8x8xf32>
    %110 = arith.subf %107, %109 : vector<8x8xf32>
    %111 = vector.extract_strided_slice %7 {offsets = [1, 0], sizes = [1, 8], strides = [1, 1]} : vector<4x8xf32> to vector<1x8xf32>
    %112 = vector.broadcast %111 : vector<1x8xf32> to vector<8x8xf32>
    %113 = arith.subf %110, %112 : vector<8x8xf32>
    %c1_46 = arith.constant 1 : index
    %114 = memref.load %arg9[%c1_46] : memref<4xf32, #tpu.memory_space<smem>>
    %115 = vector.broadcast %114 : f32 to vector<8x8xf32>
    %116 = arith.addf %113, %115 : vector<8x8xf32>
    %117 = vector.extract_strided_slice %13 {offsets = [0, 0, 0], sizes = [1, 8, 8], strides = [1, 1, 1]} : vector<8x8x8xf32> to vector<1x8x8xf32>
    %118 = vector.shape_cast %117 : vector<1x8x8xf32> to vector<8x8xf32>
    %c0_47 = arith.constant 0 : index
    %c1_48 = arith.constant 1 : index
    %119 = memref.load %arg8[%c0_47, %c1_48] : memref<8x4xf32, #tpu.memory_space<smem>>
    %120 = vector.broadcast %119 : f32 to vector<8x8xf32>
    %121 = arith.mulf %118, %120 : vector<8x8xf32>
    %122 = arith.addf %116, %121 : vector<8x8xf32>
    %123 = vector.extract_strided_slice %13 {offsets = [1, 0, 0], sizes = [1, 8, 8], strides = [1, 1, 1]} : vector<8x8x8xf32> to vector<1x8x8xf32>
    %124 = vector.shape_cast %123 : vector<1x8x8xf32> to vector<8x8xf32>
    %c1_49 = arith.constant 1 : index
    %c1_50 = arith.constant 1 : index
    %125 = memref.load %arg8[%c1_49, %c1_50] : memref<8x4xf32, #tpu.memory_space<smem>>
    %126 = vector.broadcast %125 : f32 to vector<8x8xf32>
    %127 = arith.mulf %124, %126 : vector<8x8xf32>
    %128 = arith.addf %122, %127 : vector<8x8xf32>
    %129 = vector.extract_strided_slice %13 {offsets = [2, 0, 0], sizes = [1, 8, 8], strides = [1, 1, 1]} : vector<8x8x8xf32> to vector<1x8x8xf32>
    %130 = vector.shape_cast %129 : vector<1x8x8xf32> to vector<8x8xf32>
    %c2_51 = arith.constant 2 : index
    %c1_52 = arith.constant 1 : index
    %131 = memref.load %arg8[%c2_51, %c1_52] : memref<8x4xf32, #tpu.memory_space<smem>>
    %132 = vector.broadcast %131 : f32 to vector<8x8xf32>
    %133 = arith.mulf %130, %132 : vector<8x8xf32>
    %134 = arith.addf %128, %133 : vector<8x8xf32>
    %135 = vector.extract_strided_slice %13 {offsets = [3, 0, 0], sizes = [1, 8, 8], strides = [1, 1, 1]} : vector<8x8x8xf32> to vector<1x8x8xf32>
    %136 = vector.shape_cast %135 : vector<1x8x8xf32> to vector<8x8xf32>
    %c3_53 = arith.constant 3 : index
    %c1_54 = arith.constant 1 : index
    %137 = memref.load %arg8[%c3_53, %c1_54] : memref<8x4xf32, #tpu.memory_space<smem>>
    %138 = vector.broadcast %137 : f32 to vector<8x8xf32>
    %139 = arith.mulf %136, %138 : vector<8x8xf32>
    %140 = arith.addf %134, %139 : vector<8x8xf32>
    %141 = vector.extract_strided_slice %13 {offsets = [4, 0, 0], sizes = [1, 8, 8], strides = [1, 1, 1]} : vector<8x8x8xf32> to vector<1x8x8xf32>
    %142 = vector.shape_cast %141 : vector<1x8x8xf32> to vector<8x8xf32>
    %c4_55 = arith.constant 4 : index
    %c1_56 = arith.constant 1 : index
    %143 = memref.load %arg8[%c4_55, %c1_56] : memref<8x4xf32, #tpu.memory_space<smem>>
    %144 = vector.broadcast %143 : f32 to vector<8x8xf32>
    %145 = arith.mulf %142, %144 : vector<8x8xf32>
    %146 = arith.addf %140, %145 : vector<8x8xf32>
    %147 = vector.extract_strided_slice %13 {offsets = [5, 0, 0], sizes = [1, 8, 8], strides = [1, 1, 1]} : vector<8x8x8xf32> to vector<1x8x8xf32>
    %148 = vector.shape_cast %147 : vector<1x8x8xf32> to vector<8x8xf32>
    %c5_57 = arith.constant 5 : index
    %c1_58 = arith.constant 1 : index
    %149 = memref.load %arg8[%c5_57, %c1_58] : memref<8x4xf32, #tpu.memory_space<smem>>
    %150 = vector.broadcast %149 : f32 to vector<8x8xf32>
    %151 = arith.mulf %148, %150 : vector<8x8xf32>
    %152 = arith.addf %146, %151 : vector<8x8xf32>
    %153 = vector.extract_strided_slice %13 {offsets = [6, 0, 0], sizes = [1, 8, 8], strides = [1, 1, 1]} : vector<8x8x8xf32> to vector<1x8x8xf32>
    %154 = vector.shape_cast %153 : vector<1x8x8xf32> to vector<8x8xf32>
    %c6_59 = arith.constant 6 : index
    %c1_60 = arith.constant 1 : index
    %155 = memref.load %arg8[%c6_59, %c1_60] : memref<8x4xf32, #tpu.memory_space<smem>>
    %156 = vector.broadcast %155 : f32 to vector<8x8xf32>
    %157 = arith.mulf %154, %156 : vector<8x8xf32>
    %158 = arith.addf %152, %157 : vector<8x8xf32>
    %159 = vector.extract_strided_slice %13 {offsets = [7, 0, 0], sizes = [1, 8, 8], strides = [1, 1, 1]} : vector<8x8x8xf32> to vector<1x8x8xf32>
    %160 = vector.shape_cast %159 : vector<1x8x8xf32> to vector<8x8xf32>
    %c7_61 = arith.constant 7 : index
    %c1_62 = arith.constant 1 : index
    %161 = memref.load %arg8[%c7_61, %c1_62] : memref<8x4xf32, #tpu.memory_space<smem>>
    %162 = vector.broadcast %161 : f32 to vector<8x8xf32>
    %163 = arith.mulf %160, %162 : vector<8x8xf32>
    %164 = arith.addf %158, %163 : vector<8x8xf32>
    %cst_63 = arith.constant dense<0xFF800000> : vector<8xf32>
    %165 = vector.multi_reduction <maximumf>, %164, %cst_63 [1] : vector<8x8xf32> to vector<8xf32>
    %166 = vector.shape_cast %165 : vector<8xf32> to vector<8x1xf32>
    %167 = vector.broadcast %166 : vector<8x1xf32> to vector<8x8xf32>
    %168 = arith.subf %164, %167 : vector<8x8xf32>
    %169 = math.exp %168 : vector<8x8xf32>
    %cst_64 = arith.constant dense<0.000000e+00> : vector<8xf32>
    %170 = vector.multi_reduction <add>, %169, %cst_64 [1] : vector<8x8xf32> to vector<8xf32>
    %171 = vector.shape_cast %170 : vector<8xf32> to vector<8x1xf32>
    %172 = tpu.reciprocal %171 {approx = true} : vector<8x1xf32> -> vector<8x1xf32>
    %173 = vector.broadcast %172 : vector<8x1xf32> to vector<8x8xf32>
    %174 = arith.mulf %169, %173 : vector<8x8xf32>
    %175 = vector.extract_strided_slice %9 {offsets = [0, 8], sizes = [8, 8], strides = [1, 1]} : vector<8x32xf32> to vector<8x8xf32>
    %cst_65 = arith.constant dense<0.000000e+00> : vector<8x8xf32>
    %176 = tpu.matmul %174, %175, %cst_65 {dimension_numbers = #tpu.dot_dimension_numbers<[1], [0], [0], [1], [0, 0, 1, 1], [], []>} : vector<8x8xf32>, vector<8x8xf32>, vector<8x8xf32> -> vector<8x8xf32>
    %c0_66 = arith.constant 0 : index
    %c0_67 = arith.constant 0 : index
    %c8 = arith.constant 8 : index
    %177 = vector.load %arg10[%c0_66, %c0_67, %c8] : memref<1x8x32xf32, #tpu.memory_space<vmem>>, vector<1x8x8xf32>
    %178 = vector.shape_cast %177 : vector<1x8x8xf32> to vector<8x8xf32>
    %179 = vector.shape_cast %176 : vector<8x8xf32> to vector<1x8x8xf32>
    tpu.vector_store %arg10[%c0_66, %c0_67, %c8], %179 {strides = array<i32>} : memref<1x8x32xf32, #tpu.memory_space<vmem>>, vector<1x8x8xf32>,
    %180 = vector.extract_strided_slice %11 {offsets = [0, 12], sizes = [8, 12], strides = [1, 1]} : vector<8x48xf32> to vector<8x12xf32>
    %cst_68 = arith.constant dense<0.000000e+00> : vector<8x12xf32>
    %181 = tpu.matmul %174, %180, %cst_68 {dimension_numbers = #tpu.dot_dimension_numbers<[1], [0], [0], [1], [0, 0, 1, 1], [], []>} : vector<8x8xf32>, vector<8x12xf32>, vector<8x12xf32> -> vector<8x12xf32>
    %c0_69 = arith.constant 0 : index
    %c0_70 = arith.constant 0 : index
    %c12 = arith.constant 12 : index
    %182 = vector.load %arg11[%c0_69, %c0_70, %c12] : memref<1x8x48xf32, #tpu.memory_space<vmem>>, vector<1x8x12xf32>
    %183 = vector.shape_cast %182 : vector<1x8x12xf32> to vector<8x12xf32>
    %184 = vector.shape_cast %181 : vector<8x12xf32> to vector<1x8x12xf32>
    tpu.vector_store %arg11[%c0_69, %c0_70, %c12], %184 {strides = array<i32>} : memref<1x8x48xf32, #tpu.memory_space<vmem>>, vector<1x8x12xf32>,
    %185 = vector.shape_cast %174 : vector<8x8xf32> to vector<1x8x8xf32>
    %186 = vector.broadcast %185 : vector<1x8x8xf32> to vector<8x8x8xf32>
    %187 = arith.mulf %186, %13 : vector<8x8x8xf32>
    %cst_71 = arith.constant dense<0.000000e+00> : vector<8x8xf32>
    %188 = vector.multi_reduction <add>, %187, %cst_71 [2] : vector<8x8x8xf32> to vector<8x8xf32>
    %c0_72 = arith.constant 0 : index
    %c8_73 = arith.constant 8 : index
    %c0_74 = arith.constant 0 : index
    %189 = vector.load %arg12[%c0_72, %c8_73, %c0_74] : memref<1x32x8xf32, #tpu.memory_space<vmem>>, vector<1x8x8xf32>
    %190 = vector.shape_cast %189 : vector<1x8x8xf32> to vector<8x8xf32>
    %191 = vector.shape_cast %188 : vector<8x8xf32> to vector<1x8x8xf32>
    tpu.vector_store %arg12[%c0_72, %c8_73, %c0_74], %191 {strides = array<i32>} : memref<1x32x8xf32, #tpu.memory_space<vmem>>, vector<1x8x8xf32>,
    %192 = vector.extract_strided_slice %1 {offsets = [0, 40], sizes = [8, 20], strides = [1, 1]} : vector<8x80xf32> to vector<8x20xf32>
    %193 = arith.truncf %192 : vector<8x20xf32> to vector<8x20xbf16>
    %194 = vector.extract_strided_slice %3 {offsets = [0, 40], sizes = [8, 20], strides = [1, 1]} : vector<8x80xf32> to vector<8x20xf32>
    %195 = arith.truncf %194 : vector<8x20xf32> to vector<8x20xbf16>
    %cst_75 = arith.constant dense<0.000000e+00> : vector<8x8xf32>
    %196 = tpu.matmul %193, %195, %cst_75 {dimension_numbers = #tpu.dot_dimension_numbers<[1], [1], [0], [0], [0, 0, 1, 0], [], []>} : vector<8x20xbf16>, vector<8x20xbf16>, vector<8x8xf32> -> vector<8x8xf32>
    %197 = vector.extract_strided_slice %5 {offsets = [0, 2], sizes = [8, 1], strides = [1, 1]} : vector<8x4xf32> to vector<8x1xf32>
    %198 = vector.broadcast %197 : vector<8x1xf32> to vector<8x8xf32>
    %199 = arith.subf %196, %198 : vector<8x8xf32>
    %200 = vector.extract_strided_slice %7 {offsets = [2, 0], sizes = [1, 8], strides = [1, 1]} : vector<4x8xf32> to vector<1x8xf32>
    %201 = vector.broadcast %200 : vector<1x8xf32> to vector<8x8xf32>
    %202 = arith.subf %199, %201 : vector<8x8xf32>
    %c2_76 = arith.constant 2 : index
    %203 = memref.load %arg9[%c2_76] : memref<4xf32, #tpu.memory_space<smem>>
    %204 = vector.broadcast %203 : f32 to vector<8x8xf32>
    %205 = arith.addf %202, %204 : vector<8x8xf32>
    %206 = vector.extract_strided_slice %13 {offsets = [0, 0, 0], sizes = [1, 8, 8], strides = [1, 1, 1]} : vector<8x8x8xf32> to vector<1x8x8xf32>
    %207 = vector.shape_cast %206 : vector<1x8x8xf32> to vector<8x8xf32>
    %c0_77 = arith.constant 0 : index
    %c2_78 = arith.constant 2 : index
    %208 = memref.load %arg8[%c0_77, %c2_78] : memref<8x4xf32, #tpu.memory_space<smem>>
    %209 = vector.broadcast %208 : f32 to vector<8x8xf32>
    %210 = arith.mulf %207, %209 : vector<8x8xf32>
    %211 = arith.addf %205, %210 : vector<8x8xf32>
    %212 = vector.extract_strided_slice %13 {offsets = [1, 0, 0], sizes = [1, 8, 8], strides = [1, 1, 1]} : vector<8x8x8xf32> to vector<1x8x8xf32>
    %213 = vector.shape_cast %212 : vector<1x8x8xf32> to vector<8x8xf32>
    %c1_79 = arith.constant 1 : index
    %c2_80 = arith.constant 2 : index
    %214 = memref.load %arg8[%c1_79, %c2_80] : memref<8x4xf32, #tpu.memory_space<smem>>
    %215 = vector.broadcast %214 : f32 to vector<8x8xf32>
    %216 = arith.mulf %213, %215 : vector<8x8xf32>
    %217 = arith.addf %211, %216 : vector<8x8xf32>
    %218 = vector.extract_strided_slice %13 {offsets = [2, 0, 0], sizes = [1, 8, 8], strides = [1, 1, 1]} : vector<8x8x8xf32> to vector<1x8x8xf32>
    %219 = vector.shape_cast %218 : vector<1x8x8xf32> to vector<8x8xf32>
    %c2_81 = arith.constant 2 : index
    %c2_82 = arith.constant 2 : index
    %220 = memref.load %arg8[%c2_81, %c2_82] : memref<8x4xf32, #tpu.memory_space<smem>>
    %221 = vector.broadcast %220 : f32 to vector<8x8xf32>
    %222 = arith.mulf %219, %221 : vector<8x8xf32>
    %223 = arith.addf %217, %222 : vector<8x8xf32>
    %224 = vector.extract_strided_slice %13 {offsets = [3, 0, 0], sizes = [1, 8, 8], strides = [1, 1, 1]} : vector<8x8x8xf32> to vector<1x8x8xf32>
    %225 = vector.shape_cast %224 : vector<1x8x8xf32> to vector<8x8xf32>
    %c3_83 = arith.constant 3 : index
    %c2_84 = arith.constant 2 : index
    %226 = memref.load %arg8[%c3_83, %c2_84] : memref<8x4xf32, #tpu.memory_space<smem>>
    %227 = vector.broadcast %226 : f32 to vector<8x8xf32>
    %228 = arith.mulf %225, %227 : vector<8x8xf32>
    %229 = arith.addf %223, %228 : vector<8x8xf32>
    %230 = vector.extract_strided_slice %13 {offsets = [4, 0, 0], sizes = [1, 8, 8], strides = [1, 1, 1]} : vector<8x8x8xf32> to vector<1x8x8xf32>
    %231 = vector.shape_cast %230 : vector<1x8x8xf32> to vector<8x8xf32>
    %c4_85 = arith.constant 4 : index
    %c2_86 = arith.constant 2 : index
    %232 = memref.load %arg8[%c4_85, %c2_86] : memref<8x4xf32, #tpu.memory_space<smem>>
    %233 = vector.broadcast %232 : f32 to vector<8x8xf32>
    %234 = arith.mulf %231, %233 : vector<8x8xf32>
    %235 = arith.addf %229, %234 : vector<8x8xf32>
    %236 = vector.extract_strided_slice %13 {offsets = [5, 0, 0], sizes = [1, 8, 8], strides = [1, 1, 1]} : vector<8x8x8xf32> to vector<1x8x8xf32>
    %237 = vector.shape_cast %236 : vector<1x8x8xf32> to vector<8x8xf32>
    %c5_87 = arith.constant 5 : index
    %c2_88 = arith.constant 2 : index
    %238 = memref.load %arg8[%c5_87, %c2_88] : memref<8x4xf32, #tpu.memory_space<smem>>
    %239 = vector.broadcast %238 : f32 to vector<8x8xf32>
    %240 = arith.mulf %237, %239 : vector<8x8xf32>
    %241 = arith.addf %235, %240 : vector<8x8xf32>
    %242 = vector.extract_strided_slice %13 {offsets = [6, 0, 0], sizes = [1, 8, 8], strides = [1, 1, 1]} : vector<8x8x8xf32> to vector<1x8x8xf32>
    %243 = vector.shape_cast %242 : vector<1x8x8xf32> to vector<8x8xf32>
    %c6_89 = arith.constant 6 : index
    %c2_90 = arith.constant 2 : index
    %244 = memref.load %arg8[%c6_89, %c2_90] : memref<8x4xf32, #tpu.memory_space<smem>>
    %245 = vector.broadcast %244 : f32 to vector<8x8xf32>
    %246 = arith.mulf %243, %245 : vector<8x8xf32>
    %247 = arith.addf %241, %246 : vector<8x8xf32>
    %248 = vector.extract_strided_slice %13 {offsets = [7, 0, 0], sizes = [1, 8, 8], strides = [1, 1, 1]} : vector<8x8x8xf32> to vector<1x8x8xf32>
    %249 = vector.shape_cast %248 : vector<1x8x8xf32> to vector<8x8xf32>
    %c7_91 = arith.constant 7 : index
    %c2_92 = arith.constant 2 : index
    %250 = memref.load %arg8[%c7_91, %c2_92] : memref<8x4xf32, #tpu.memory_space<smem>>
    %251 = vector.broadcast %250 : f32 to vector<8x8xf32>
    %252 = arith.mulf %249, %251 : vector<8x8xf32>
    %253 = arith.addf %247, %252 : vector<8x8xf32>
    %cst_93 = arith.constant dense<0xFF800000> : vector<8xf32>
    %254 = vector.multi_reduction <maximumf>, %253, %cst_93 [1] : vector<8x8xf32> to vector<8xf32>
    %255 = vector.shape_cast %254 : vector<8xf32> to vector<8x1xf32>
    %256 = vector.broadcast %255 : vector<8x1xf32> to vector<8x8xf32>
    %257 = arith.subf %253, %256 : vector<8x8xf32>
    %258 = math.exp %257 : vector<8x8xf32>
    %cst_94 = arith.constant dense<0.000000e+00> : vector<8xf32>
    %259 = vector.multi_reduction <add>, %258, %cst_94 [1] : vector<8x8xf32> to vector<8xf32>
    %260 = vector.shape_cast %259 : vector<8xf32> to vector<8x1xf32>
    %261 = tpu.reciprocal %260 {approx = true} : vector<8x1xf32> -> vector<8x1xf32>
    %262 = vector.broadcast %261 : vector<8x1xf32> to vector<8x8xf32>
    %263 = arith.mulf %258, %262 : vector<8x8xf32>
    %264 = vector.extract_strided_slice %9 {offsets = [0, 16], sizes = [8, 8], strides = [1, 1]} : vector<8x32xf32> to vector<8x8xf32>
    %cst_95 = arith.constant dense<0.000000e+00> : vector<8x8xf32>
    %265 = tpu.matmul %263, %264, %cst_95 {dimension_numbers = #tpu.dot_dimension_numbers<[1], [0], [0], [1], [0, 0, 1, 1], [], []>} : vector<8x8xf32>, vector<8x8xf32>, vector<8x8xf32> -> vector<8x8xf32>
    %c0_96 = arith.constant 0 : index
    %c0_97 = arith.constant 0 : index
    %c16 = arith.constant 16 : index
    %266 = vector.load %arg10[%c0_96, %c0_97, %c16] : memref<1x8x32xf32, #tpu.memory_space<vmem>>, vector<1x8x8xf32>
    %267 = vector.shape_cast %266 : vector<1x8x8xf32> to vector<8x8xf32>
    %268 = vector.shape_cast %265 : vector<8x8xf32> to vector<1x8x8xf32>
    tpu.vector_store %arg10[%c0_96, %c0_97, %c16], %268 {strides = array<i32>} : memref<1x8x32xf32, #tpu.memory_space<vmem>>, vector<1x8x8xf32>,
    %269 = vector.extract_strided_slice %11 {offsets = [0, 24], sizes = [8, 12], strides = [1, 1]} : vector<8x48xf32> to vector<8x12xf32>
    %cst_98 = arith.constant dense<0.000000e+00> : vector<8x12xf32>
    %270 = tpu.matmul %263, %269, %cst_98 {dimension_numbers = #tpu.dot_dimension_numbers<[1], [0], [0], [1], [0, 0, 1, 1], [], []>} : vector<8x8xf32>, vector<8x12xf32>, vector<8x12xf32> -> vector<8x12xf32>
    %c0_99 = arith.constant 0 : index
    %c0_100 = arith.constant 0 : index
    %c24 = arith.constant 24 : index
    %271 = vector.load %arg11[%c0_99, %c0_100, %c24] : memref<1x8x48xf32, #tpu.memory_space<vmem>>, vector<1x8x12xf32>
    %272 = vector.shape_cast %271 : vector<1x8x12xf32> to vector<8x12xf32>
    %273 = vector.shape_cast %270 : vector<8x12xf32> to vector<1x8x12xf32>
    tpu.vector_store %arg11[%c0_99, %c0_100, %c24], %273 {strides = array<i32>} : memref<1x8x48xf32, #tpu.memory_space<vmem>>, vector<1x8x12xf32>,
    %274 = vector.shape_cast %263 : vector<8x8xf32> to vector<1x8x8xf32>
    %275 = vector.broadcast %274 : vector<1x8x8xf32> to vector<8x8x8xf32>
    %276 = arith.mulf %275, %13 : vector<8x8x8xf32>
    %cst_101 = arith.constant dense<0.000000e+00> : vector<8x8xf32>
    %277 = vector.multi_reduction <add>, %276, %cst_101 [2] : vector<8x8x8xf32> to vector<8x8xf32>
    %c0_102 = arith.constant 0 : index
    %c16_103 = arith.constant 16 : index
    %c0_104 = arith.constant 0 : index
    %278 = vector.load %arg12[%c0_102, %c16_103, %c0_104] : memref<1x32x8xf32, #tpu.memory_space<vmem>>, vector<1x8x8xf32>
    %279 = vector.shape_cast %278 : vector<1x8x8xf32> to vector<8x8xf32>
    %280 = vector.shape_cast %277 : vector<8x8xf32> to vector<1x8x8xf32>
    tpu.vector_store %arg12[%c0_102, %c16_103, %c0_104], %280 {strides = array<i32>} : memref<1x32x8xf32, #tpu.memory_space<vmem>>, vector<1x8x8xf32>,
    %281 = vector.extract_strided_slice %1 {offsets = [0, 60], sizes = [8, 20], strides = [1, 1]} : vector<8x80xf32> to vector<8x20xf32>
    %282 = arith.truncf %281 : vector<8x20xf32> to vector<8x20xbf16>
    %283 = vector.extract_strided_slice %3 {offsets = [0, 60], sizes = [8, 20], strides = [1, 1]} : vector<8x80xf32> to vector<8x20xf32>
    %284 = arith.truncf %283 : vector<8x20xf32> to vector<8x20xbf16>
    %cst_105 = arith.constant dense<0.000000e+00> : vector<8x8xf32>
    %285 = tpu.matmul %282, %284, %cst_105 {dimension_numbers = #tpu.dot_dimension_numbers<[1], [1], [0], [0], [0, 0, 1, 0], [], []>} : vector<8x20xbf16>, vector<8x20xbf16>, vector<8x8xf32> -> vector<8x8xf32>
    %286 = vector.extract_strided_slice %5 {offsets = [0, 3], sizes = [8, 1], strides = [1, 1]} : vector<8x4xf32> to vector<8x1xf32>
    %287 = vector.broadcast %286 : vector<8x1xf32> to vector<8x8xf32>
    %288 = arith.subf %285, %287 : vector<8x8xf32>
    %289 = vector.extract_strided_slice %7 {offsets = [3, 0], sizes = [1, 8], strides = [1, 1]} : vector<4x8xf32> to vector<1x8xf32>
    %290 = vector.broadcast %289 : vector<1x8xf32> to vector<8x8xf32>
    %291 = arith.subf %288, %290 : vector<8x8xf32>
    %c3_106 = arith.constant 3 : index
    %292 = memref.load %arg9[%c3_106] : memref<4xf32, #tpu.memory_space<smem>>
    %293 = vector.broadcast %292 : f32 to vector<8x8xf32>
    %294 = arith.addf %291, %293 : vector<8x8xf32>
    %295 = vector.extract_strided_slice %13 {offsets = [0, 0, 0], sizes = [1, 8, 8], strides = [1, 1, 1]} : vector<8x8x8xf32> to vector<1x8x8xf32>
    %296 = vector.shape_cast %295 : vector<1x8x8xf32> to vector<8x8xf32>
    %c0_107 = arith.constant 0 : index
    %c3_108 = arith.constant 3 : index
    %297 = memref.load %arg8[%c0_107, %c3_108] : memref<8x4xf32, #tpu.memory_space<smem>>
    %298 = vector.broadcast %297 : f32 to vector<8x8xf32>
    %299 = arith.mulf %296, %298 : vector<8x8xf32>
    %300 = arith.addf %294, %299 : vector<8x8xf32>
    %301 = vector.extract_strided_slice %13 {offsets = [1, 0, 0], sizes = [1, 8, 8], strides = [1, 1, 1]} : vector<8x8x8xf32> to vector<1x8x8xf32>
    %302 = vector.shape_cast %301 : vector<1x8x8xf32> to vector<8x8xf32>
    %c1_109 = arith.constant 1 : index
    %c3_110 = arith.constant 3 : index
    %303 = memref.load %arg8[%c1_109, %c3_110] : memref<8x4xf32, #tpu.memory_space<smem>>
    %304 = vector.broadcast %303 : f32 to vector<8x8xf32>
    %305 = arith.mulf %302, %304 : vector<8x8xf32>
    %306 = arith.addf %300, %305 : vector<8x8xf32>
    %307 = vector.extract_strided_slice %13 {offsets = [2, 0, 0], sizes = [1, 8, 8], strides = [1, 1, 1]} : vector<8x8x8xf32> to vector<1x8x8xf32>
    %308 = vector.shape_cast %307 : vector<1x8x8xf32> to vector<8x8xf32>
    %c2_111 = arith.constant 2 : index
    %c3_112 = arith.constant 3 : index
    %309 = memref.load %arg8[%c2_111, %c3_112] : memref<8x4xf32, #tpu.memory_space<smem>>
    %310 = vector.broadcast %309 : f32 to vector<8x8xf32>
    %311 = arith.mulf %308, %310 : vector<8x8xf32>
    %312 = arith.addf %306, %311 : vector<8x8xf32>
    %313 = vector.extract_strided_slice %13 {offsets = [3, 0, 0], sizes = [1, 8, 8], strides = [1, 1, 1]} : vector<8x8x8xf32> to vector<1x8x8xf32>
    %314 = vector.shape_cast %313 : vector<1x8x8xf32> to vector<8x8xf32>
    %c3_113 = arith.constant 3 : index
    %c3_114 = arith.constant 3 : index
    %315 = memref.load %arg8[%c3_113, %c3_114] : memref<8x4xf32, #tpu.memory_space<smem>>
    %316 = vector.broadcast %315 : f32 to vector<8x8xf32>
    %317 = arith.mulf %314, %316 : vector<8x8xf32>
    %318 = arith.addf %312, %317 : vector<8x8xf32>
    %319 = vector.extract_strided_slice %13 {offsets = [4, 0, 0], sizes = [1, 8, 8], strides = [1, 1, 1]} : vector<8x8x8xf32> to vector<1x8x8xf32>
    %320 = vector.shape_cast %319 : vector<1x8x8xf32> to vector<8x8xf32>
    %c4_115 = arith.constant 4 : index
    %c3_116 = arith.constant 3 : index
    %321 = memref.load %arg8[%c4_115, %c3_116] : memref<8x4xf32, #tpu.memory_space<smem>>
    %322 = vector.broadcast %321 : f32 to vector<8x8xf32>
    %323 = arith.mulf %320, %322 : vector<8x8xf32>
    %324 = arith.addf %318, %323 : vector<8x8xf32>
    %325 = vector.extract_strided_slice %13 {offsets = [5, 0, 0], sizes = [1, 8, 8], strides = [1, 1, 1]} : vector<8x8x8xf32> to vector<1x8x8xf32>
    %326 = vector.shape_cast %325 : vector<1x8x8xf32> to vector<8x8xf32>
    %c5_117 = arith.constant 5 : index
    %c3_118 = arith.constant 3 : index
    %327 = memref.load %arg8[%c5_117, %c3_118] : memref<8x4xf32, #tpu.memory_space<smem>>
    %328 = vector.broadcast %327 : f32 to vector<8x8xf32>
    %329 = arith.mulf %326, %328 : vector<8x8xf32>
    %330 = arith.addf %324, %329 : vector<8x8xf32>
    %331 = vector.extract_strided_slice %13 {offsets = [6, 0, 0], sizes = [1, 8, 8], strides = [1, 1, 1]} : vector<8x8x8xf32> to vector<1x8x8xf32>
    %332 = vector.shape_cast %331 : vector<1x8x8xf32> to vector<8x8xf32>
    %c6_119 = arith.constant 6 : index
    %c3_120 = arith.constant 3 : index
    %333 = memref.load %arg8[%c6_119, %c3_120] : memref<8x4xf32, #tpu.memory_space<smem>>
    %334 = vector.broadcast %333 : f32 to vector<8x8xf32>
    %335 = arith.mulf %332, %334 : vector<8x8xf32>
    %336 = arith.addf %330, %335 : vector<8x8xf32>
    %337 = vector.extract_strided_slice %13 {offsets = [7, 0, 0], sizes = [1, 8, 8], strides = [1, 1, 1]} : vector<8x8x8xf32> to vector<1x8x8xf32>
    %338 = vector.shape_cast %337 : vector<1x8x8xf32> to vector<8x8xf32>
    %c7_121 = arith.constant 7 : index
    %c3_122 = arith.constant 3 : index
    %339 = memref.load %arg8[%c7_121, %c3_122] : memref<8x4xf32, #tpu.memory_space<smem>>
    %340 = vector.broadcast %339 : f32 to vector<8x8xf32>
    %341 = arith.mulf %338, %340 : vector<8x8xf32>
    %342 = arith.addf %336, %341 : vector<8x8xf32>
    %cst_123 = arith.constant dense<0xFF800000> : vector<8xf32>
    %343 = vector.multi_reduction <maximumf>, %342, %cst_123 [1] : vector<8x8xf32> to vector<8xf32>
    %344 = vector.shape_cast %343 : vector<8xf32> to vector<8x1xf32>
    %345 = vector.broadcast %344 : vector<8x1xf32> to vector<8x8xf32>
    %346 = arith.subf %342, %345 : vector<8x8xf32>
    %347 = math.exp %346 : vector<8x8xf32>
    %cst_124 = arith.constant dense<0.000000e+00> : vector<8xf32>
    %348 = vector.multi_reduction <add>, %347, %cst_124 [1] : vector<8x8xf32> to vector<8xf32>
    %349 = vector.shape_cast %348 : vector<8xf32> to vector<8x1xf32>
    %350 = tpu.reciprocal %349 {approx = true} : vector<8x1xf32> -> vector<8x1xf32>
    %351 = vector.broadcast %350 : vector<8x1xf32> to vector<8x8xf32>
    %352 = arith.mulf %347, %351 : vector<8x8xf32>
    %353 = vector.extract_strided_slice %9 {offsets = [0, 24], sizes = [8, 8], strides = [1, 1]} : vector<8x32xf32> to vector<8x8xf32>
    %cst_125 = arith.constant dense<0.000000e+00> : vector<8x8xf32>
    %354 = tpu.matmul %352, %353, %cst_125 {dimension_numbers = #tpu.dot_dimension_numbers<[1], [0], [0], [1], [0, 0, 1, 1], [], []>} : vector<8x8xf32>, vector<8x8xf32>, vector<8x8xf32> -> vector<8x8xf32>
    %c0_126 = arith.constant 0 : index
    %c0_127 = arith.constant 0 : index
    %c24_128 = arith.constant 24 : index
    %355 = vector.load %arg10[%c0_126, %c0_127, %c24_128] : memref<1x8x32xf32, #tpu.memory_space<vmem>>, vector<1x8x8xf32>
    %356 = vector.shape_cast %355 : vector<1x8x8xf32> to vector<8x8xf32>
    %357 = vector.shape_cast %354 : vector<8x8xf32> to vector<1x8x8xf32>
    tpu.vector_store %arg10[%c0_126, %c0_127, %c24_128], %357 {strides = array<i32>} : memref<1x8x32xf32, #tpu.memory_space<vmem>>, vector<1x8x8xf32>,
    %358 = vector.extract_strided_slice %11 {offsets = [0, 36], sizes = [8, 12], strides = [1, 1]} : vector<8x48xf32> to vector<8x12xf32>
    %cst_129 = arith.constant dense<0.000000e+00> : vector<8x12xf32>
    %359 = tpu.matmul %352, %358, %cst_129 {dimension_numbers = #tpu.dot_dimension_numbers<[1], [0], [0], [1], [0, 0, 1, 1], [], []>} : vector<8x8xf32>, vector<8x12xf32>, vector<8x12xf32> -> vector<8x12xf32>
    %c0_130 = arith.constant 0 : index
    %c0_131 = arith.constant 0 : index
    %c36 = arith.constant 36 : index
    %360 = vector.load %arg11[%c0_130, %c0_131, %c36] : memref<1x8x48xf32, #tpu.memory_space<vmem>>, vector<1x8x12xf32>
    %361 = vector.shape_cast %360 : vector<1x8x12xf32> to vector<8x12xf32>
    %362 = vector.shape_cast %359 : vector<8x12xf32> to vector<1x8x12xf32>
    tpu.vector_store %arg11[%c0_130, %c0_131, %c36], %362 {strides = array<i32>} : memref<1x8x48xf32, #tpu.memory_space<vmem>>, vector<1x8x12xf32>,
    %363 = vector.shape_cast %352 : vector<8x8xf32> to vector<1x8x8xf32>
    %364 = vector.broadcast %363 : vector<1x8x8xf32> to vector<8x8x8xf32>
    %365 = arith.mulf %364, %13 : vector<8x8x8xf32>
    %cst_132 = arith.constant dense<0.000000e+00> : vector<8x8xf32>
    %366 = vector.multi_reduction <add>, %365, %cst_132 [2] : vector<8x8x8xf32> to vector<8x8xf32>
    %c0_133 = arith.constant 0 : index
    %c24_134 = arith.constant 24 : index
    %c0_135 = arith.constant 0 : index
    %367 = vector.load %arg12[%c0_133, %c24_134, %c0_135] : memref<1x32x8xf32, #tpu.memory_space<vmem>>, vector<1x8x8xf32>
    %368 = vector.shape_cast %367 : vector<1x8x8xf32> to vector<8x8xf32>
    %369 = vector.shape_cast %366 : vector<8x8xf32> to vector<1x8x8xf32>
    tpu.vector_store %arg12[%c0_133, %c24_134, %c0_135], %369 {strides = array<i32>} : memref<1x32x8xf32, #tpu.memory_space<vmem>>, vector<1x8x8xf32>,
    return
  }
  func.func @transform_0(%arg0: i32) -> (i32, i32, i32) {
    %c0_i32 = arith.constant 0 : i32
    %c0_i32_0 = arith.constant 0 : i32
    %c0_i32_1 = arith.constant 0 : i32
    return %arg0, %c0_i32, %c0_i32_0 : i32, i32, i32
  }
  func.func @transform_1(%arg0: i32) -> (i32, i32, i32) {
    %c0_i32 = arith.constant 0 : i32
    %c0_i32_0 = arith.constant 0 : i32
    %c0_i32_1 = arith.constant 0 : i32
    return %arg0, %c0_i32, %c0_i32_0 : i32, i32, i32
  }
  func.func @transform_2(%arg0: i32) -> (i32, i32, i32) {
    %c0_i32 = arith.constant 0 : i32
    %c0_i32_0 = arith.constant 0 : i32
    %c0_i32_1 = arith.constant 0 : i32
    return %arg0, %c0_i32, %c0_i32_0 : i32, i32, i32
  }
  func.func @transform_3(%arg0: i32) -> (i32, i32, i32) {
    %c0_i32 = arith.constant 0 : i32
    %c0_i32_0 = arith.constant 0 : i32
    %c0_i32_1 = arith.constant 0 : i32
    return %arg0, %c0_i32, %c0_i32_0 : i32, i32, i32
  }
  func.func @transform_4(%arg0: i32) -> (i32, i32, i32) {
    %c0_i32 = arith.constant 0 : i32
    %c0_i32_0 = arith.constant 0 : i32
    %c0_i32_1 = arith.constant 0 : i32
    return %arg0, %c0_i32, %c0_i32_0 : i32, i32, i32
  }
  func.func @transform_5(%arg0: i32) -> (i32, i32, i32) {
    %c0_i32 = arith.constant 0 : i32
    %c0_i32_0 = arith.constant 0 : i32
    %c0_i32_1 = arith.constant 0 : i32
    return %arg0, %c0_i32, %c0_i32_0 : i32, i32, i32
  }
  func.func @transform_6(%arg0: i32) -> (i32, i32, i32, i32) {
    %c0_i32 = arith.constant 0 : i32
    %c0_i32_0 = arith.constant 0 : i32
    %c0_i32_1 = arith.constant 0 : i32
    %c0_i32_2 = arith.constant 0 : i32
    return %arg0, %c0_i32, %c0_i32_0, %c0_i32_1 : i32, i32, i32, i32
  }
  func.func @transform_7(%arg0: i32) -> (i32, i32) {
    %c0_i32 = arith.constant 0 : i32
    %c0_i32_0 = arith.constant 0 : i32
    %c0_i32_1 = arith.constant 0 : i32
    return %c0_i32, %c0_i32_0 : i32, i32
  }
  func.func @transform_8(%arg0: i32) -> i32 {
    %c0_i32 = arith.constant 0 : i32
    %c0_i32_0 = arith.constant 0 : i32
    return %c0_i32 : i32
  }
  func.func @transform_9(%arg0: i32) -> (i32, i32, i32) {
    %c0_i32 = arith.constant 0 : i32
    %c0_i32_0 = arith.constant 0 : i32
    %c0_i32_1 = arith.constant 0 : i32
    return %arg0, %c0_i32, %c0_i32_0 : i32, i32, i32
  }
  func.func @transform_10(%arg0: i32) -> (i32, i32, i32) {
    %c0_i32 = arith.constant 0 : i32
    %c0_i32_0 = arith.constant 0 : i32
    %c0_i32_1 = arith.constant 0 : i32
    return %arg0, %c0_i32, %c0_i32_0 : i32, i32, i32
  }
  func.func @transform_11(%arg0: i32) -> (i32, i32, i32) {
    %c0_i32 = arith.constant 0 : i32
    %c0_i32_0 = arith.constant 0 : i32
    %c0_i32_1 = arith.constant 0 : i32
    return %arg0, %c0_i32, %c0_i32_0 : i32, i32, i32
  }
}

module attributes {stable_mosaic.version = 11 : i64} {
  func.func @kernel(%arg0: i32, %arg1: memref<16x32xf32, #tpu.memory_space<vmem>>, %arg2: memref<32x32xf32, #tpu.memory_space<vmem>>, %arg3: memref<1x32xf32, #tpu.memory_space<vmem>>, %arg4: memref<32x32xf32, #tpu.memory_space<vmem>>, %arg5: memref<1x32xf32, #tpu.memory_space<vmem>>, %arg6: memref<32x32xf32, #tpu.memory_space<vmem>>, %arg7: memref<1x32xf32, #tpu.memory_space<vmem>>, %arg8: memref<1x32xf32, #tpu.memory_space<vmem>>, %arg9: memref<1x32xf32, #tpu.memory_space<vmem>>, %arg10: memref<16x32xf32, #tpu.memory_space<vmem>>) attributes {dimension_semantics = [#tpu.dimension_semantics<parallel>], iteration_bounds = array<i64: 1>, scalar_prefetch = 0 : i64, scratch_operands = 0 : i64, tpu.core_type = #tpu.core_type<tc>, window_params = [{transform_indices = @transform_0, window_bounds = array<i64: 16, 32>}, {pipeline_mode = #tpu.pipeline_mode<synchronous>, transform_indices = @transform_1, window_bounds = array<i64: 32, 32>}, {pipeline_mode = #tpu.pipeline_mode<synchronous>, transform_indices = @transform_2, window_bounds = array<i64: 1, 32>}, {pipeline_mode = #tpu.pipeline_mode<synchronous>, transform_indices = @transform_3, window_bounds = array<i64: 32, 32>}, {pipeline_mode = #tpu.pipeline_mode<synchronous>, transform_indices = @transform_4, window_bounds = array<i64: 1, 32>}, {pipeline_mode = #tpu.pipeline_mode<synchronous>, transform_indices = @transform_5, window_bounds = array<i64: 32, 32>}, {pipeline_mode = #tpu.pipeline_mode<synchronous>, transform_indices = @transform_6, window_bounds = array<i64: 1, 32>}, {pipeline_mode = #tpu.pipeline_mode<synchronous>, transform_indices = @transform_7, window_bounds = array<i64: 1, 32>}, {pipeline_mode = #tpu.pipeline_mode<synchronous>, transform_indices = @transform_8, window_bounds = array<i64: 1, 32>}, {transform_indices = @transform_9, window_bounds = array<i64: 16, 32>}]} {
    %c0 = arith.constant 0 : index
    %c0_0 = arith.constant 0 : index
    %0 = vector.load %arg1[%c0, %c0_0] : memref<16x32xf32, #tpu.memory_space<vmem>>, vector<16x32xf32>
    %c0_1 = arith.constant 0 : index
    %c0_2 = arith.constant 0 : index
    %1 = vector.load %arg2[%c0_1, %c0_2] : memref<32x32xf32, #tpu.memory_space<vmem>>, vector<32x32xf32>
    %2 = arith.truncf %0 : vector<16x32xf32> to vector<16x32xbf16>
    %3 = arith.truncf %1 : vector<32x32xf32> to vector<32x32xbf16>
    %cst = arith.constant dense<0.000000e+00> : vector<16x32xf32>
    %4 = tpu.matmul %2, %3, %cst {dimension_numbers = #tpu.dot_dimension_numbers<[1], [0], [0], [1], [0, 0, 1, 1], [], []>} : vector<16x32xbf16>, vector<32x32xbf16>, vector<16x32xf32> -> vector<16x32xf32>
    %c0_3 = arith.constant 0 : index
    %c0_4 = arith.constant 0 : index
    %5 = vector.load %arg3[%c0_3, %c0_4] : memref<1x32xf32, #tpu.memory_space<vmem>>, vector<1x32xf32>
    %6 = vector.broadcast %5 : vector<1x32xf32> to vector<16x32xf32>
    %7 = arith.addf %4, %6 : vector<16x32xf32>
    %cst_5 = arith.constant 0.000000e+00 : f32
    %8 = vector.broadcast %cst_5 : f32 to vector<16x32xf32>
    %9 = arith.maximumf %7, %8 : vector<16x32xf32>
    %c0_6 = arith.constant 0 : index
    %c0_7 = arith.constant 0 : index
    %10 = vector.load %arg4[%c0_6, %c0_7] : memref<32x32xf32, #tpu.memory_space<vmem>>, vector<32x32xf32>
    %11 = arith.truncf %9 : vector<16x32xf32> to vector<16x32xbf16>
    %12 = arith.truncf %10 : vector<32x32xf32> to vector<32x32xbf16>
    %cst_8 = arith.constant dense<0.000000e+00> : vector<16x32xf32>
    %13 = tpu.matmul %11, %12, %cst_8 {dimension_numbers = #tpu.dot_dimension_numbers<[1], [0], [0], [1], [0, 0, 1, 1], [], []>} : vector<16x32xbf16>, vector<32x32xbf16>, vector<16x32xf32> -> vector<16x32xf32>
    %c0_9 = arith.constant 0 : index
    %c0_10 = arith.constant 0 : index
    %14 = vector.load %arg5[%c0_9, %c0_10] : memref<1x32xf32, #tpu.memory_space<vmem>>, vector<1x32xf32>
    %15 = vector.broadcast %14 : vector<1x32xf32> to vector<16x32xf32>
    %16 = arith.addf %13, %15 : vector<16x32xf32>
    %cst_11 = arith.constant 0.000000e+00 : f32
    %17 = vector.broadcast %cst_11 : f32 to vector<16x32xf32>
    %18 = arith.maximumf %16, %17 : vector<16x32xf32>
    %c0_12 = arith.constant 0 : index
    %c0_13 = arith.constant 0 : index
    %19 = vector.load %arg6[%c0_12, %c0_13] : memref<32x32xf32, #tpu.memory_space<vmem>>, vector<32x32xf32>
    %20 = arith.truncf %18 : vector<16x32xf32> to vector<16x32xbf16>
    %21 = arith.truncf %19 : vector<32x32xf32> to vector<32x32xbf16>
    %cst_14 = arith.constant dense<0.000000e+00> : vector<16x32xf32>
    %22 = tpu.matmul %20, %21, %cst_14 {dimension_numbers = #tpu.dot_dimension_numbers<[1], [0], [0], [1], [0, 0, 1, 1], [], []>} : vector<16x32xbf16>, vector<32x32xbf16>, vector<16x32xf32> -> vector<16x32xf32>
    %c0_15 = arith.constant 0 : index
    %c0_16 = arith.constant 0 : index
    %23 = vector.load %arg7[%c0_15, %c0_16] : memref<1x32xf32, #tpu.memory_space<vmem>>, vector<1x32xf32>
    %24 = vector.broadcast %23 : vector<1x32xf32> to vector<16x32xf32>
    %25 = arith.addf %22, %24 : vector<16x32xf32>
    %26 = arith.addf %25, %0 : vector<16x32xf32>
    %cst_17 = arith.constant dense<0.000000e+00> : vector<16xf32>
    %27 = vector.multi_reduction <add>, %26, %cst_17 [1] : vector<16x32xf32> to vector<16xf32>
    %28 = vector.shape_cast %27 : vector<16xf32> to vector<16x1xf32>
    %cst_18 = arith.constant 3.200000e+01 : f32
    %29 = vector.broadcast %cst_18 : f32 to vector<16x1xf32>
    %30 = arith.divf %28, %29 : vector<16x1xf32>
    %31 = vector.broadcast %30 : vector<16x1xf32> to vector<16x32xf32>
    %32 = arith.subf %26, %31 : vector<16x32xf32>
    %33 = arith.mulf %32, %32 : vector<16x32xf32>
    %cst_19 = arith.constant dense<0.000000e+00> : vector<16xf32>
    %34 = vector.multi_reduction <add>, %33, %cst_19 [1] : vector<16x32xf32> to vector<16xf32>
    %35 = vector.shape_cast %34 : vector<16xf32> to vector<16x1xf32>
    %cst_20 = arith.constant 3.200000e+01 : f32
    %36 = vector.broadcast %cst_20 : f32 to vector<16x1xf32>
    %37 = arith.divf %35, %36 : vector<16x1xf32>
    %cst_21 = arith.constant 9.99999974E-6 : f32
    %38 = vector.broadcast %cst_21 : f32 to vector<16x1xf32>
    %39 = arith.addf %37, %38 : vector<16x1xf32>
    %40 = math.rsqrt %39 : vector<16x1xf32>
    %41 = vector.broadcast %40 : vector<16x1xf32> to vector<16x32xf32>
    %42 = arith.mulf %32, %41 : vector<16x32xf32>
    %c0_22 = arith.constant 0 : index
    %c0_23 = arith.constant 0 : index
    %43 = vector.load %arg8[%c0_22, %c0_23] : memref<1x32xf32, #tpu.memory_space<vmem>>, vector<1x32xf32>
    %44 = vector.broadcast %43 : vector<1x32xf32> to vector<16x32xf32>
    %45 = arith.mulf %42, %44 : vector<16x32xf32>
    %c0_24 = arith.constant 0 : index
    %c0_25 = arith.constant 0 : index
    %46 = vector.load %arg9[%c0_24, %c0_25] : memref<1x32xf32, #tpu.memory_space<vmem>>, vector<1x32xf32>
    %47 = vector.broadcast %46 : vector<1x32xf32> to vector<16x32xf32>
    %48 = arith.addf %45, %47 : vector<16x32xf32>
    %c0_26 = arith.constant 0 : index
    %c0_27 = arith.constant 0 : index
    %49 = vector.load %arg10[%c0_26, %c0_27] : memref<16x32xf32, #tpu.memory_space<vmem>>, vector<16x32xf32>
    tpu.vector_store %arg10[%c0_26, %c0_27], %48 {strides = array<i32>} : memref<16x32xf32, #tpu.memory_space<vmem>>, vector<16x32xf32>,
    return
  }
  func.func @transform_0(%arg0: i32) -> (i32, i32) {
    %c0_i32 = arith.constant 0 : i32
    %c0_i32_0 = arith.constant 0 : i32
    return %arg0, %c0_i32 : i32, i32
  }
  func.func @transform_1(%arg0: i32) -> (i32, i32) {
    %c0_i32 = arith.constant 0 : i32
    %c0_i32_0 = arith.constant 0 : i32
    %c0_i32_1 = arith.constant 0 : i32
    return %c0_i32, %c0_i32_0 : i32, i32
  }
  func.func @transform_2(%arg0: i32) -> (i32, i32) {
    %c0_i32 = arith.constant 0 : i32
    %c0_i32_0 = arith.constant 0 : i32
    %c0_i32_1 = arith.constant 0 : i32
    return %c0_i32, %c0_i32_0 : i32, i32
  }
  func.func @transform_3(%arg0: i32) -> (i32, i32) {
    %c0_i32 = arith.constant 0 : i32
    %c0_i32_0 = arith.constant 0 : i32
    %c0_i32_1 = arith.constant 0 : i32
    return %c0_i32, %c0_i32_0 : i32, i32
  }
  func.func @transform_4(%arg0: i32) -> (i32, i32) {
    %c0_i32 = arith.constant 0 : i32
    %c0_i32_0 = arith.constant 0 : i32
    %c0_i32_1 = arith.constant 0 : i32
    return %c0_i32, %c0_i32_0 : i32, i32
  }
  func.func @transform_5(%arg0: i32) -> (i32, i32) {
    %c0_i32 = arith.constant 0 : i32
    %c0_i32_0 = arith.constant 0 : i32
    %c0_i32_1 = arith.constant 0 : i32
    return %c0_i32, %c0_i32_0 : i32, i32
  }
  func.func @transform_6(%arg0: i32) -> (i32, i32) {
    %c0_i32 = arith.constant 0 : i32
    %c0_i32_0 = arith.constant 0 : i32
    %c0_i32_1 = arith.constant 0 : i32
    return %c0_i32, %c0_i32_0 : i32, i32
  }
  func.func @transform_7(%arg0: i32) -> (i32, i32) {
    %c0_i32 = arith.constant 0 : i32
    %c0_i32_0 = arith.constant 0 : i32
    %c0_i32_1 = arith.constant 0 : i32
    return %c0_i32, %c0_i32_0 : i32, i32
  }
  func.func @transform_8(%arg0: i32) -> (i32, i32) {
    %c0_i32 = arith.constant 0 : i32
    %c0_i32_0 = arith.constant 0 : i32
    %c0_i32_1 = arith.constant 0 : i32
    return %c0_i32, %c0_i32_0 : i32, i32
  }
  func.func @transform_9(%arg0: i32) -> (i32, i32) {
    %c0_i32 = arith.constant 0 : i32
    %c0_i32_0 = arith.constant 0 : i32
    return %arg0, %c0_i32 : i32, i32
  }
}

module attributes {stable_mosaic.version = 11 : i64} {
  func.func @kernel(%arg0: i32, %arg1: memref<16x128xf32, #tpu.memory_space<vmem>>, %arg2: memref<16x32xf32, #tpu.memory_space<vmem>>, %arg3: memref<128x32xf32, #tpu.memory_space<vmem>>, %arg4: memref<1x32xf32, #tpu.memory_space<vmem>>, %arg5: memref<1x32xf32, #tpu.memory_space<vmem>>, %arg6: memref<1x32xf32, #tpu.memory_space<vmem>>, %arg7: memref<16x32xf32, #tpu.memory_space<vmem>>) attributes {dimension_semantics = [#tpu.dimension_semantics<parallel>], iteration_bounds = array<i64: 1>, scalar_prefetch = 0 : i64, scratch_operands = 0 : i64, tpu.core_type = #tpu.core_type<tc>, window_params = [{transform_indices = @transform_0, window_bounds = array<i64: 16, 128>}, {transform_indices = @transform_1, window_bounds = array<i64: 16, 32>}, {pipeline_mode = #tpu.pipeline_mode<synchronous>, transform_indices = @transform_2, window_bounds = array<i64: 128, 32>}, {pipeline_mode = #tpu.pipeline_mode<synchronous>, transform_indices = @transform_3, window_bounds = array<i64: 1, 32>}, {pipeline_mode = #tpu.pipeline_mode<synchronous>, transform_indices = @transform_4, window_bounds = array<i64: 1, 32>}, {pipeline_mode = #tpu.pipeline_mode<synchronous>, transform_indices = @transform_5, window_bounds = array<i64: 1, 32>}, {transform_indices = @transform_6, window_bounds = array<i64: 16, 32>}]} {
    %c0 = arith.constant 0 : index
    %c0_0 = arith.constant 0 : index
    %0 = vector.load %arg1[%c0, %c0_0] : memref<16x128xf32, #tpu.memory_space<vmem>>, vector<16x128xf32>
    %c0_1 = arith.constant 0 : index
    %c0_2 = arith.constant 0 : index
    %1 = vector.load %arg3[%c0_1, %c0_2] : memref<128x32xf32, #tpu.memory_space<vmem>>, vector<128x32xf32>
    %2 = arith.truncf %0 : vector<16x128xf32> to vector<16x128xbf16>
    %3 = arith.truncf %1 : vector<128x32xf32> to vector<128x32xbf16>
    %cst = arith.constant dense<0.000000e+00> : vector<16x32xf32>
    %4 = tpu.matmul %2, %3, %cst {dimension_numbers = #tpu.dot_dimension_numbers<[1], [0], [0], [1], [0, 0, 1, 1], [], []>} : vector<16x128xbf16>, vector<128x32xbf16>, vector<16x32xf32> -> vector<16x32xf32>
    %c0_3 = arith.constant 0 : index
    %c0_4 = arith.constant 0 : index
    %5 = vector.load %arg4[%c0_3, %c0_4] : memref<1x32xf32, #tpu.memory_space<vmem>>, vector<1x32xf32>
    %6 = vector.broadcast %5 : vector<1x32xf32> to vector<16x32xf32>
    %7 = arith.addf %4, %6 : vector<16x32xf32>
    %c0_5 = arith.constant 0 : index
    %c0_6 = arith.constant 0 : index
    %8 = vector.load %arg2[%c0_5, %c0_6] : memref<16x32xf32, #tpu.memory_space<vmem>>, vector<16x32xf32>
    %9 = arith.addf %7, %8 : vector<16x32xf32>
    %cst_7 = arith.constant dense<0.000000e+00> : vector<16xf32>
    %10 = vector.multi_reduction <add>, %9, %cst_7 [1] : vector<16x32xf32> to vector<16xf32>
    %11 = vector.shape_cast %10 : vector<16xf32> to vector<16x1xf32>
    %cst_8 = arith.constant 3.200000e+01 : f32
    %12 = vector.broadcast %cst_8 : f32 to vector<16x1xf32>
    %13 = arith.divf %11, %12 : vector<16x1xf32>
    %14 = vector.broadcast %13 : vector<16x1xf32> to vector<16x32xf32>
    %15 = arith.subf %9, %14 : vector<16x32xf32>
    %16 = arith.mulf %15, %15 : vector<16x32xf32>
    %cst_9 = arith.constant dense<0.000000e+00> : vector<16xf32>
    %17 = vector.multi_reduction <add>, %16, %cst_9 [1] : vector<16x32xf32> to vector<16xf32>
    %18 = vector.shape_cast %17 : vector<16xf32> to vector<16x1xf32>
    %cst_10 = arith.constant 3.200000e+01 : f32
    %19 = vector.broadcast %cst_10 : f32 to vector<16x1xf32>
    %20 = arith.divf %18, %19 : vector<16x1xf32>
    %cst_11 = arith.constant 9.99999974E-6 : f32
    %21 = vector.broadcast %cst_11 : f32 to vector<16x1xf32>
    %22 = arith.addf %20, %21 : vector<16x1xf32>
    %23 = math.rsqrt %22 : vector<16x1xf32>
    %24 = vector.broadcast %23 : vector<16x1xf32> to vector<16x32xf32>
    %25 = arith.mulf %15, %24 : vector<16x32xf32>
    %c0_12 = arith.constant 0 : index
    %c0_13 = arith.constant 0 : index
    %26 = vector.load %arg5[%c0_12, %c0_13] : memref<1x32xf32, #tpu.memory_space<vmem>>, vector<1x32xf32>
    %27 = vector.broadcast %26 : vector<1x32xf32> to vector<16x32xf32>
    %28 = arith.mulf %25, %27 : vector<16x32xf32>
    %c0_14 = arith.constant 0 : index
    %c0_15 = arith.constant 0 : index
    %29 = vector.load %arg6[%c0_14, %c0_15] : memref<1x32xf32, #tpu.memory_space<vmem>>, vector<1x32xf32>
    %30 = vector.broadcast %29 : vector<1x32xf32> to vector<16x32xf32>
    %31 = arith.addf %28, %30 : vector<16x32xf32>
    %c0_16 = arith.constant 0 : index
    %c0_17 = arith.constant 0 : index
    %32 = vector.load %arg7[%c0_16, %c0_17] : memref<16x32xf32, #tpu.memory_space<vmem>>, vector<16x32xf32>
    tpu.vector_store %arg7[%c0_16, %c0_17], %31 {strides = array<i32>} : memref<16x32xf32, #tpu.memory_space<vmem>>, vector<16x32xf32>,
    return
  }
  func.func @transform_0(%arg0: i32) -> (i32, i32) {
    %c0_i32 = arith.constant 0 : i32
    %c0_i32_0 = arith.constant 0 : i32
    return %arg0, %c0_i32 : i32, i32
  }
  func.func @transform_1(%arg0: i32) -> (i32, i32) {
    %c0_i32 = arith.constant 0 : i32
    %c0_i32_0 = arith.constant 0 : i32
    return %arg0, %c0_i32 : i32, i32
  }
  func.func @transform_2(%arg0: i32) -> (i32, i32) {
    %c0_i32 = arith.constant 0 : i32
    %c0_i32_0 = arith.constant 0 : i32
    %c0_i32_1 = arith.constant 0 : i32
    return %c0_i32, %c0_i32_0 : i32, i32
  }
  func.func @transform_3(%arg0: i32) -> (i32, i32) {
    %c0_i32 = arith.constant 0 : i32
    %c0_i32_0 = arith.constant 0 : i32
    %c0_i32_1 = arith.constant 0 : i32
    return %c0_i32, %c0_i32_0 : i32, i32
  }
  func.func @transform_4(%arg0: i32) -> (i32, i32) {
    %c0_i32 = arith.constant 0 : i32
    %c0_i32_0 = arith.constant 0 : i32
    %c0_i32_1 = arith.constant 0 : i32
    return %c0_i32, %c0_i32_0 : i32, i32
  }
  func.func @transform_5(%arg0: i32) -> (i32, i32) {
    %c0_i32 = arith.constant 0 : i32
    %c0_i32_0 = arith.constant 0 : i32
    %c0_i32_1 = arith.constant 0 : i32
    return %c0_i32, %c0_i32_0 : i32, i32
  }
  func.func @transform_6(%arg0: i32) -> (i32, i32) {
    %c0_i32 = arith.constant 0 : i32
    %c0_i32_0 = arith.constant 0 : i32
    return %arg0, %c0_i32 : i32, i32
  }
}

module attributes {stable_mosaic.version = 11 : i64} {
  func.func @kernel(%arg0: i32, %arg1: memref<16x32xf32, #tpu.memory_space<vmem>>, %arg2: memref<32x9xf32, #tpu.memory_space<vmem>>, %arg3: memref<1x9xf32, #tpu.memory_space<vmem>>, %arg4: memref<16x9xf32, #tpu.memory_space<vmem>>) attributes {dimension_semantics = [#tpu.dimension_semantics<parallel>], iteration_bounds = array<i64: 1>, scalar_prefetch = 0 : i64, scratch_operands = 0 : i64, tpu.core_type = #tpu.core_type<tc>, window_params = [{transform_indices = @transform_0, window_bounds = array<i64: 16, 32>}, {pipeline_mode = #tpu.pipeline_mode<synchronous>, transform_indices = @transform_1, window_bounds = array<i64: 32, 9>}, {pipeline_mode = #tpu.pipeline_mode<synchronous>, transform_indices = @transform_2, window_bounds = array<i64: 1, 9>}, {transform_indices = @transform_3, window_bounds = array<i64: 16, 9>}]} {
    %c0 = arith.constant 0 : index
    %c0_0 = arith.constant 0 : index
    %0 = vector.load %arg1[%c0, %c0_0] : memref<16x32xf32, #tpu.memory_space<vmem>>, vector<16x32xf32>
    %c0_1 = arith.constant 0 : index
    %c0_2 = arith.constant 0 : index
    %1 = vector.load %arg2[%c0_1, %c0_2] : memref<32x9xf32, #tpu.memory_space<vmem>>, vector<32x9xf32>
    %2 = arith.truncf %0 : vector<16x32xf32> to vector<16x32xbf16>
    %3 = arith.truncf %1 : vector<32x9xf32> to vector<32x9xbf16>
    %cst = arith.constant dense<0.000000e+00> : vector<16x9xf32>
    %4 = tpu.matmul %2, %3, %cst {dimension_numbers = #tpu.dot_dimension_numbers<[1], [0], [0], [1], [0, 0, 1, 1], [], []>} : vector<16x32xbf16>, vector<32x9xbf16>, vector<16x9xf32> -> vector<16x9xf32>
    %c0_3 = arith.constant 0 : index
    %c0_4 = arith.constant 0 : index
    %5 = vector.load %arg3[%c0_3, %c0_4] : memref<1x9xf32, #tpu.memory_space<vmem>>, vector<1x9xf32>
    %6 = vector.broadcast %5 : vector<1x9xf32> to vector<16x9xf32>
    %7 = arith.addf %4, %6 : vector<16x9xf32>
    %c0_5 = arith.constant 0 : index
    %c0_6 = arith.constant 0 : index
    %8 = vector.load %arg4[%c0_5, %c0_6] : memref<16x9xf32, #tpu.memory_space<vmem>>, vector<16x9xf32>
    tpu.vector_store %arg4[%c0_5, %c0_6], %7 {strides = array<i32>} : memref<16x9xf32, #tpu.memory_space<vmem>>, vector<16x9xf32>,
    return
  }
  func.func @transform_0(%arg0: i32) -> (i32, i32) {
    %c0_i32 = arith.constant 0 : i32
    %c0_i32_0 = arith.constant 0 : i32
    return %arg0, %c0_i32 : i32, i32
  }
  func.func @transform_1(%arg0: i32) -> (i32, i32) {
    %c0_i32 = arith.constant 0 : i32
    %c0_i32_0 = arith.constant 0 : i32
    %c0_i32_1 = arith.constant 0 : i32
    return %c0_i32, %c0_i32_0 : i32, i32
  }
  func.func @transform_2(%arg0: i32) -> (i32, i32) {
    %c0_i32 = arith.constant 0 : i32
    %c0_i32_0 = arith.constant 0 : i32
    %c0_i32_1 = arith.constant 0 : i32
    return %c0_i32, %c0_i32_0 : i32, i32
  }
  func.func @transform_3(%arg0: i32) -> (i32, i32) {
    %c0_i32 = arith.constant 0 : i32
    %c0_i32_0 = arith.constant 0 : i32
    return %arg0, %c0_i32 : i32, i32
  }
}

</mosaic_0001>

<llo_original>
// kernel: _lambda_.10
$region0: #{_lambda_.10}
  #allocation0 [shape = 'u32[]', space=smem, size = 0x4, offset = 0x4, fixed_abs, tag = 'smem constant byte address 0x4 - core index']
  #allocation1 [shape = 'u32[144,128]{1,0:T(1,128)}', space=vmem, size = 0x12000, scoped, tag = 'internal scratch']
  %s0 = inlined_call_operand.vmem [shape: f32[16,32], index: 0, kind: input, shape index: {}]
  %s1 = inlined_call_operand.vmem [shape: f32[32,240], index: 1, kind: input, shape index: {}]
  %s2 = inlined_call_operand.vmem [shape: f32[16,240], index: 2, kind: output, shape index: {}]
  %s3 = sld [smem:[#allocation0]]
  $region18: #{_lambda_.10} parent=0
    _
  %s5 = ssub.s32 1, %s3
  %s6 = scalar_select 0, %s5, %s3
  // Predicated region
  $region2: #{_lambda_.10} parent=0 // pred_check
    _
  $region3: #{_lambda_.10} parent=0 // pred_check_branch
    %8 = sbr.rel (0) target = $region5
  $region4: #{_lambda_.10} parent=0 // pred_region
    _
  $region5: #{_lambda_.10} parent=0 // pred_fallthru
    _
  // Predicated region
  $region6: #{_lambda_.10} parent=0 // pred_check
    _
  $region7: #{_lambda_.10} parent=0 // pred_check_branch
    %10 = sbr.rel (0) target = $region9
  $region8: #{_lambda_.10} parent=0 // pred_region
    _
  $region9: #{_lambda_.10} parent=0 // pred_fallthru
    _
  %v12 = vld [vmem:[%s0] sm:$0xff]
  %v13 = vld [vmem:[%s0 + $0x8] sm:$0xff]
  %v14 = vld [vmem:[%s1] sm:$0xff]
  %v15 = vld [vmem:[%s1 + $0x8] sm:$0xff]
  %v16 = vld [vmem:[%s1 + $0x10] sm:$0xff]
  %v17 = vld [vmem:[%s1 + $0x18] sm:$0xff]
  %v18 = vld [vmem:[%s1 + $0x20] sm:$0xff]
  %v19 = vld [vmem:[%s1 + $0x28] sm:$0xff]
  %v20 = vld [vmem:[%s1 + $0x30] sm:$0xff]
  %v21 = vld [vmem:[%s1 + $0x38] sm:$0xff]
  %v22 = vpack.c.bf16 %v13, %v12
  %v23 = vpack.c.bf16 %v16, %v14
  %v24 = vpack.c.bf16 %v17, %v15
  %v25 = vpack.c.bf16 %v20, %v18
  %v26 = vpack.c.bf16 %v21, %v19
  %vm27 = vcmask 261120
  %v29 = vsel %vm27, %v22, 0
  %31 = vmatprep.subr.bf16.mxu0 %v24
  %32 = vmatpush1.bf16.msra.mxu0 %v23
  %33 = vmatprep.subr.bf16.mxu0 %v26
  %34 = vmatpush1.bf16.msra.mxu0 %v25
  %35 = vmatprep.subr.bf16.mxu0 0
  %36 = vmatpush1.bf16.msra.mxu0 0
  %37 = vmatprep.subr.bf16.mxu0 0
  %38 = vmatpush1.bf16.msra.mxu0 0
  %39 = vmatprep.subr.bf16.mxu0 0
  %40 = vmatpush1.bf16.msra.mxu0 0
  %41 = vmatprep.subr.bf16.mxu0 0
  %42 = vmatpush1.bf16.msra.mxu0 0
  %43 = vmatprep.subr.bf16.mxu0 0
  %44 = vmatpush1.bf16.msra.mxu0 0
  %45 = vmatprep.subr.bf16.mxu0 0
  %46 = vmatpush1.bf16.msra.mxu0 0
  %47 = vmatprep.subr.bf16.mxu0 0
  %48 = vmatpush1.bf16.msra.mxu0 0
  %49 = vmatprep.subr.bf16.mxu0 0
  %50 = vmatpush1.bf16.msra.mxu0 0
  %51 = vmatprep.subr.bf16.mxu0 0
  %52 = vmatpush1.bf16.msra.mxu0 0
  %53 = vmatprep.subr.bf16.mxu0 0
  %54 = vmatpush1.bf16.msra.mxu0 0
  %55 = vmatprep.subr.bf16.mxu0 0
  %56 = vmatpush1.bf16.msra.mxu0 0
  %57 = vmatprep.subr.bf16.mxu0 0
  %58 = vmatpush1.bf16.msra.mxu0 0
  %59 = vmatprep.subr.bf16.mxu0 0
  %60 = vmatpush1.bf16.msra.mxu0 0
  %61 = vmatprep.subr.bf16.mxu0 0
  %62 = vmatpush1.bf16.msra.mxu0 0
  %63 = vmatprep.mubr.bf16.mxu0 0
  %64 = vmatmul.mubr.bf16.gmra.mrb[0].mxu0 %v29
  %v65 = vpop.f32.mrb[0].mxu0
  %v66 = vadd.f32 0.0, %v65
  %v67 = vpop.f32.mrb[0].mxu0
  %v68 = vadd.f32 0.0, %v67
  %v69 = vpop.f32.mrb[0].mxu0
  %v70 = vadd.f32 0.0, %v69
  %v71 = vpop.f32.mrb[0].mxu0
  %v72 = vadd.f32 0.0, %v71
  %73 = vdwg.mxu0
  %74 = vst [vmem:[%s2] sm:$0xff] %v66
  %vm75 = vcmask 916480
  %76 = vst.msk [vmem:[%s2 + $0x8] sm:$0xff] %vm75, %v68
  %77 = vst [vmem:[%s2 + $0x10] sm:$0xff] %v70
  %78 = vst.msk [vmem:[%s2 + $0x18] sm:$0xff] %vm75, %v72
  // Predicated region
  $region10: #{_lambda_.10} parent=0 // pred_check
    _
  $region11: #{_lambda_.10} parent=0 // pred_check_branch
    %80 = sbr.rel (0) target = $region13
  $region12: #{_lambda_.10} parent=0 // pred_region
    _
  $region13: #{_lambda_.10} parent=0 // pred_fallthru
    _
  // Predicated region
  $region14: #{_lambda_.10} parent=0 // pred_check
    _
  $region15: #{_lambda_.10} parent=0 // pred_check_branch
    %82 = sbr.rel (0) target = $region17
  $region16: #{_lambda_.10} parent=0 // pred_region
    _
  $region17: #{_lambda_.10} parent=0 // pred_fallthru
    _

// kernel: _lambda_.11
$region0: #{_lambda_.11}
  #allocation0 [shape = 'u32[]', space=smem, size = 0x4, offset = 0x4, fixed_abs, tag = 'smem constant byte address 0x4 - core index']
  #allocation1 [shape = 'u32[144,128]{1,0:T(1,128)}', space=vmem, size = 0x12000, scoped, tag = 'internal scratch']
  %s0 = inlined_call_operand.vmem [shape: f32[2,8,80], index: 0, kind: input, shape index: {}]
  %s1 = inlined_call_operand.vmem [shape: f32[2,8,80], index: 1, kind: input, shape index: {}]
  %s2 = inlined_call_operand.vmem [shape: f32[2,8,4], index: 2, kind: input, shape index: {}]
  %s3 = inlined_call_operand.vmem [shape: f32[2,4,8], index: 3, kind: input, shape index: {}]
  %s4 = inlined_call_operand.vmem [shape: f32[2,8,32], index: 4, kind: input, shape index: {}]
  %s5 = inlined_call_operand.vmem [shape: f32[2,8,48], index: 5, kind: input, shape index: {}]
  %s6 = inlined_call_operand.vmem [shape: f32[2,8,8,8], index: 6, kind: input, shape index: {}]
  %s7 = inlined_call_operand.vmem [shape: f32[8,4], index: 7, kind: input, shape index: {}]
  %s8 = inlined_call_operand.vmem [shape: f32[4], index: 8, kind: input, shape index: {}]
  %s9 = inlined_call_operand.vmem [shape: f32[2,8,32], index: 9, kind: output, shape index: {0}]
  %s10 = inlined_call_operand.vmem [shape: f32[2,8,48], index: 10, kind: output, shape index: {1}]
  %s11 = inlined_call_operand.vmem [shape: f32[2,32,8], index: 11, kind: output, shape index: {2}]
  %12 = xla_tuple %s9, %s10, %s11
  %s13 = sld [smem:[#allocation0]]
  $region93: #{_lambda_.11} parent=0
    _
  %s15 = ssub.s32 1, %s13
  %s16 = scalar_select 0, %s15, %s13
  $region1: #{_lambda_.11} parent=0
    #allocation2 [shape = 'u8[4096]{0}', space=smem, size = 0x1000, scoped, tag = 'input window, operand 7, single buffered']
    #allocation3 [shape = 's32[2]{0}', space=sflag, size = 0x8, scoped, tag = 'scoped memory for _lambda_.11']
    #allocation4 [shape = 'u8[512]{0}', space=smem, size = 0x200, scoped, tag = 'input window, operand 8, single buffered']
    #allocation5 [shape = 's32[1]{0}', space=sflag, size = 0x4, scoped, tag = 'scoped memory for _lambda_.11']
    %17 = vsyncpa [#allocation3], 0
    %18 = vsyncpa [#allocation5], 0
    loop: start=0, step=1, limit=4
    $region2: #{_lambda_.11} parent=1 // loop_pre_header
      _
    $region3: #{_lambda_.11} parent=1 // loop_header
      %s20 = sphi 0, %s24
      %p21 = scmp.ge.s32.totalorder %s20, 4
      %s30 = sphi 0, %s32
      %s33 = sphi 0, %s30
      %s34 = sphi 0, %s33
      %s50 = sphi 0, %s34
      %s56 = sphi 0, %s58
      %s59 = sphi 0, %s56
      %s60 = sphi 0, %s59
      %s76 = sphi 0, %s60
      %s82 = sphi 0, %s84
      %s85 = sphi 0, %s82
      %s86 = sphi 0, %s85
      %s102 = sphi 0, %s86
      %s108 = sphi 0, %s110
      %s111 = sphi 0, %s108
      %s112 = sphi 0, %s111
      %s128 = sphi 0, %s112
      %s134 = sphi 0, %s136
      %s137 = sphi 0, %s134
      %s138 = sphi 0, %s137
      %s154 = sphi 0, %s138
      %s160 = sphi 0, %s162
      %s163 = sphi 0, %s160
      %s164 = sphi 0, %s163
      %s180 = sphi 0, %s164
      %s186 = sphi 0, %s188
      %s189 = sphi 0, %s186
      %s190 = sphi 0, %s189
      %s206 = sphi 0, %s190
      %s210 = sphi 0, %s210
      %s212 = sphi 0, %s210
      %s213 = sphi 0, %s212
      %s227 = sphi 0, %s213
      %s231 = sphi 0, %s231
      %s233 = sphi 0, %s231
      %s234 = sphi 0, %s233
      %s248 = sphi 0, %s234
      %s254 = sphi 0, %s256
      %s257 = sphi 0, %s254
      %s258 = sphi 0, %s257
      %s274 = sphi 0, %s258
      %s280 = sphi 0, %s282
      %s283 = sphi 0, %s280
      %s284 = sphi 0, %s283
      %s300 = sphi 0, %s284
      %s306 = sphi 0, %s308
      %s309 = sphi 0, %s306
      %s310 = sphi 0, %s309
      %s326 = sphi 0, %s310
    $region4: #{_lambda_.11} parent=1 // loop_header_branch
      %23 = sbr.rel (%p21) target = $region8
    $region5: #{_lambda_.11} parent=1 // loop_body
      %s25 = ssub.s32 %s20, 1
      %s26 = ssub.s32 %s20, 2
      %s27 = sadd.s32 %s20, 1
      %s28 = ssub.s32 %s20, %s27
      %p29 = scmp.eq.s32.totalorder %s28, 0
      %s31 = sadd.s32 %s30, 1
      %s32 = scalar_select %p29, %s30, %s31
      %p35 = pneg %p29
      %p36 = scmp.eq.s32.totalorder %s20, 1
      %p37 = por %p35, %p36
      %p38 = scmp.ne.s32.totalorder %s30, %s33
      %p39 = scmp.eq.s32.totalorder %s20, 0
      %p40 = por %p38, %p39
      %p41 = scmp.ne.s32.totalorder %s30, %s33
      %p42 = scmp.eq.s32.totalorder %s25, 1
      %p43 = por %p41, %p42
      %p44 = scmp.ne.s32.totalorder %s33, %s34
      %p45 = scmp.eq.s32.totalorder %s25, 0
      %p46 = por %p44, %p45
      %p47 = scmp.ne.s32.totalorder %s33, %s34
      %p48 = scmp.eq.s32.totalorder %s26, 1
      %p49 = por %p47, %p48
      %p51 = scmp.ne.s32.totalorder %s34, %s50
      %p52 = scmp.eq.s32.totalorder %s26, 0
      %p53 = por %p51, %p52
      %s54 = ssub.s32 %s20, %s27
      %p55 = scmp.eq.s32.totalorder %s54, 0
      %s57 = sadd.s32 %s56, 1
      %s58 = scalar_select %p55, %s56, %s57
      %p61 = pneg %p55
      %p62 = scmp.eq.s32.totalorder %s20, 1
      %p63 = por %p61, %p62
      %p64 = scmp.ne.s32.totalorder %s56, %s59
      %p65 = scmp.eq.s32.totalorder %s20, 0
      %p66 = por %p64, %p65
      %p67 = scmp.ne.s32.totalorder %s56, %s59
      %p68 = scmp.eq.s32.totalorder %s25, 1
      %p69 = por %p67, %p68
      %p70 = scmp.ne.s32.totalorder %s59, %s60
      %p71 = scmp.eq.s32.totalorder %s25, 0
      %p72 = por %p70, %p71
      %p73 = scmp.ne.s32.totalorder %s59, %s60
      %p74 = scmp.eq.s32.totalorder %s26, 1
      %p75 = por %p73, %p74
      %p77 = scmp.ne.s32.totalorder %s60, %s76
      %p78 = scmp.eq.s32.totalorder %s26, 0
      %p79 = por %p77, %p78
      %s80 = ssub.s32 %s20, %s27
      %p81 = scmp.eq.s32.totalorder %s80, 0
      %s83 = sadd.s32 %s82, 1
      %s84 = scalar_select %p81, %s82, %s83
      %p87 = pneg %p81
      %p88 = scmp.eq.s32.totalorder %s20, 1
      %p89 = por %p87, %p88
      %p90 = scmp.ne.s32.totalorder %s82, %s85
      %p91 = scmp.eq.s32.totalorder %s20, 0
      %p92 = por %p90, %p91
      %p93 = scmp.ne.s32.totalorder %s82, %s85
      %p94 = scmp.eq.s32.totalorder %s25, 1
      %p95 = por %p93, %p94
      %p96 = scmp.ne.s32.totalorder %s85, %s86
      %p97 = scmp.eq.s32.totalorder %s25, 0
      %p98 = por %p96, %p97
      %p99 = scmp.ne.s32.totalorder %s85, %s86
      %p100 = scmp.eq.s32.totalorder %s26, 1
      %p101 = por %p99, %p100
      %p103 = scmp.ne.s32.totalorder %s86, %s102
      %p104 = scmp.eq.s32.totalorder %s26, 0
      %p105 = por %p103, %p104
      %s106 = ssub.s32 %s20, %s27
      %p107 = scmp.eq.s32.totalorder %s106, 0
      %s109 = sadd.s32 %s108, 1
      %s110 = scalar_select %p107, %s108, %s109
      %p113 = pneg %p107
      %p114 = scmp.eq.s32.totalorder %s20, 1
      %p115 = por %p113, %p114
      %p116 = scmp.ne.s32.totalorder %s108, %s111
      %p117 = scmp.eq.s32.totalorder %s20, 0
      %p118 = por %p116, %p117
      %p119 = scmp.ne.s32.totalorder %s108, %s111
      %p120 = scmp.eq.s32.totalorder %s25, 1
      %p121 = por %p119, %p120
      %p122 = scmp.ne.s32.totalorder %s111, %s112
      %p123 = scmp.eq.s32.totalorder %s25, 0
      %p124 = por %p122, %p123
      %p125 = scmp.ne.s32.totalorder %s111, %s112
      %p126 = scmp.eq.s32.totalorder %s26, 1
      %p127 = por %p125, %p126
      %p129 = scmp.ne.s32.totalorder %s112, %s128
      %p130 = scmp.eq.s32.totalorder %s26, 0
      %p131 = por %p129, %p130
      %s132 = ssub.s32 %s20, %s27
      %p133 = scmp.eq.s32.totalorder %s132, 0
      %s135 = sadd.s32 %s134, 1
      %s136 = scalar_select %p133, %s134, %s135
      %p139 = pneg %p133
      %p140 = scmp.eq.s32.totalorder %s20, 1
      %p141 = por %p139, %p140
      %p142 = scmp.ne.s32.totalorder %s134, %s137
      %p143 = scmp.eq.s32.totalorder %s20, 0
      %p144 = por %p142, %p143
      %p145 = scmp.ne.s32.totalorder %s134, %s137
      %p146 = scmp.eq.s32.totalorder %s25, 1
      %p147 = por %p145, %p146
      %p148 = scmp.ne.s32.totalorder %s137, %s138
      %p149 = scmp.eq.s32.totalorder %s25, 0
      %p150 = por %p148, %p149
      %p151 = scmp.ne.s32.totalorder %s137, %s138
      %p152 = scmp.eq.s32.totalorder %s26, 1
      %p153 = por %p151, %p152
      %p155 = scmp.ne.s32.totalorder %s138, %s154
      %p156 = scmp.eq.s32.totalorder %s26, 0
      %p157 = por %p155, %p156
      %s158 = ssub.s32 %s20, %s27
      %p159 = scmp.eq.s32.totalorder %s158, 0
      %s161 = sadd.s32 %s160, 1
      %s162 = scalar_select %p159, %s160, %s161
      %p165 = pneg %p159
      %p166 = scmp.eq.s32.totalorder %s20, 1
      %p167 = por %p165, %p166
      %p168 = scmp.ne.s32.totalorder %s160, %s163
      %p169 = scmp.eq.s32.totalorder %s20, 0
      %p170 = por %p168, %p169
      %p171 = scmp.ne.s32.totalorder %s160, %s163
      %p172 = scmp.eq.s32.totalorder %s25, 1
      %p173 = por %p171, %p172
      %p174 = scmp.ne.s32.totalorder %s163, %s164
      %p175 = scmp.eq.s32.totalorder %s25, 0
      %p176 = por %p174, %p175
      %p177 = scmp.ne.s32.totalorder %s163, %s164
      %p178 = scmp.eq.s32.totalorder %s26, 1
      %p179 = por %p177, %p178
      %p181 = scmp.ne.s32.totalorder %s164, %s180
      %p182 = scmp.eq.s32.totalorder %s26, 0
      %p183 = por %p181, %p182
      %s184 = ssub.s32 %s20, %s27
      %p185 = scmp.eq.s32.totalorder %s184, 0
      %s187 = sadd.s32 %s186, 1
      %s188 = scalar_select %p185, %s186, %s187
      %p191 = pneg %p185
      %p192 = scmp.eq.s32.totalorder %s20, 1
      %p193 = por %p191, %p192
      %p194 = scmp.ne.s32.totalorder %s186, %s189
      %p195 = scmp.eq.s32.totalorder %s20, 0
      %p196 = por %p194, %p195
      %p197 = scmp.ne.s32.totalorder %s186, %s189
      %p198 = scmp.eq.s32.totalorder %s25, 1
      %p199 = por %p197, %p198
      %p200 = scmp.ne.s32.totalorder %s189, %s190
      %p201 = scmp.eq.s32.totalorder %s25, 0
      %p202 = por %p200, %p201
      %p203 = scmp.ne.s32.totalorder %s189, %s190
      %p204 = scmp.eq.s32.totalorder %s26, 1
      %p205 = por %p203, %p204
      %p207 = scmp.ne.s32.totalorder %s190, %s206
      %p208 = scmp.eq.s32.totalorder %s26, 0
      %p209 = por %p207, %p208
      %s211 = sadd.s32 %s210, 1
      %p214 = scmp.eq.s32.totalorder %s20, 1
      %p215 = scmp.ne.s32.totalorder %s210, %s212
      %p216 = scmp.eq.s32.totalorder %s20, 0
      %p217 = por %p215, %p216
      %p218 = scmp.ne.s32.totalorder %s210, %s212
      %p219 = scmp.eq.s32.totalorder %s25, 1
      %p220 = por %p218, %p219
      %p221 = scmp.ne.s32.totalorder %s212, %s213
      %p222 = scmp.eq.s32.totalorder %s25, 0
      %p223 = por %p221, %p222
      %p224 = scmp.ne.s32.totalorder %s212, %s213
      %p225 = scmp.eq.s32.totalorder %s26, 1
      %p226 = por %p224, %p225
      %p228 = scmp.ne.s32.totalorder %s213, %s227
      %p229 = scmp.eq.s32.totalorder %s26, 0
      %p230 = por %p228, %p229
      %s232 = sadd.s32 %s231, 1
      %p235 = scmp.eq.s32.totalorder %s20, 1
      %p236 = scmp.ne.s32.totalorder %s231, %s233
      %p237 = scmp.eq.s32.totalorder %s20, 0
      %p238 = por %p236, %p237
      %p239 = scmp.ne.s32.totalorder %s231, %s233
      %p240 = scmp.eq.s32.totalorder %s25, 1
      %p241 = por %p239, %p240
      %p242 = scmp.ne.s32.totalorder %s233, %s234
      %p243 = scmp.eq.s32.totalorder %s25, 0
      %p244 = por %p242, %p243
      %p245 = scmp.ne.s32.totalorder %s233, %s234
      %p246 = scmp.eq.s32.totalorder %s26, 1
      %p247 = por %p245, %p246
      %p249 = scmp.ne.s32.totalorder %s234, %s248
      %p250 = scmp.eq.s32.totalorder %s26, 0
      %p251 = por %p249, %p250
      %s252 = ssub.s32 %s20, %s27
      %p253 = scmp.eq.s32.totalorder %s252, 0
      %s255 = sadd.s32 %s254, 1
      %s256 = scalar_select %p253, %s254, %s255
      %p259 = pneg %p253
      %p260 = scmp.eq.s32.totalorder %s20, 1
      %p261 = por %p259, %p260
      %p262 = scmp.ne.s32.totalorder %s254, %s257
      %p263 = scmp.eq.s32.totalorder %s20, 0
      %p264 = por %p262, %p263
      %p265 = scmp.ne.s32.totalorder %s254, %s257
      %p266 = scmp.eq.s32.totalorder %s25, 1
      %p267 = por %p265, %p266
      %p268 = scmp.ne.s32.totalorder %s257, %s258
      %p269 = scmp.eq.s32.totalorder %s25, 0
      %p270 = por %p268, %p269
      %p271 = scmp.ne.s32.totalorder %s257, %s258
      %p272 = scmp.eq.s32.totalorder %s26, 1
      %p273 = por %p271, %p272
      %p275 = scmp.ne.s32.totalorder %s258, %s274
      %p276 = scmp.eq.s32.totalorder %s26, 0
      %p277 = por %p275, %p276
      %s278 = ssub.s32 %s20, %s27
      %p279 = scmp.eq.s32.totalorder %s278, 0
      %s281 = sadd.s32 %s280, 1
      %s282 = scalar_select %p279, %s280, %s281
      %p285 = pneg %p279
      %p286 = scmp.eq.s32.totalorder %s20, 1
      %p287 = por %p285, %p286
      %p288 = scmp.ne.s32.totalorder %s280, %s283
      %p289 = scmp.eq.s32.totalorder %s20, 0
      %p290 = por %p288, %p289
      %p291 = scmp.ne.s32.totalorder %s280, %s283
      %p292 = scmp.eq.s32.totalorder %s25, 1
      %p293 = por %p291, %p292
      %p294 = scmp.ne.s32.totalorder %s283, %s284
      %p295 = scmp.eq.s32.totalorder %s25, 0
      %p296 = por %p294, %p295
      %p297 = scmp.ne.s32.totalorder %s283, %s284
      %p298 = scmp.eq.s32.totalorder %s26, 1
      %p299 = por %p297, %p298
      %p301 = scmp.ne.s32.totalorder %s284, %s300
      %p302 = scmp.eq.s32.totalorder %s26, 0
      %p303 = por %p301, %p302
      %s304 = ssub.s32 %s20, %s27
      %p305 = scmp.eq.s32.totalorder %s304, 0
      %s307 = sadd.s32 %s306, 1
      %s308 = scalar_select %p305, %s306, %s307
      %p311 = pneg %p305
      %p312 = scmp.eq.s32.totalorder %s20, 1
      %p313 = por %p311, %p312
      %p314 = scmp.ne.s32.totalorder %s306, %s309
      %p315 = scmp.eq.s32.totalorder %s20, 0
      %p316 = por %p314, %p315
      %p317 = scmp.ne.s32.totalorder %s306, %s309
      %p318 = scmp.eq.s32.totalorder %s25, 1
      %p319 = por %p317, %p318
      %p320 = scmp.ne.s32.totalorder %s309, %s310
      %p321 = scmp.eq.s32.totalorder %s25, 0
      %p322 = por %p320, %p321
      %p323 = scmp.ne.s32.totalorder %s309, %s310
      %p324 = scmp.eq.s32.totalorder %s26, 1
      %p325 = por %p323, %p324
      %p327 = scmp.ne.s32.totalorder %s310, %s326
      %p328 = scmp.eq.s32.totalorder %s26, 0
      %p329 = por %p327, %p328
      %p330 = scmp.le.s32.totalorder 1, %s20
      %p331 = scmp.lt.s32.totalorder %s20, 3
      %p332 = pnand %p330, %p331
      %p333 = pneg %p332
      // Predicated region
      $region9: #{_lambda_.11} parent=5 // pred_check
        _
      $region10: #{_lambda_.11} parent=5 // pred_check_branch
        %335 = sbr.rel (%p332) target = $region12
      $region11: #{_lambda_.11} parent=5 // pred_region
        %s336 = ssub.s32 %s20, 1
        // Predicated region
        $region13: #{_lambda_.11} parent=11 // pred_check
          %p337 = pneg %p223
        $region14: #{_lambda_.11} parent=11 // pred_check_branch
          %339 = sbr.rel (%p337) target = $region16
        $region15: #{_lambda_.11} parent=11 // pred_region
          %s341 = ssub.s32 128, 128
          %342 = vsyncadd [#allocation3], %s341
          %s344 = sshll.u32 %s7, 4
          %s345 = int_to_ptr.vmem [resolvable:$true] %s344
          %347 = dma.vmem_to_smem %s345, 128, [#allocation2], [#allocation3]
        $region16: #{_lambda_.11} parent=11 // pred_fallthru
          _
        // Predicated region
        $region17: #{_lambda_.11} parent=11 // pred_check
          %p348 = pneg %p244
        $region18: #{_lambda_.11} parent=11 // pred_check_branch
          %350 = sbr.rel (%p348) target = $region20
        $region19: #{_lambda_.11} parent=11 // pred_region
          %s352 = ssub.s32 16, 16
          %353 = vsyncadd [#allocation5], %s352
          %s355 = sshll.u32 %s8, 4
          %s356 = int_to_ptr.vmem [resolvable:$true] %s355
          %358 = dma.vmem_to_smem %s356, 16, [#allocation4], [#allocation5]
        $region20: #{_lambda_.11} parent=11 // pred_fallthru
          _
      $region12: #{_lambda_.11} parent=5 // pred_fallthru
        _
      %p359 = scmp.lt.s32.totalorder %s20, 2
      // Predicated region
      $region21: #{_lambda_.11} parent=5 // pred_check
        %p360 = pneg %p359
      $region22: #{_lambda_.11} parent=5 // pred_check_branch
        %362 = sbr.rel (%p360) target = $region24
      $region23: #{_lambda_.11} parent=5 // pred_region
        // Predicated region
        $region25: #{_lambda_.11} parent=23 // pred_check
          %p363 = pneg %p40
        $region26: #{_lambda_.11} parent=23 // pred_check_branch
          %365 = sbr.rel (%p363) target = $region28
        $region27: #{_lambda_.11} parent=23 // pred_region
          %p366 = scmp.lt.s32.totalorder %s20, 1
          %s367 = scalar_select %p366, %s20, 1
          %s368 = smul.addr %s367, 8
          %s369 = scalar_lea.vmem %s0, %s368
        $region28: #{_lambda_.11} parent=23 // pred_fallthru
          _
        // Predicated region
        $region29: #{_lambda_.11} parent=23 // pred_check
          %p370 = pneg %p66
        $region30: #{_lambda_.11} parent=23 // pred_check_branch
          %372 = sbr.rel (%p370) target = $region32
        $region31: #{_lambda_.11} parent=23 // pred_region
          %p373 = scmp.lt.s32.totalorder %s20, 1
          %s374 = scalar_select %p373, %s20, 1
          %s375 = smul.addr %s374, 8
          %s376 = scalar_lea.vmem %s1, %s375
        $region32: #{_lambda_.11} parent=23 // pred_fallthru
          _
        // Predicated region
        $region33: #{_lambda_.11} parent=23 // pred_check
          %p377 = pneg %p92
        $region34: #{_lambda_.11} parent=23 // pred_check_branch
          %379 = sbr.rel (%p377) target = $region36
        $region35: #{_lambda_.11} parent=23 // pred_region
          %p380 = scmp.lt.s32.totalorder %s20, 1
          %s381 = scalar_select %p380, %s20, 1
          %s382 = smul.addr %s381, 8
          %s383 = scalar_lea.vmem %s2, %s382
        $region36: #{_lambda_.11} parent=23 // pred_fallthru
          _
        // Predicated region
        $region37: #{_lambda_.11} parent=23 // pred_check
          %p384 = pneg %p118
        $region38: #{_lambda_.11} parent=23 // pred_check_branch
          %386 = sbr.rel (%p384) target = $region40
        $region39: #{_lambda_.11} parent=23 // pred_region
          %p387 = scmp.lt.s32.totalorder %s20, 1
          %s388 = scalar_select %p387, %s20, 1
          %s389 = smul.addr %s388, 4
          %s390 = scalar_lea.vmem %s3, %s389
        $region40: #{_lambda_.11} parent=23 // pred_fallthru
          _
        // Predicated region
        $region41: #{_lambda_.11} parent=23 // pred_check
          %p391 = pneg %p144
        $region42: #{_lambda_.11} parent=23 // pred_check_branch
          %393 = sbr.rel (%p391) target = $region44
        $region43: #{_lambda_.11} parent=23 // pred_region
          %p394 = scmp.lt.s32.totalorder %s20, 1
          %s395 = scalar_select %p394, %s20, 1
          %s396 = smul.addr %s395, 8
          %s397 = scalar_lea.vmem %s4, %s396
        $region44: #{_lambda_.11} parent=23 // pred_fallthru
          _
        // Predicated region
        $region45: #{_lambda_.11} parent=23 // pred_check
          %p398 = pneg %p170
        $region46: #{_lambda_.11} parent=23 // pred_check_branch
          %400 = sbr.rel (%p398) target = $region48
        $region47: #{_lambda_.11} parent=23 // pred_region
          %p401 = scmp.lt.s32.totalorder %s20, 1
          %s402 = scalar_select %p401, %s20, 1
          %s403 = smul.addr %s402, 8
          %s404 = scalar_lea.vmem %s5, %s403
        $region48: #{_lambda_.11} parent=23 // pred_fallthru
          _
        // Predicated region
        $region49: #{_lambda_.11} parent=23 // pred_check
          %p405 = pneg %p196
        $region50: #{_lambda_.11} parent=23 // pred_check_branch
          %407 = sbr.rel (%p405) target = $region52
        $region51: #{_lambda_.11} parent=23 // pred_region
          %p408 = scmp.lt.s32.totalorder %s20, 1
          %s409 = scalar_select %p408, %s20, 1
          %s410 = smul.addr %s409, 8
          %s411 = smul.addr %s410, 8
          %s412 = scalar_lea.vmem %s6, %s411
        $region52: #{_lambda_.11} parent=23 // pred_fallthru
          _
      $region24: #{_lambda_.11} parent=5 // pred_fallthru
        _
      %p413 = scmp.le.s32.totalorder 1, %s20
      %p414 = scmp.lt.s32.totalorder %s20, 3
      %p415 = pnand %p413, %p414
      %p416 = pneg %p415
      // Predicated region
      $region53: #{_lambda_.11} parent=5 // pred_check
        _
      $region54: #{_lambda_.11} parent=5 // pred_check_branch
        %418 = sbr.rel (%p415) target = $region56
      $region55: #{_lambda_.11} parent=5 // pred_region
        %s419 = ssub.s32 %s20, 1
        // Predicated region
        $region57: #{_lambda_.11} parent=55 // pred_check
          %p420 = pneg %p223
        $region58: #{_lambda_.11} parent=55 // pred_check_branch
          %422 = sbr.rel (%p420) target = $region60
        $region59: #{_lambda_.11} parent=55 // pred_region
          %423 = dma.done [#allocation3], 128
        $region60: #{_lambda_.11} parent=55 // pred_fallthru
          _
        // Predicated region
        $region61: #{_lambda_.11} parent=55 // pred_check
          %p424 = pneg %p244
        $region62: #{_lambda_.11} parent=55 // pred_check_branch
          %426 = sbr.rel (%p424) target = $region64
        $region63: #{_lambda_.11} parent=55 // pred_region
          %427 = dma.done [#allocation5], 16
        $region64: #{_lambda_.11} parent=55 // pred_fallthru
          _
        %428 = sfence
        %p429 = scmp.lt.s32.totalorder %s25, 1
        %s430 = scalar_select %p429, %s25, 1
        %s431 = smul.addr %s430, 8
        %s432 = scalar_lea.vmem %s0, %s431
        %p433 = pneg %p46
        %p434 = pneg %p43
        %p435 = scmp.lt.s32.totalorder %s25, 1
        %s436 = scalar_select %p435, %s25, 1
        %s437 = smul.addr %s436, 8
        %s438 = scalar_lea.vmem %s1, %s437
        %p439 = pneg %p72
        %p440 = pneg %p69
        %p441 = scmp.lt.s32.totalorder %s25, 1
        %s442 = scalar_select %p441, %s25, 1
        %s443 = smul.addr %s442, 8
        %s444 = scalar_lea.vmem %s2, %s443
        %p445 = pneg %p98
        %p446 = pneg %p95
        %p447 = scmp.lt.s32.totalorder %s25, 1
        %s448 = scalar_select %p447, %s25, 1
        %s449 = smul.addr %s448, 4
        %s450 = scalar_lea.vmem %s3, %s449
        %p451 = pneg %p124
        %p452 = pneg %p121
        %p453 = scmp.lt.s32.totalorder %s25, 1
        %s454 = scalar_select %p453, %s25, 1
        %s455 = smul.addr %s454, 8
        %s456 = scalar_lea.vmem %s4, %s455
        %p457 = pneg %p150
        %p458 = pneg %p147
        %p459 = scmp.lt.s32.totalorder %s25, 1
        %s460 = scalar_select %p459, %s25, 1
        %s461 = smul.addr %s460, 8
        %s462 = scalar_lea.vmem %s5, %s461
        %p463 = pneg %p176
        %p464 = pneg %p173
        %p465 = scmp.lt.s32.totalorder %s25, 1
        %s466 = scalar_select %p465, %s25, 1
        %s467 = smul.addr %s466, 8
        %s468 = smul.addr %s467, 8
        %s469 = scalar_lea.vmem %s6, %s468
        %p470 = pneg %p202
        %p471 = pneg %p199
        %p472 = pneg %p223
        %p473 = pneg %p220
        %p474 = pneg %p244
        %p475 = pneg %p241
        %p476 = pneg %p270
        %p477 = pneg %p267
        %p478 = scmp.lt.s32.totalorder %s25, 1
        %s479 = scalar_select %p478, %s25, 1
        %s480 = smul.addr %s479, 8
        %s481 = scalar_lea.vmem %s9, %s480
        %p482 = pneg %p296
        %p483 = pneg %p293
        %p484 = scmp.lt.s32.totalorder %s25, 1
        %s485 = scalar_select %p484, %s25, 1
        %s486 = smul.addr %s485, 8
        %s487 = scalar_lea.vmem %s10, %s486
        %p488 = pneg %p322
        %p489 = pneg %p319
        %p490 = scmp.lt.s32.totalorder %s25, 1
        %s491 = scalar_select %p490, %s25, 1
        %s492 = smul.addr %s491, 4
        %s493 = smul.addr %s492, 8
        %s494 = scalar_lea.vmem %s11, %s493
        %p495 = scmp.lt.s32.totalorder %s25, 1
        %s496 = scalar_select %p495, %s25, 1
        %s497 = smul.addr %s496, 8
        %s498 = scalar_lea.vmem %s0, %s497
        %p499 = scmp.lt.s32.totalorder %s25, 1
        %s500 = scalar_select %p499, %s25, 1
        %s501 = smul.addr %s500, 8
        %s502 = scalar_lea.vmem %s1, %s501
        %p503 = scmp.lt.s32.totalorder %s25, 1
        %s504 = scalar_select %p503, %s25, 1
        %s505 = smul.addr %s504, 8
        %s506 = scalar_lea.vmem %s2, %s505
        %p507 = scmp.lt.s32.totalorder %s25, 1
        %s508 = scalar_select %p507, %s25, 1
        %s509 = smul.addr %s508, 4
        %s510 = scalar_lea.vmem %s3, %s509
        %p511 = scmp.lt.s32.totalorder %s25, 1
        %s512 = scalar_select %p511, %s25, 1
        %s513 = smul.addr %s512, 8
        %s514 = scalar_lea.vmem %s4, %s513
        %p515 = scmp.lt.s32.totalorder %s25, 1
        %s516 = scalar_select %p515, %s25, 1
        %s517 = smul.addr %s516, 8
        %s518 = scalar_lea.vmem %s5, %s517
        %p519 = scmp.lt.s32.totalorder %s25, 1
        %s520 = scalar_select %p519, %s25, 1
        %s521 = smul.addr %s520, 8
        %s522 = smul.addr %s521, 8
        %s523 = scalar_lea.vmem %s6, %s522
        %p524 = scmp.lt.s32.totalorder %s25, 1
        %s525 = scalar_select %p524, %s25, 1
        %s526 = smul.addr %s525, 8
        %s527 = scalar_lea.vmem %s9, %s526
        %p528 = scmp.lt.s32.totalorder %s25, 1
        %s529 = scalar_select %p528, %s25, 1
        %s530 = smul.addr %s529, 8
        %s531 = scalar_lea.vmem %s10, %s530
        %p532 = scmp.lt.s32.totalorder %s25, 1
        %s533 = scalar_select %p532, %s25, 1
        %s534 = smul.addr %s533, 4
        %s535 = smul.addr %s534, 8
        %s536 = scalar_lea.vmem %s11, %s535
        %v538 = vld [vmem:[%s498] sm:$0xff]
        %v539 = vld [vmem:[%s502] sm:$0xff]
        %v540 = vld [vmem:[%s506] sm:$0xff]
        %v541 = vld [vmem:[%s510] sm:$0xf]
        %v542 = vld [vmem:[%s514] sm:$0xff]
        %v543 = vld [vmem:[%s518] sm:$0xff]
        %v544 = vld [vmem:[%s523] sm:$0xff]
        %v545 = vld [vmem:[%s523 + $0x8] sm:$0xff]
        %v546 = vld [vmem:[%s523 + $0x10] sm:$0xff]
        %v547 = vld [vmem:[%s523 + $0x18] sm:$0xff]
        %v548 = vld [vmem:[%s523 + $0x20] sm:$0xff]
        %v549 = vld [vmem:[%s523 + $0x28] sm:$0xff]
        %v550 = vld [vmem:[%s523 + $0x30] sm:$0xff]
        %v551 = vld [vmem:[%s523 + $0x38] sm:$0xff]
        %v552 = vpack.c.bf16 %v538, %v538
        %v553 = vpack.c.bf16 %v539, %v539
        %vm554 = vcmask 162816
        %v556 = vsel %vm554, %v552, 0
        %v559 = vsel %vm554, %v553, 0
        %561 = vmatprep.subr.bf16.mxu0 0
        %562 = vmatpush1.bf16.xpose.msra.mxu0 %v559
        %563 = vmatprep.subr.bf16.mxu0 0
        %564 = vmatpush1.bf16.xpose.msra.mxu0 0
        %565 = vmatprep.subr.bf16.mxu0 0
        %566 = vmatpush1.bf16.xpose.msra.mxu0 0
        %567 = vmatprep.subr.bf16.mxu0 0
        %568 = vmatpush1.bf16.xpose.msra.mxu0 0
        %569 = vmatprep.subr.bf16.mxu0 0
        %570 = vmatpush1.bf16.xpose.msra.mxu0 0
        %571 = vmatprep.subr.bf16.mxu0 0
        %572 = vmatpush1.bf16.xpose.msra.mxu0 0
        %573 = vmatprep.subr.bf16.mxu0 0
        %574 = vmatpush1.bf16.xpose.msra.mxu0 0
        %575 = vmatprep.subr.bf16.mxu0 0
        %576 = vmatpush1.bf16.xpose.msra.mxu0 0
        %577 = vmatprep.subr.bf16.mxu0 0
        %578 = vmatpush1.bf16.xpose.msra.mxu0 0
        %579 = vmatprep.subr.bf16.mxu0 0
        %580 = vmatpush1.bf16.xpose.msra.mxu0 0
        %581 = vmatprep.subr.bf16.mxu0 0
        %582 = vmatpush1.bf16.xpose.msra.mxu0 0
        %583 = vmatprep.subr.bf16.mxu0 0
        %584 = vmatpush1.bf16.xpose.msra.mxu0 0
        %585 = vmatprep.subr.bf16.mxu0 0
        %586 = vmatpush1.bf16.xpose.msra.mxu0 0
        %587 = vmatprep.subr.bf16.mxu0 0
        %588 = vmatpush1.bf16.xpose.msra.mxu0 0
        %589 = vmatprep.subr.bf16.mxu0 0
        %590 = vmatpush1.bf16.xpose.msra.mxu0 0
        %591 = vmatprep.subr.bf16.mxu0 0
        %592 = vmatpush1.bf16.xpose.msra.mxu0 0
        %593 = vmatprep.mubr.bf16.mxu0 0
        %594 = vmatmul.mubr.bf16.gmra.mrb[0].mxu0 %v556
        %v595 = vpop.f32.mrb[0].mxu0
        %v596 = vadd.f32 0.0, %v595
        %v597 = vpop.f32.mrb[0].mxu0
        %v598 = vpop.f32.mrb[0].mxu0
        %v599 = vpop.f32.mrb[0].mxu0
        %600 = vdwg.mxu0
        %602 = vset.pattern.permute.xlu0 0
        %603 = vperm.xlu0 %602, %v540
        %v604 = vpop.permute.xlu0 %603
        %v606 = vsub.f32 %v596, %v604
        %v607 = vlaneseq
        %v608 = vshrl.u32 %v607, 7
        %v609 = vsub.s32 0, %v608
        %v610 = vrot.slane %v541, %v609
        %v611 = vsub.f32 %v606, %v610
        %s612 = sld [smem:[#allocation4]]
        %v613 = vstv %s612
        %v614 = vadd.f32 %v611, %v613
        %s615 = sld [smem:[#allocation2]]
        %v616 = vstv %s615
        %v617 = vmul.f32 %v544, %v616
        %v618 = vadd.f32 %v614, %v617
        %s619 = sld [smem:[#allocation2 + $0x80]]
        %v620 = vstv %s619
        %v621 = vmul.f32 %v545, %v620
        %v622 = vadd.f32 %v618, %v621
        %s623 = sld [smem:[#allocation2 + $0x100]]
        %v624 = vstv %s623
        %v625 = vmul.f32 %v546, %v624
        %v626 = vadd.f32 %v622, %v625
        %s627 = sld [smem:[#allocation2 + $0x180]]
        %v628 = vstv %s627
        %v629 = vmul.f32 %v547, %v628
        %v630 = vadd.f32 %v626, %v629
        %s631 = sld [smem:[#allocation2 + $0x200]]
        %v632 = vstv %s631
        %v633 = vmul.f32 %v548, %v632
        %v634 = vadd.f32 %v630, %v633
        %s635 = sld [smem:[#allocation2 + $0x280]]
        %v636 = vstv %s635
        %v637 = vmul.f32 %v549, %v636
        %v638 = vadd.f32 %v634, %v637
        %s639 = sld [smem:[#allocation2 + $0x300]]
        %v640 = vstv %s639
        %v641 = vmul.f32 %v550, %v640
        %v642 = vadd.f32 %v638, %v641
        %s643 = sld [smem:[#allocation2 + $0x380]]
        %v644 = vstv %s643
        %v645 = vmul.f32 %v551, %v644
        %v646 = vadd.f32 %v642, %v645
        %vm647 = vcmask 64512
        %v648 = vsel %vm647, %v646, -inf
        %649 = vmax.xlane.f32.xlu0 %v648
        %v650 = vpop.xlane.xlu0 %649
        %v651 = vsub.f32 %v646, %v650
        %v652 = vmul.f32 %v651, 1.442695
        %v653 = vpow.pop %v652
        %v654 = vsel %vm647, %v653, 0.0
        %655 = vadd.xlane.f32.xlu0 %v654
        %v656 = vpop.xlane.xlu0 %655
        %v657 = vrcp.pop %v656
        %v658 = vmul.f32 %v653, %v657
        %v660 = vsel %vm647, %v658, 0
        %662 = vmatprep.subr.mxu0 0.0
        %663 = vmatpush1.msra.mxu0 %v542
        %664 = vmatprep.subr.mxu0 0.0
        %665 = vmatpush1.msra.mxu0 0.0
        %666 = vmatprep.subr.mxu0 0.0
        %667 = vmatpush1.msra.mxu0 0.0
        %668 = vmatprep.subr.mxu0 0.0
        %669 = vmatpush1.msra.mxu0 0.0
        %670 = vmatprep.subr.mxu0 0.0
        %671 = vmatpush1.msra.mxu0 0.0
        %672 = vmatprep.subr.mxu0 0.0
        %673 = vmatpush1.msra.mxu0 0.0
        %674 = vmatprep.subr.mxu0 0.0
        %675 = vmatpush1.msra.mxu0 0.0
        %676 = vmatprep.subr.mxu0 0.0
        %677 = vmatpush1.msra.mxu0 0.0
        %678 = vmatprep.subr.mxu0 0.0
        %679 = vmatpush1.msra.mxu0 0.0
        %680 = vmatprep.subr.mxu0 0.0
        %681 = vmatpush1.msra.mxu0 0.0
        %682 = vmatprep.subr.mxu0 0.0
        %683 = vmatpush1.msra.mxu0 0.0
        %684 = vmatprep.subr.mxu0 0.0
        %685 = vmatpush1.msra.mxu0 0.0
        %686 = vmatprep.subr.mxu0 0.0
        %687 = vmatpush1.msra.mxu0 0.0
        %688 = vmatprep.subr.mxu0 0.0
        %689 = vmatpush1.msra.mxu0 0.0
        %690 = vmatprep.subr.mxu0 0.0
        %691 = vmatpush1.msra.mxu0 0.0
        %692 = vmatprep.subr.mxu0 0.0
        %693 = vmatpush1.msra.mxu0 0.0
        %694 = vmatprep.subr.mxu0 0.0
        %695 = vmatpush1.msra.mxu0 0.0
        %696 = vmatprep.subr.mxu0 0.0
        %697 = vmatpush1.msra.mxu0 0.0
        %698 = vmatprep.subr.mxu0 0.0
        %699 = vmatpush1.msra.mxu0 0.0
        %700 = vmatprep.subr.mxu0 0.0
        %701 = vmatpush1.msra.mxu0 0.0
        %702 = vmatprep.subr.mxu0 0.0
        %703 = vmatpush1.msra.mxu0 0.0
        %704 = vmatprep.subr.mxu0 0.0
        %705 = vmatpush1.msra.mxu0 0.0
        %706 = vmatprep.subr.mxu0 0.0
        %707 = vmatpush1.msra.mxu0 0.0
        %708 = vmatprep.subr.mxu0 0.0
        %709 = vmatpush1.msra.mxu0 0.0
        %710 = vmatprep.subr.mxu0 0.0
        %711 = vmatpush1.msra.mxu0 0.0
        %712 = vmatprep.subr.mxu0 0.0
        %713 = vmatpush1.msra.mxu0 0.0
        %714 = vmatprep.subr.mxu0 0.0
        %715 = vmatpush1.msra.mxu0 0.0
        %716 = vmatprep.subr.mxu0 0.0
        %717 = vmatpush1.msra.mxu0 0.0
        %718 = vmatprep.subr.mxu0 0.0
        %719 = vmatpush1.msra.mxu0 0.0
        %720 = vmatprep.subr.mxu0 0.0
        %721 = vmatpush1.msra.mxu0 0.0
        %722 = vmatprep.subr.mxu0 0.0
        %723 = vmatpush1.msra.mxu0 0.0
        %724 = vmatprep.subr.mxu0 0.0
        %725 = vmatpush1.msra.mxu0 0.0
        %726 = vmatprep.mubr.f32.mxu0 0.0
        %727 = vmatmul.mubr.f32.gmra.mrb[0].mxu0 %v660
        %v728 = vpop.f32.mrb[0].mxu0
        %v729 = vadd.f32 0.0, %v728
        %v730 = vpop.f32.mrb[0].mxu0
        %731 = vdwg.mxu0
        %732 = vst.msk [vmem:[%s527] sm:$0xff] %vm647, %v729
        %733 = vmatprep.subr.mxu0 0.0
        %734 = vmatpush1.msra.mxu0 %v543
        %735 = vmatprep.subr.mxu0 0.0
        %736 = vmatpush1.msra.mxu0 0.0
        %737 = vmatprep.subr.mxu0 0.0
        %738 = vmatpush1.msra.mxu0 0.0
        %739 = vmatprep.subr.mxu0 0.0
        %740 = vmatpush1.msra.mxu0 0.0
        %741 = vmatprep.subr.mxu0 0.0
        %742 = vmatpush1.msra.mxu0 0.0
        %743 = vmatprep.subr.mxu0 0.0
        %744 = vmatpush1.msra.mxu0 0.0
        %745 = vmatprep.subr.mxu0 0.0
        %746 = vmatpush1.msra.mxu0 0.0
        %747 = vmatprep.subr.mxu0 0.0
        %748 = vmatpush1.msra.mxu0 0.0
        %749 = vmatprep.subr.mxu0 0.0
        %750 = vmatpush1.msra.mxu0 0.0
        %751 = vmatprep.subr.mxu0 0.0
        %752 = vmatpush1.msra.mxu0 0.0
        %753 = vmatprep.subr.mxu0 0.0
        %754 = vmatpush1.msra.mxu0 0.0
        %755 = vmatprep.subr.mxu0 0.0
        %756 = vmatpush1.msra.mxu0 0.0
        %757 = vmatprep.subr.mxu0 0.0
        %758 = vmatpush1.msra.mxu0 0.0
        %759 = vmatprep.subr.mxu0 0.0
        %760 = vmatpush1.msra.mxu0 0.0
        %761 = vmatprep.subr.mxu0 0.0
        %762 = vmatpush1.msra.mxu0 0.0
        %763 = vmatprep.subr.mxu0 0.0
        %764 = vmatpush1.msra.mxu0 0.0
        %765 = vmatprep.subr.mxu0 0.0
        %766 = vmatpush1.msra.mxu0 0.0
        %767 = vmatprep.subr.mxu0 0.0
        %768 = vmatpush1.msra.mxu0 0.0
        %769 = vmatprep.subr.mxu0 0.0
        %770 = vmatpush1.msra.mxu0 0.0
        %771 = vmatprep.subr.mxu0 0.0
        %772 = vmatpush1.msra.mxu0 0.0
        %773 = vmatprep.subr.mxu0 0.0
        %774 = vmatpush1.msra.mxu0 0.0
        %775 = vmatprep.subr.mxu0 0.0
        %776 = vmatpush1.msra.mxu0 0.0
        %777 = vmatprep.subr.mxu0 0.0
        %778 = vmatpush1.msra.mxu0 0.0
        %779 = vmatprep.subr.mxu0 0.0
        %780 = vmatpush1.msra.mxu0 0.0
        %781 = vmatprep.subr.mxu0 0.0
        %782 = vmatpush1.msra.mxu0 0.0
        %783 = vmatprep.subr.mxu0 0.0
        %784 = vmatpush1.msra.mxu0 0.0
        %785 = vmatprep.subr.mxu0 0.0
        %786 = vmatpush1.msra.mxu0 0.0
        %787 = vmatprep.subr.mxu0 0.0
        %788 = vmatpush1.msra.mxu0 0.0
        %789 = vmatprep.subr.mxu0 0.0
        %790 = vmatpush1.msra.mxu0 0.0
        %791 = vmatprep.subr.mxu0 0.0
        %792 = vmatpush1.msra.mxu0 0.0
        %793 = vmatprep.subr.mxu0 0.0
        %794 = vmatpush1.msra.mxu0 0.0
        %795 = vmatprep.subr.mxu0 0.0
        %796 = vmatpush1.msra.mxu0 0.0
        %797 = vmatprep.mubr.f32.mxu0 0.0
        %798 = vmatmul.mubr.f32.gmra.mrb[0].mxu0 %v660
        %v799 = vpop.f32.mrb[0].mxu0
        %v800 = vadd.f32 0.0, %v799
        %v801 = vpop.f32.mrb[0].mxu0
        %802 = vdwg.mxu0
        %vm803 = vcmask 97280
        %804 = vst.msk [vmem:[%s531] sm:$0xff] %vm803, %v800
        %v805 = vmul.f32 %v658, %v544
        %v806 = vmul.f32 %v658, %v545
        %v807 = vmul.f32 %v658, %v546
        %v808 = vmul.f32 %v658, %v547
        %v809 = vmul.f32 %v658, %v548
        %v810 = vmul.f32 %v658, %v549
        %v811 = vmul.f32 %v658, %v550
        %v812 = vmul.f32 %v658, %v551
        %v813 = vsel %vm647, %v805, 0.0
        %814 = vadd.xlane.f32.xlu0 %v813
        %v815 = vpop.xlane.xlu0 %814
        %v816 = vsel %vm647, %v806, 0.0
        %817 = vadd.xlane.f32.xlu0 %v816
        %v818 = vpop.xlane.xlu0 %817
        %v819 = vsel %vm647, %v807, 0.0
        %820 = vadd.xlane.f32.xlu0 %v819
        %v821 = vpop.xlane.xlu0 %820
        %v822 = vsel %vm647, %v808, 0.0
        %823 = vadd.xlane.f32.xlu0 %v822
        %v824 = vpop.xlane.xlu0 %823
        %v825 = vsel %vm647, %v809, 0.0
        %826 = vadd.xlane.f32.xlu0 %v825
        %v827 = vpop.xlane.xlu0 %826
        %v828 = vsel %vm647, %v810, 0.0
        %829 = vadd.xlane.f32.xlu0 %v828
        %v830 = vpop.xlane.xlu0 %829
        %v831 = vsel %vm647, %v811, 0.0
        %832 = vadd.xlane.f32.xlu0 %v831
        %v833 = vpop.xlane.xlu0 %832
        %v834 = vsel %vm647, %v812, 0.0
        %835 = vadd.xlane.f32.xlu0 %v834
        %v836 = vpop.xlane.xlu0 %835
        %v845 = vlaneseq
        %v846 = vand.u32 %v845, 127
        %v847 = vlaneseq
        %v848 = vshrl.u32 %v847, 7
        %v849 = vsub.s32 %v846, %v848
        %v850 = vrot.slane %v815, %v849
        %v851 = vlaneseq
        %v852 = vshrl.u32 %v851, 7
        %v853 = vsub.s32 %v846, %v852
        %v854 = vrot.slane %v818, %v853
        %v855 = vlaneseq
        %v856 = vshrl.u32 %v855, 7
        %v857 = vsub.s32 %v846, %v856
        %v858 = vrot.slane %v821, %v857
        %v859 = vlaneseq
        %v860 = vshrl.u32 %v859, 7
        %v861 = vsub.s32 %v846, %v860
        %v862 = vrot.slane %v824, %v861
        %v863 = vlaneseq
        %v864 = vshrl.u32 %v863, 7
        %v865 = vsub.s32 %v846, %v864
        %v866 = vrot.slane %v827, %v865
        %v867 = vlaneseq
        %v868 = vshrl.u32 %v867, 7
        %v869 = vsub.s32 %v846, %v868
        %v870 = vrot.slane %v830, %v869
        %v871 = vlaneseq
        %v872 = vshrl.u32 %v871, 7
        %v873 = vsub.s32 %v846, %v872
        %v874 = vrot.slane %v833, %v873
        %v875 = vlaneseq
        %v876 = vshrl.u32 %v875, 7
        %v877 = vsub.s32 %v846, %v876
        %v878 = vrot.slane %v836, %v877
        %vm879 = vcmask 1041409
        %v880 = vsel %vm879, %v854, %v850
        %vm881 = vcmask 1042434
        %v882 = vsel %vm881, %v858, %v880
        %vm883 = vcmask 1043459
        %v884 = vsel %vm883, %v862, %v882
        %vm885 = vcmask 1044484
        %v886 = vsel %vm885, %v866, %v884
        %vm887 = vcmask 1045509
        %v888 = vsel %vm887, %v870, %v886
        %vm889 = vcmask 1046534
        %v890 = vsel %vm889, %v874, %v888
        %vm891 = vcmask 1047559
        %v892 = vsel %vm891, %v878, %v890
        %894 = vst.msk [vmem:[%s536] sm:$0xff] %vm647, %v892
        %896 = vrot.lane.b32.xlu0 %v552, 108
        %v897 = vpop.permute.xlu0 %896
        %899 = vrot.lane.b32.xlu0 %v553, 108
        %v900 = vpop.permute.xlu0 %899
        %v902 = vsel %vm554, %v897, 0
        %v905 = vsel %vm554, %v900, 0
        %907 = vmatprep.subr.bf16.mxu0 0
        %908 = vmatpush1.bf16.xpose.msra.mxu0 %v905
        %909 = vmatprep.subr.bf16.mxu0 0
        %910 = vmatpush1.bf16.xpose.msra.mxu0 0
        %911 = vmatprep.subr.bf16.mxu0 0
        %912 = vmatpush1.bf16.xpose.msra.mxu0 0
        %913 = vmatprep.subr.bf16.mxu0 0
        %914 = vmatpush1.bf16.xpose.msra.mxu0 0
        %915 = vmatprep.subr.bf16.mxu0 0
        %916 = vmatpush1.bf16.xpose.msra.mxu0 0
        %917 = vmatprep.subr.bf16.mxu0 0
        %918 = vmatpush1.bf16.xpose.msra.mxu0 0
        %919 = vmatprep.subr.bf16.mxu0 0
        %920 = vmatpush1.bf16.xpose.msra.mxu0 0
        %921 = vmatprep.subr.bf16.mxu0 0
        %922 = vmatpush1.bf16.xpose.msra.mxu0 0
        %923 = vmatprep.subr.bf16.mxu0 0
        %924 = vmatpush1.bf16.xpose.msra.mxu0 0
        %925 = vmatprep.subr.bf16.mxu0 0
        %926 = vmatpush1.bf16.xpose.msra.mxu0 0
        %927 = vmatprep.subr.bf16.mxu0 0
        %928 = vmatpush1.bf16.xpose.msra.mxu0 0
        %929 = vmatprep.subr.bf16.mxu0 0
        %930 = vmatpush1.bf16.xpose.msra.mxu0 0
        %931 = vmatprep.subr.bf16.mxu0 0
        %932 = vmatpush1.bf16.xpose.msra.mxu0 0
        %933 = vmatprep.subr.bf16.mxu0 0
        %934 = vmatpush1.bf16.xpose.msra.mxu0 0
        %935 = vmatprep.subr.bf16.mxu0 0
        %936 = vmatpush1.bf16.xpose.msra.mxu0 0
        %937 = vmatprep.subr.bf16.mxu0 0
        %938 = vmatpush1.bf16.xpose.msra.mxu0 0
        %939 = vmatprep.mubr.bf16.mxu0 0
        %940 = vmatmul.mubr.bf16.gmra.mrb[0].mxu0 %v902
        %v941 = vpop.f32.mrb[0].mxu0
        %v942 = vadd.f32 0.0, %v941
        %v943 = vpop.f32.mrb[0].mxu0
        %v944 = vpop.f32.mrb[0].mxu0
        %v945 = vpop.f32.mrb[0].mxu0
        %946 = vdwg.mxu0
        %947 = vset.pattern.permute.xlu0 1
        %948 = vperm.xlu0 %947, %v540
        %v949 = vpop.permute.xlu0 %948
        %v951 = vsub.f32 %v942, %v949
        %v952 = vlaneseq
        %v953 = vshrl.u32 %v952, 7
        %v954 = vsub.s32 1, %v953
        %v955 = vrot.slane %v541, %v954
        %v956 = vsub.f32 %v951, %v955
        %s957 = sld [smem:[#allocation4 + $0x1]]
        %v958 = vstv %s957
        %v959 = vadd.f32 %v956, %v958
        %s960 = sld [smem:[#allocation2 + $0x1]]
        %v961 = vstv %s960
        %v962 = vmul.f32 %v544, %v961
        %v963 = vadd.f32 %v959, %v962
        %s964 = sld [smem:[#allocation2 + $0x81]]
        %v965 = vstv %s964
        %v966 = vmul.f32 %v545, %v965
        %v967 = vadd.f32 %v963, %v966
        %s968 = sld [smem:[#allocation2 + $0x101]]
        %v969 = vstv %s968
        %v970 = vmul.f32 %v546, %v969
        %v971 = vadd.f32 %v967, %v970
        %s972 = sld [smem:[#allocation2 + $0x181]]
        %v973 = vstv %s972
        %v974 = vmul.f32 %v547, %v973
        %v975 = vadd.f32 %v971, %v974
        %s976 = sld [smem:[#allocation2 + $0x201]]
        %v977 = vstv %s976
        %v978 = vmul.f32 %v548, %v977
        %v979 = vadd.f32 %v975, %v978
        %s980 = sld [smem:[#allocation2 + $0x281]]
        %v981 = vstv %s980
        %v982 = vmul.f32 %v549, %v981
        %v983 = vadd.f32 %v979, %v982
        %s984 = sld [smem:[#allocation2 + $0x301]]
        %v985 = vstv %s984
        %v986 = vmul.f32 %v550, %v985
        %v987 = vadd.f32 %v983, %v986
        %s988 = sld [smem:[#allocation2 + $0x381]]
        %v989 = vstv %s988
        %v990 = vmul.f32 %v551, %v989
        %v991 = vadd.f32 %v987, %v990
        %v992 = vsel %vm647, %v991, -inf
        %993 = vmax.xlane.f32.xlu0 %v992
        %v994 = vpop.xlane.xlu0 %993
        %v995 = vsub.f32 %v991, %v994
        %v996 = vmul.f32 %v995, 1.442695
        %v997 = vpow.pop %v996
        %v998 = vsel %vm647, %v997, 0.0
        %999 = vadd.xlane.f32.xlu0 %v998
        %v1000 = vpop.xlane.xlu0 %999
        %v1001 = vrcp.pop %v1000
        %v1002 = vmul.f32 %v997, %v1001
        %1004 = vrot.lane.b32.xlu0 %v542, 120
        %v1005 = vpop.permute.xlu0 %1004
        %v1008 = vsel %vm647, %v1002, 0
        %1010 = vmatprep.subr.mxu0 0.0
        %1011 = vmatpush1.msra.mxu0 %v1005
        %1012 = vmatprep.subr.mxu0 0.0
        %1013 = vmatpush1.msra.mxu0 0.0
        %1014 = vmatprep.subr.mxu0 0.0
        %1015 = vmatpush1.msra.mxu0 0.0
        %1016 = vmatprep.subr.mxu0 0.0
        %1017 = vmatpush1.msra.mxu0 0.0
        %1018 = vmatprep.subr.mxu0 0.0
        %1019 = vmatpush1.msra.mxu0 0.0
        %1020 = vmatprep.subr.mxu0 0.0
        %1021 = vmatpush1.msra.mxu0 0.0
        %1022 = vmatprep.subr.mxu0 0.0
        %1023 = vmatpush1.msra.mxu0 0.0
        %1024 = vmatprep.subr.mxu0 0.0
        %1025 = vmatpush1.msra.mxu0 0.0
        %1026 = vmatprep.subr.mxu0 0.0
        %1027 = vmatpush1.msra.mxu0 0.0
        %1028 = vmatprep.subr.mxu0 0.0
        %1029 = vmatpush1.msra.mxu0 0.0
        %1030 = vmatprep.subr.mxu0 0.0
        %1031 = vmatpush1.msra.mxu0 0.0
        %1032 = vmatprep.subr.mxu0 0.0
        %1033 = vmatpush1.msra.mxu0 0.0
        %1034 = vmatprep.subr.mxu0 0.0
        %1035 = vmatpush1.msra.mxu0 0.0
        %1036 = vmatprep.subr.mxu0 0.0
        %1037 = vmatpush1.msra.mxu0 0.0
        %1038 = vmatprep.subr.mxu0 0.0
        %1039 = vmatpush1.msra.mxu0 0.0
        %1040 = vmatprep.subr.mxu0 0.0
        %1041 = vmatpush1.msra.mxu0 0.0
        %1042 = vmatprep.subr.mxu0 0.0
        %1043 = vmatpush1.msra.mxu0 0.0
        %1044 = vmatprep.subr.mxu0 0.0
        %1045 = vmatpush1.msra.mxu0 0.0
        %1046 = vmatprep.subr.mxu0 0.0
        %1047 = vmatpush1.msra.mxu0 0.0
        %1048 = vmatprep.subr.mxu0 0.0
        %1049 = vmatpush1.msra.mxu0 0.0
        %1050 = vmatprep.subr.mxu0 0.0
        %1051 = vmatpush1.msra.mxu0 0.0
        %1052 = vmatprep.subr.mxu0 0.0
        %1053 = vmatpush1.msra.mxu0 0.0
        %1054 = vmatprep.subr.mxu0 0.0
        %1055 = vmatpush1.msra.mxu0 0.0
        %1056 = vmatprep.subr.mxu0 0.0
        %1057 = vmatpush1.msra.mxu0 0.0
        %1058 = vmatprep.subr.mxu0 0.0
        %1059 = vmatpush1.msra.mxu0 0.0
        %1060 = vmatprep.subr.mxu0 0.0
        %1061 = vmatpush1.msra.mxu0 0.0
        %1062 = vmatprep.subr.mxu0 0.0
        %1063 = vmatpush1.msra.mxu0 0.0
        %1064 = vmatprep.subr.mxu0 0.0
        %1065 = vmatpush1.msra.mxu0 0.0
        %1066 = vmatprep.subr.mxu0 0.0
        %1067 = vmatpush1.msra.mxu0 0.0
        %1068 = vmatprep.subr.mxu0 0.0
        %1069 = vmatpush1.msra.mxu0 0.0
        %1070 = vmatprep.subr.mxu0 0.0
        %1071 = vmatpush1.msra.mxu0 0.0
        %1072 = vmatprep.subr.mxu0 0.0
        %1073 = vmatpush1.msra.mxu0 0.0
        %1074 = vmatprep.mubr.f32.mxu0 0.0
        %1075 = vmatmul.mubr.f32.gmra.mrb[0].mxu0 %v1008
        %v1076 = vpop.f32.mrb[0].mxu0
        %v1077 = vadd.f32 0.0, %v1076
        %v1078 = vpop.f32.mrb[0].mxu0
        %1079 = vdwg.mxu0
        %1081 = vrot.lane.b32.xlu0 %v1077, 8
        %v1082 = vpop.permute.xlu0 %1081
        %vm1084 = vcmask 130112
        %1085 = vst.msk [vmem:[%s527] sm:$0xff] %vm1084, %v1082
        %1087 = vrot.lane.b32.xlu0 %v543, 116
        %v1088 = vpop.permute.xlu0 %1087
        %1090 = vmatprep.subr.mxu0 0.0
        %1091 = vmatpush1.msra.mxu0 %v1088
        %1092 = vmatprep.subr.mxu0 0.0
        %1093 = vmatpush1.msra.mxu0 0.0
        %1094 = vmatprep.subr.mxu0 0.0
        %1095 = vmatpush1.msra.mxu0 0.0
        %1096 = vmatprep.subr.mxu0 0.0
        %1097 = vmatpush1.msra.mxu0 0.0
        %1098 = vmatprep.subr.mxu0 0.0
        %1099 = vmatpush1.msra.mxu0 0.0
        %1100 = vmatprep.subr.mxu0 0.0
        %1101 = vmatpush1.msra.mxu0 0.0
        %1102 = vmatprep.subr.mxu0 0.0
        %1103 = vmatpush1.msra.mxu0 0.0
        %1104 = vmatprep.subr.mxu0 0.0
        %1105 = vmatpush1.msra.mxu0 0.0
        %1106 = vmatprep.subr.mxu0 0.0
        %1107 = vmatpush1.msra.mxu0 0.0
        %1108 = vmatprep.subr.mxu0 0.0
        %1109 = vmatpush1.msra.mxu0 0.0
        %1110 = vmatprep.subr.mxu0 0.0
        %1111 = vmatpush1.msra.mxu0 0.0
        %1112 = vmatprep.subr.mxu0 0.0
        %1113 = vmatpush1.msra.mxu0 0.0
        %1114 = vmatprep.subr.mxu0 0.0
        %1115 = vmatpush1.msra.mxu0 0.0
        %1116 = vmatprep.subr.mxu0 0.0
        %1117 = vmatpush1.msra.mxu0 0.0
        %1118 = vmatprep.subr.mxu0 0.0
        %1119 = vmatpush1.msra.mxu0 0.0
        %1120 = vmatprep.subr.mxu0 0.0
        %1121 = vmatpush1.msra.mxu0 0.0
        %1122 = vmatprep.subr.mxu0 0.0
        %1123 = vmatpush1.msra.mxu0 0.0
        %1124 = vmatprep.subr.mxu0 0.0
        %1125 = vmatpush1.msra.mxu0 0.0
        %1126 = vmatprep.subr.mxu0 0.0
        %1127 = vmatpush1.msra.mxu0 0.0
        %1128 = vmatprep.subr.mxu0 0.0
        %1129 = vmatpush1.msra.mxu0 0.0
        %1130 = vmatprep.subr.mxu0 0.0
        %1131 = vmatpush1.msra.mxu0 0.0
        %1132 = vmatprep.subr.mxu0 0.0
        %1133 = vmatpush1.msra.mxu0 0.0
        %1134 = vmatprep.subr.mxu0 0.0
        %1135 = vmatpush1.msra.mxu0 0.0
        %1136 = vmatprep.subr.mxu0 0.0
        %1137 = vmatpush1.msra.mxu0 0.0
        %1138 = vmatprep.subr.mxu0 0.0
        %1139 = vmatpush1.msra.mxu0 0.0
        %1140 = vmatprep.subr.mxu0 0.0
        %1141 = vmatpush1.msra.mxu0 0.0
        %1142 = vmatprep.subr.mxu0 0.0
        %1143 = vmatpush1.msra.mxu0 0.0
        %1144 = vmatprep.subr.mxu0 0.0
        %1145 = vmatpush1.msra.mxu0 0.0
        %1146 = vmatprep.subr.mxu0 0.0
        %1147 = vmatpush1.msra.mxu0 0.0
        %1148 = vmatprep.subr.mxu0 0.0
        %1149 = vmatpush1.msra.mxu0 0.0
        %1150 = vmatprep.subr.mxu0 0.0
        %1151 = vmatpush1.msra.mxu0 0.0
        %1152 = vmatprep.subr.mxu0 0.0
        %1153 = vmatpush1.msra.mxu0 0.0
        %1154 = vmatprep.mubr.f32.mxu0 0.0
        %1155 = vmatmul.mubr.f32.gmra.mrb[0].mxu0 %v1008
        %v1156 = vpop.f32.mrb[0].mxu0
        %v1157 = vadd.f32 0.0, %v1156
        %v1158 = vpop.f32.mrb[0].mxu0
        %1159 = vdwg.mxu0
        %1161 = vrot.lane.b32.xlu0 %v1157, 12
        %v1162 = vpop.permute.xlu0 %1161
        %vm1164 = vcmask 195680
        %1165 = vst.msk [vmem:[%s531] sm:$0xff] %vm1164, %v1162
        %v1166 = vmul.f32 %v1002, %v544
        %v1167 = vmul.f32 %v1002, %v545
        %v1168 = vmul.f32 %v1002, %v546
        %v1169 = vmul.f32 %v1002, %v547
        %v1170 = vmul.f32 %v1002, %v548
        %v1171 = vmul.f32 %v1002, %v549
        %v1172 = vmul.f32 %v1002, %v550
        %v1173 = vmul.f32 %v1002, %v551
        %v1174 = vsel %vm647, %v1166, 0.0
        %1175 = vadd.xlane.f32.xlu0 %v1174
        %v1176 = vpop.xlane.xlu0 %1175
        %v1177 = vsel %vm647, %v1167, 0.0
        %1178 = vadd.xlane.f32.xlu0 %v1177
        %v1179 = vpop.xlane.xlu0 %1178
        %v1180 = vsel %vm647, %v1168, 0.0
        %1181 = vadd.xlane.f32.xlu0 %v1180
        %v1182 = vpop.xlane.xlu0 %1181
        %v1183 = vsel %vm647, %v1169, 0.0
        %1184 = vadd.xlane.f32.xlu0 %v1183
        %v1185 = vpop.xlane.xlu0 %1184
        %v1186 = vsel %vm647, %v1170, 0.0
        %1187 = vadd.xlane.f32.xlu0 %v1186
        %v1188 = vpop.xlane.xlu0 %1187
        %v1189 = vsel %vm647, %v1171, 0.0
        %1190 = vadd.xlane.f32.xlu0 %v1189
        %v1191 = vpop.xlane.xlu0 %1190
        %v1192 = vsel %vm647, %v1172, 0.0
        %1193 = vadd.xlane.f32.xlu0 %v1192
        %v1194 = vpop.xlane.xlu0 %1193
        %v1195 = vsel %vm647, %v1173, 0.0
        %1196 = vadd.xlane.f32.xlu0 %v1195
        %v1197 = vpop.xlane.xlu0 %1196
        %v1206 = vlaneseq
        %v1207 = vshrl.u32 %v1206, 7
        %v1208 = vsub.s32 %v846, %v1207
        %v1209 = vrot.slane %v1176, %v1208
        %v1210 = vlaneseq
        %v1211 = vshrl.u32 %v1210, 7
        %v1212 = vsub.s32 %v846, %v1211
        %v1213 = vrot.slane %v1179, %v1212
        %v1214 = vlaneseq
        %v1215 = vshrl.u32 %v1214, 7
        %v1216 = vsub.s32 %v846, %v1215
        %v1217 = vrot.slane %v1182, %v1216
        %v1218 = vlaneseq
        %v1219 = vshrl.u32 %v1218, 7
        %v1220 = vsub.s32 %v846, %v1219
        %v1221 = vrot.slane %v1185, %v1220
        %v1222 = vlaneseq
        %v1223 = vshrl.u32 %v1222, 7
        %v1224 = vsub.s32 %v846, %v1223
        %v1225 = vrot.slane %v1188, %v1224
        %v1226 = vlaneseq
        %v1227 = vshrl.u32 %v1226, 7
        %v1228 = vsub.s32 %v846, %v1227
        %v1229 = vrot.slane %v1191, %v1228
        %v1230 = vlaneseq
        %v1231 = vshrl.u32 %v1230, 7
        %v1232 = vsub.s32 %v846, %v1231
        %v1233 = vrot.slane %v1194, %v1232
        %v1234 = vlaneseq
        %v1235 = vshrl.u32 %v1234, 7
        %v1236 = vsub.s32 %v846, %v1235
        %v1237 = vrot.slane %v1197, %v1236
        %v1238 = vsel %vm879, %v1213, %v1209
        %v1239 = vsel %vm881, %v1217, %v1238
        %v1240 = vsel %vm883, %v1221, %v1239
        %v1241 = vsel %vm885, %v1225, %v1240
        %v1242 = vsel %vm887, %v1229, %v1241
        %v1243 = vsel %vm889, %v1233, %v1242
        %v1244 = vsel %vm891, %v1237, %v1243
        %1246 = vst.msk [vmem:[%s536 + $0x8] sm:$0xff] %vm647, %v1244
        %1247 = vrot.lane.b32.xlu0 %v552, 88
        %v1248 = vpop.permute.xlu0 %1247
        %1249 = vrot.lane.b32.xlu0 %v553, 88
        %v1250 = vpop.permute.xlu0 %1249
        %v1252 = vsel %vm554, %v1248, 0
        %v1255 = vsel %vm554, %v1250, 0
        %1257 = vmatprep.subr.bf16.mxu0 0
        %1258 = vmatpush1.bf16.xpose.msra.mxu0 %v1255
        %1259 = vmatprep.subr.bf16.mxu0 0
        %1260 = vmatpush1.bf16.xpose.msra.mxu0 0
        %1261 = vmatprep.subr.bf16.mxu0 0
        %1262 = vmatpush1.bf16.xpose.msra.mxu0 0
        %1263 = vmatprep.subr.bf16.mxu0 0
        %1264 = vmatpush1.bf16.xpose.msra.mxu0 0
        %1265 = vmatprep.subr.bf16.mxu0 0
        %1266 = vmatpush1.bf16.xpose.msra.mxu0 0
        %1267 = vmatprep.subr.bf16.mxu0 0
        %1268 = vmatpush1.bf16.xpose.msra.mxu0 0
        %1269 = vmatprep.subr.bf16.mxu0 0
        %1270 = vmatpush1.bf16.xpose.msra.mxu0 0
        %1271 = vmatprep.subr.bf16.mxu0 0
        %1272 = vmatpush1.bf16.xpose.msra.mxu0 0
        %1273 = vmatprep.subr.bf16.mxu0 0
        %1274 = vmatpush1.bf16.xpose.msra.mxu0 0
        %1275 = vmatprep.subr.bf16.mxu0 0
        %1276 = vmatpush1.bf16.xpose.msra.mxu0 0
        %1277 = vmatprep.subr.bf16.mxu0 0
        %1278 = vmatpush1.bf16.xpose.msra.mxu0 0
        %1279 = vmatprep.subr.bf16.mxu0 0
        %1280 = vmatpush1.bf16.xpose.msra.mxu0 0
        %1281 = vmatprep.subr.bf16.mxu0 0
        %1282 = vmatpush1.bf16.xpose.msra.mxu0 0
        %1283 = vmatprep.subr.bf16.mxu0 0
        %1284 = vmatpush1.bf16.xpose.msra.mxu0 0
        %1285 = vmatprep.subr.bf16.mxu0 0
        %1286 = vmatpush1.bf16.xpose.msra.mxu0 0
        %1287 = vmatprep.subr.bf16.mxu0 0
        %1288 = vmatpush1.bf16.xpose.msra.mxu0 0
        %1289 = vmatprep.mubr.bf16.mxu0 0
        %1290 = vmatmul.mubr.bf16.gmra.mrb[0].mxu0 %v1252
        %v1291 = vpop.f32.mrb[0].mxu0
        %v1292 = vadd.f32 0.0, %v1291
        %v1293 = vpop.f32.mrb[0].mxu0
        %v1294 = vpop.f32.mrb[0].mxu0
        %v1295 = vpop.f32.mrb[0].mxu0
        %1296 = vdwg.mxu0
        %1297 = vset.pattern.permute.xlu0 2
        %1298 = vperm.xlu0 %1297, %v540
        %v1299 = vpop.permute.xlu0 %1298
        %v1301 = vsub.f32 %v1292, %v1299
        %v1302 = vlaneseq
        %v1303 = vshrl.u32 %v1302, 7
        %v1304 = vsub.s32 2, %v1303
        %v1305 = vrot.slane %v541, %v1304
        %v1306 = vsub.f32 %v1301, %v1305
        %s1307 = sld [smem:[#allocation4 + $0x2]]
        %v1308 = vstv %s1307
        %v1309 = vadd.f32 %v1306, %v1308
        %s1310 = sld [smem:[#allocation2 + $0x2]]
        %v1311 = vstv %s1310
        %v1312 = vmul.f32 %v544, %v1311
        %v1313 = vadd.f32 %v1309, %v1312
        %s1314 = sld [smem:[#allocation2 + $0x82]]
        %v1315 = vstv %s1314
        %v1316 = vmul.f32 %v545, %v1315
        %v1317 = vadd.f32 %v1313, %v1316
        %s1318 = sld [smem:[#allocation2 + $0x102]]
        %v1319 = vstv %s1318
        %v1320 = vmul.f32 %v546, %v1319
        %v1321 = vadd.f32 %v1317, %v1320
        %s1322 = sld [smem:[#allocation2 + $0x182]]
        %v1323 = vstv %s1322
        %v1324 = vmul.f32 %v547, %v1323
        %v1325 = vadd.f32 %v1321, %v1324
        %s1326 = sld [smem:[#allocation2 + $0x202]]
        %v1327 = vstv %s1326
        %v1328 = vmul.f32 %v548, %v1327
        %v1329 = vadd.f32 %v1325, %v1328
        %s1330 = sld [smem:[#allocation2 + $0x282]]
        %v1331 = vstv %s1330
        %v1332 = vmul.f32 %v549, %v1331
        %v1333 = vadd.f32 %v1329, %v1332
        %s1334 = sld [smem:[#allocation2 + $0x302]]
        %v1335 = vstv %s1334
        %v1336 = vmul.f32 %v550, %v1335
        %v1337 = vadd.f32 %v1333, %v1336
        %s1338 = sld [smem:[#allocation2 + $0x382]]
        %v1339 = vstv %s1338
        %v1340 = vmul.f32 %v551, %v1339
        %v1341 = vadd.f32 %v1337, %v1340
        %v1342 = vsel %vm647, %v1341, -inf
        %1343 = vmax.xlane.f32.xlu0 %v1342
        %v1344 = vpop.xlane.xlu0 %1343
        %v1345 = vsub.f32 %v1341, %v1344
        %v1346 = vmul.f32 %v1345, 1.442695
        %v1347 = vpow.pop %v1346
        %v1348 = vsel %vm647, %v1347, 0.0
        %1349 = vadd.xlane.f32.xlu0 %v1348
        %v1350 = vpop.xlane.xlu0 %1349
        %v1351 = vrcp.pop %v1350
        %v1352 = vmul.f32 %v1347, %v1351
        %1353 = vrot.lane.b32.xlu0 %v542, 112
        %v1354 = vpop.permute.xlu0 %1353
        %v1357 = vsel %vm647, %v1352, 0
        %1359 = vmatprep.subr.mxu0 0.0
        %1360 = vmatpush1.msra.mxu0 %v1354
        %1361 = vmatprep.subr.mxu0 0.0
        %1362 = vmatpush1.msra.mxu0 0.0
        %1363 = vmatprep.subr.mxu0 0.0
        %1364 = vmatpush1.msra.mxu0 0.0
        %1365 = vmatprep.subr.mxu0 0.0
        %1366 = vmatpush1.msra.mxu0 0.0
        %1367 = vmatprep.subr.mxu0 0.0
        %1368 = vmatpush1.msra.mxu0 0.0
        %1369 = vmatprep.subr.mxu0 0.0
        %1370 = vmatpush1.msra.mxu0 0.0
        %1371 = vmatprep.subr.mxu0 0.0
        %1372 = vmatpush1.msra.mxu0 0.0
        %1373 = vmatprep.subr.mxu0 0.0
        %1374 = vmatpush1.msra.mxu0 0.0
        %1375 = vmatprep.subr.mxu0 0.0
        %1376 = vmatpush1.msra.mxu0 0.0
        %1377 = vmatprep.subr.mxu0 0.0
        %1378 = vmatpush1.msra.mxu0 0.0
        %1379 = vmatprep.subr.mxu0 0.0
        %1380 = vmatpush1.msra.mxu0 0.0
        %1381 = vmatprep.subr.mxu0 0.0
        %1382 = vmatpush1.msra.mxu0 0.0
        %1383 = vmatprep.subr.mxu0 0.0
        %1384 = vmatpush1.msra.mxu0 0.0
        %1385 = vmatprep.subr.mxu0 0.0
        %1386 = vmatpush1.msra.mxu0 0.0
        %1387 = vmatprep.subr.mxu0 0.0
        %1388 = vmatpush1.msra.mxu0 0.0
        %1389 = vmatprep.subr.mxu0 0.0
        %1390 = vmatpush1.msra.mxu0 0.0
        %1391 = vmatprep.subr.mxu0 0.0
        %1392 = vmatpush1.msra.mxu0 0.0
        %1393 = vmatprep.subr.mxu0 0.0
        %1394 = vmatpush1.msra.mxu0 0.0
        %1395 = vmatprep.subr.mxu0 0.0
        %1396 = vmatpush1.msra.mxu0 0.0
        %1397 = vmatprep.subr.mxu0 0.0
        %1398 = vmatpush1.msra.mxu0 0.0
        %1399 = vmatprep.subr.mxu0 0.0
        %1400 = vmatpush1.msra.mxu0 0.0
        %1401 = vmatprep.subr.mxu0 0.0
        %1402 = vmatpush1.msra.mxu0 0.0
        %1403 = vmatprep.subr.mxu0 0.0
        %1404 = vmatpush1.msra.mxu0 0.0
        %1405 = vmatprep.subr.mxu0 0.0
        %1406 = vmatpush1.msra.mxu0 0.0
        %1407 = vmatprep.subr.mxu0 0.0
        %1408 = vmatpush1.msra.mxu0 0.0
        %1409 = vmatprep.subr.mxu0 0.0
        %1410 = vmatpush1.msra.mxu0 0.0
        %1411 = vmatprep.subr.mxu0 0.0
        %1412 = vmatpush1.msra.mxu0 0.0
        %1413 = vmatprep.subr.mxu0 0.0
        %1414 = vmatpush1.msra.mxu0 0.0
        %1415 = vmatprep.subr.mxu0 0.0
        %1416 = vmatpush1.msra.mxu0 0.0
        %1417 = vmatprep.subr.mxu0 0.0
        %1418 = vmatpush1.msra.mxu0 0.0
        %1419 = vmatprep.subr.mxu0 0.0
        %1420 = vmatpush1.msra.mxu0 0.0
        %1421 = vmatprep.subr.mxu0 0.0
        %1422 = vmatpush1.msra.mxu0 0.0
        %1423 = vmatprep.mubr.f32.mxu0 0.0
        %1424 = vmatmul.mubr.f32.gmra.mrb[0].mxu0 %v1357
        %v1425 = vpop.f32.mrb[0].mxu0
        %v1426 = vadd.f32 0.0, %v1425
        %v1427 = vpop.f32.mrb[0].mxu0
        %1428 = vdwg.mxu0
        %1430 = vrot.lane.b32.xlu0 %v1426, 16
        %v1431 = vpop.permute.xlu0 %1430
        %vm1433 = vcmask 195712
        %1434 = vst.msk [vmem:[%s527] sm:$0xff] %vm1433, %v1431
        %1435 = vrot.lane.b32.xlu0 %v543, 104
        %v1436 = vpop.permute.xlu0 %1435
        %1438 = vmatprep.subr.mxu0 0.0
        %1439 = vmatpush1.msra.mxu0 %v1436
        %1440 = vmatprep.subr.mxu0 0.0
        %1441 = vmatpush1.msra.mxu0 0.0
        %1442 = vmatprep.subr.mxu0 0.0
        %1443 = vmatpush1.msra.mxu0 0.0
        %1444 = vmatprep.subr.mxu0 0.0
        %1445 = vmatpush1.msra.mxu0 0.0
        %1446 = vmatprep.subr.mxu0 0.0
        %1447 = vmatpush1.msra.mxu0 0.0
        %1448 = vmatprep.subr.mxu0 0.0
        %1449 = vmatpush1.msra.mxu0 0.0
        %1450 = vmatprep.subr.mxu0 0.0
        %1451 = vmatpush1.msra.mxu0 0.0
        %1452 = vmatprep.subr.mxu0 0.0
        %1453 = vmatpush1.msra.mxu0 0.0
        %1454 = vmatprep.subr.mxu0 0.0
        %1455 = vmatpush1.msra.mxu0 0.0
        %1456 = vmatprep.subr.mxu0 0.0
        %1457 = vmatpush1.msra.mxu0 0.0
        %1458 = vmatprep.subr.mxu0 0.0
        %1459 = vmatpush1.msra.mxu0 0.0
        %1460 = vmatprep.subr.mxu0 0.0
        %1461 = vmatpush1.msra.mxu0 0.0
        %1462 = vmatprep.subr.mxu0 0.0
        %1463 = vmatpush1.msra.mxu0 0.0
        %1464 = vmatprep.subr.mxu0 0.0
        %1465 = vmatpush1.msra.mxu0 0.0
        %1466 = vmatprep.subr.mxu0 0.0
        %1467 = vmatpush1.msra.mxu0 0.0
        %1468 = vmatprep.subr.mxu0 0.0
        %1469 = vmatpush1.msra.mxu0 0.0
        %1470 = vmatprep.subr.mxu0 0.0
        %1471 = vmatpush1.msra.mxu0 0.0
        %1472 = vmatprep.subr.mxu0 0.0
        %1473 = vmatpush1.msra.mxu0 0.0
        %1474 = vmatprep.subr.mxu0 0.0
        %1475 = vmatpush1.msra.mxu0 0.0
        %1476 = vmatprep.subr.mxu0 0.0
        %1477 = vmatpush1.msra.mxu0 0.0
        %1478 = vmatprep.subr.mxu0 0.0
        %1479 = vmatpush1.msra.mxu0 0.0
        %1480 = vmatprep.subr.mxu0 0.0
        %1481 = vmatpush1.msra.mxu0 0.0
        %1482 = vmatprep.subr.mxu0 0.0
        %1483 = vmatpush1.msra.mxu0 0.0
        %1484 = vmatprep.subr.mxu0 0.0
        %1485 = vmatpush1.msra.mxu0 0.0
        %1486 = vmatprep.subr.mxu0 0.0
        %1487 = vmatpush1.msra.mxu0 0.0
        %1488 = vmatprep.subr.mxu0 0.0
        %1489 = vmatpush1.msra.mxu0 0.0
        %1490 = vmatprep.subr.mxu0 0.0
        %1491 = vmatpush1.msra.mxu0 0.0
        %1492 = vmatprep.subr.mxu0 0.0
        %1493 = vmatpush1.msra.mxu0 0.0
        %1494 = vmatprep.subr.mxu0 0.0
        %1495 = vmatpush1.msra.mxu0 0.0
        %1496 = vmatprep.subr.mxu0 0.0
        %1497 = vmatpush1.msra.mxu0 0.0
        %1498 = vmatprep.subr.mxu0 0.0
        %1499 = vmatpush1.msra.mxu0 0.0
        %1500 = vmatprep.subr.mxu0 0.0
        %1501 = vmatpush1.msra.mxu0 0.0
        %1502 = vmatprep.mubr.f32.mxu0 0.0
        %1503 = vmatmul.mubr.f32.gmra.mrb[0].mxu0 %v1357
        %v1504 = vpop.f32.mrb[0].mxu0
        %v1505 = vadd.f32 0.0, %v1504
        %v1506 = vpop.f32.mrb[0].mxu0
        %1507 = vdwg.mxu0
        %1509 = vrot.lane.b32.xlu0 %v1505, 24
        %v1510 = vpop.permute.xlu0 %1509
        %vm1512 = vcmask 294080
        %1513 = vst.msk [vmem:[%s531] sm:$0xff] %vm1512, %v1510
        %v1514 = vmul.f32 %v1352, %v544
        %v1515 = vmul.f32 %v1352, %v545
        %v1516 = vmul.f32 %v1352, %v546
        %v1517 = vmul.f32 %v1352, %v547
        %v1518 = vmul.f32 %v1352, %v548
        %v1519 = vmul.f32 %v1352, %v549
        %v1520 = vmul.f32 %v1352, %v550
        %v1521 = vmul.f32 %v1352, %v551
        %v1522 = vsel %vm647, %v1514, 0.0
        %1523 = vadd.xlane.f32.xlu0 %v1522
        %v1524 = vpop.xlane.xlu0 %1523
        %v1525 = vsel %vm647, %v1515, 0.0
        %1526 = vadd.xlane.f32.xlu0 %v1525
        %v1527 = vpop.xlane.xlu0 %1526
        %v1528 = vsel %vm647, %v1516, 0.0
        %1529 = vadd.xlane.f32.xlu0 %v1528
        %v1530 = vpop.xlane.xlu0 %1529
        %v1531 = vsel %vm647, %v1517, 0.0
        %1532 = vadd.xlane.f32.xlu0 %v1531
        %v1533 = vpop.xlane.xlu0 %1532
        %v1534 = vsel %vm647, %v1518, 0.0
        %1535 = vadd.xlane.f32.xlu0 %v1534
        %v1536 = vpop.xlane.xlu0 %1535
        %v1537 = vsel %vm647, %v1519, 0.0
        %1538 = vadd.xlane.f32.xlu0 %v1537
        %v1539 = vpop.xlane.xlu0 %1538
        %v1540 = vsel %vm647, %v1520, 0.0
        %1541 = vadd.xlane.f32.xlu0 %v1540
        %v1542 = vpop.xlane.xlu0 %1541
        %v1543 = vsel %vm647, %v1521, 0.0
        %1544 = vadd.xlane.f32.xlu0 %v1543
        %v1545 = vpop.xlane.xlu0 %1544
        %v1554 = vlaneseq
        %v1555 = vshrl.u32 %v1554, 7
        %v1556 = vsub.s32 %v846, %v1555
        %v1557 = vrot.slane %v1524, %v1556
        %v1558 = vlaneseq
        %v1559 = vshrl.u32 %v1558, 7
        %v1560 = vsub.s32 %v846, %v1559
        %v1561 = vrot.slane %v1527, %v1560
        %v1562 = vlaneseq
        %v1563 = vshrl.u32 %v1562, 7
        %v1564 = vsub.s32 %v846, %v1563
        %v1565 = vrot.slane %v1530, %v1564
        %v1566 = vlaneseq
        %v1567 = vshrl.u32 %v1566, 7
        %v1568 = vsub.s32 %v846, %v1567
        %v1569 = vrot.slane %v1533, %v1568
        %v1570 = vlaneseq
        %v1571 = vshrl.u32 %v1570, 7
        %v1572 = vsub.s32 %v846, %v1571
        %v1573 = vrot.slane %v1536, %v1572
        %v1574 = vlaneseq
        %v1575 = vshrl.u32 %v1574, 7
        %v1576 = vsub.s32 %v846, %v1575
        %v1577 = vrot.slane %v1539, %v1576
        %v1578 = vlaneseq
        %v1579 = vshrl.u32 %v1578, 7
        %v1580 = vsub.s32 %v846, %v1579
        %v1581 = vrot.slane %v1542, %v1580
        %v1582 = vlaneseq
        %v1583 = vshrl.u32 %v1582, 7
        %v1584 = vsub.s32 %v846, %v1583
        %v1585 = vrot.slane %v1545, %v1584
        %v1586 = vsel %vm879, %v1561, %v1557
        %v1587 = vsel %vm881, %v1565, %v1586
        %v1588 = vsel %vm883, %v1569, %v1587
        %v1589 = vsel %vm885, %v1573, %v1588
        %v1590 = vsel %vm887, %v1577, %v1589
        %v1591 = vsel %vm889, %v1581, %v1590
        %v1592 = vsel %vm891, %v1585, %v1591
        %1594 = vst.msk [vmem:[%s536 + $0x10] sm:$0xff] %vm647, %v1592
        %1595 = vrot.lane.b32.xlu0 %v552, 68
        %v1596 = vpop.permute.xlu0 %1595
        %1597 = vrot.lane.b32.xlu0 %v553, 68
        %v1598 = vpop.permute.xlu0 %1597
        %v1600 = vsel %vm554, %v1596, 0
        %v1603 = vsel %vm554, %v1598, 0
        %1605 = vmatprep.subr.bf16.mxu0 0
        %1606 = vmatpush1.bf16.xpose.msra.mxu0 %v1603
        %1607 = vmatprep.subr.bf16.mxu0 0
        %1608 = vmatpush1.bf16.xpose.msra.mxu0 0
        %1609 = vmatprep.subr.bf16.mxu0 0
        %1610 = vmatpush1.bf16.xpose.msra.mxu0 0
        %1611 = vmatprep.subr.bf16.mxu0 0
        %1612 = vmatpush1.bf16.xpose.msra.mxu0 0
        %1613 = vmatprep.subr.bf16.mxu0 0
        %1614 = vmatpush1.bf16.xpose.msra.mxu0 0
        %1615 = vmatprep.subr.bf16.mxu0 0
        %1616 = vmatpush1.bf16.xpose.msra.mxu0 0
        %1617 = vmatprep.subr.bf16.mxu0 0
        %1618 = vmatpush1.bf16.xpose.msra.mxu0 0
        %1619 = vmatprep.subr.bf16.mxu0 0
        %1620 = vmatpush1.bf16.xpose.msra.mxu0 0
        %1621 = vmatprep.subr.bf16.mxu0 0
        %1622 = vmatpush1.bf16.xpose.msra.mxu0 0
        %1623 = vmatprep.subr.bf16.mxu0 0
        %1624 = vmatpush1.bf16.xpose.msra.mxu0 0
        %1625 = vmatprep.subr.bf16.mxu0 0
        %1626 = vmatpush1.bf16.xpose.msra.mxu0 0
        %1627 = vmatprep.subr.bf16.mxu0 0
        %1628 = vmatpush1.bf16.xpose.msra.mxu0 0
        %1629 = vmatprep.subr.bf16.mxu0 0
        %1630 = vmatpush1.bf16.xpose.msra.mxu0 0
        %1631 = vmatprep.subr.bf16.mxu0 0
        %1632 = vmatpush1.bf16.xpose.msra.mxu0 0
        %1633 = vmatprep.subr.bf16.mxu0 0
        %1634 = vmatpush1.bf16.xpose.msra.mxu0 0
        %1635 = vmatprep.subr.bf16.mxu0 0
        %1636 = vmatpush1.bf16.xpose.msra.mxu0 0
        %1637 = vmatprep.mubr.bf16.mxu0 0
        %1638 = vmatmul.mubr.bf16.gmra.mrb[0].mxu0 %v1600
        %v1639 = vpop.f32.mrb[0].mxu0
        %v1640 = vadd.f32 0.0, %v1639
        %v1641 = vpop.f32.mrb[0].mxu0
        %v1642 = vpop.f32.mrb[0].mxu0
        %v1643 = vpop.f32.mrb[0].mxu0
        %1644 = vdwg.mxu0
        %1645 = vset.pattern.permute.xlu0 3
        %1646 = vperm.xlu0 %1645, %v540
        %v1647 = vpop.permute.xlu0 %1646
        %v1649 = vsub.f32 %v1640, %v1647
        %v1650 = vlaneseq
        %v1651 = vshrl.u32 %v1650, 7
        %v1652 = vsub.s32 3, %v1651
        %v1653 = vrot.slane %v541, %v1652
        %v1654 = vsub.f32 %v1649, %v1653
        %s1655 = sld [smem:[#allocation4 + $0x3]]
        %v1656 = vstv %s1655
        %v1657 = vadd.f32 %v1654, %v1656
        %s1658 = sld [smem:[#allocation2 + $0x3]]
        %v1659 = vstv %s1658
        %v1660 = vmul.f32 %v544, %v1659
        %v1661 = vadd.f32 %v1657, %v1660
        %s1662 = sld [smem:[#allocation2 + $0x83]]
        %v1663 = vstv %s1662
        %v1664 = vmul.f32 %v545, %v1663
        %v1665 = vadd.f32 %v1661, %v1664
        %s1666 = sld [smem:[#allocation2 + $0x103]]
        %v1667 = vstv %s1666
        %v1668 = vmul.f32 %v546, %v1667
        %v1669 = vadd.f32 %v1665, %v1668
        %s1670 = sld [smem:[#allocation2 + $0x183]]
        %v1671 = vstv %s1670
        %v1672 = vmul.f32 %v547, %v1671
        %v1673 = vadd.f32 %v1669, %v1672
        %s1674 = sld [smem:[#allocation2 + $0x203]]
        %v1675 = vstv %s1674
        %v1676 = vmul.f32 %v548, %v1675
        %v1677 = vadd.f32 %v1673, %v1676
        %s1678 = sld [smem:[#allocation2 + $0x283]]
        %v1679 = vstv %s1678
        %v1680 = vmul.f32 %v549, %v1679
        %v1681 = vadd.f32 %v1677, %v1680
        %s1682 = sld [smem:[#allocation2 + $0x303]]
        %v1683 = vstv %s1682
        %v1684 = vmul.f32 %v550, %v1683
        %v1685 = vadd.f32 %v1681, %v1684
        %s1686 = sld [smem:[#allocation2 + $0x383]]
        %v1687 = vstv %s1686
        %v1688 = vmul.f32 %v551, %v1687
        %v1689 = vadd.f32 %v1685, %v1688
        %v1690 = vsel %vm647, %v1689, -inf
        %1691 = vmax.xlane.f32.xlu0 %v1690
        %v1692 = vpop.xlane.xlu0 %1691
        %v1693 = vsub.f32 %v1689, %v1692
        %v1694 = vmul.f32 %v1693, 1.442695
        %v1695 = vpow.pop %v1694
        %v1696 = vsel %vm647, %v1695, 0.0
        %1697 = vadd.xlane.f32.xlu0 %v1696
        %v1698 = vpop.xlane.xlu0 %1697
        %v1699 = vrcp.pop %v1698
        %v1700 = vmul.f32 %v1695, %v1699
        %1701 = vrot.lane.b32.xlu0 %v542, 104
        %v1702 = vpop.permute.xlu0 %1701
        %v1705 = vsel %vm647, %v1700, 0
        %1707 = vmatprep.subr.mxu0 0.0
        %1708 = vmatpush1.msra.mxu0 %v1702
        %1709 = vmatprep.subr.mxu0 0.0
        %1710 = vmatpush1.msra.mxu0 0.0
        %1711 = vmatprep.subr.mxu0 0.0
        %1712 = vmatpush1.msra.mxu0 0.0
        %1713 = vmatprep.subr.mxu0 0.0
        %1714 = vmatpush1.msra.mxu0 0.0
        %1715 = vmatprep.subr.mxu0 0.0
        %1716 = vmatpush1.msra.mxu0 0.0
        %1717 = vmatprep.subr.mxu0 0.0
        %1718 = vmatpush1.msra.mxu0 0.0
        %1719 = vmatprep.subr.mxu0 0.0
        %1720 = vmatpush1.msra.mxu0 0.0
        %1721 = vmatprep.subr.mxu0 0.0
        %1722 = vmatpush1.msra.mxu0 0.0
        %1723 = vmatprep.subr.mxu0 0.0
        %1724 = vmatpush1.msra.mxu0 0.0
        %1725 = vmatprep.subr.mxu0 0.0
        %1726 = vmatpush1.msra.mxu0 0.0
        %1727 = vmatprep.subr.mxu0 0.0
        %1728 = vmatpush1.msra.mxu0 0.0
        %1729 = vmatprep.subr.mxu0 0.0
        %1730 = vmatpush1.msra.mxu0 0.0
        %1731 = vmatprep.subr.mxu0 0.0
        %1732 = vmatpush1.msra.mxu0 0.0
        %1733 = vmatprep.subr.mxu0 0.0
        %1734 = vmatpush1.msra.mxu0 0.0
        %1735 = vmatprep.subr.mxu0 0.0
        %1736 = vmatpush1.msra.mxu0 0.0
        %1737 = vmatprep.subr.mxu0 0.0
        %1738 = vmatpush1.msra.mxu0 0.0
        %1739 = vmatprep.subr.mxu0 0.0
        %1740 = vmatpush1.msra.mxu0 0.0
        %1741 = vmatprep.subr.mxu0 0.0
        %1742 = vmatpush1.msra.mxu0 0.0
        %1743 = vmatprep.subr.mxu0 0.0
        %1744 = vmatpush1.msra.mxu0 0.0
        %1745 = vmatprep.subr.mxu0 0.0
        %1746 = vmatpush1.msra.mxu0 0.0
        %1747 = vmatprep.subr.mxu0 0.0
        %1748 = vmatpush1.msra.mxu0 0.0
        %1749 = vmatprep.subr.mxu0 0.0
        %1750 = vmatpush1.msra.mxu0 0.0
        %1751 = vmatprep.subr.mxu0 0.0
        %1752 = vmatpush1.msra.mxu0 0.0
        %1753 = vmatprep.subr.mxu0 0.0
        %1754 = vmatpush1.msra.mxu0 0.0
        %1755 = vmatprep.subr.mxu0 0.0
        %1756 = vmatpush1.msra.mxu0 0.0
        %1757 = vmatprep.subr.mxu0 0.0
        %1758 = vmatpush1.msra.mxu0 0.0
        %1759 = vmatprep.subr.mxu0 0.0
        %1760 = vmatpush1.msra.mxu0 0.0
        %1761 = vmatprep.subr.mxu0 0.0
        %1762 = vmatpush1.msra.mxu0 0.0
        %1763 = vmatprep.subr.mxu0 0.0
        %1764 = vmatpush1.msra.mxu0 0.0
        %1765 = vmatprep.subr.mxu0 0.0
        %1766 = vmatpush1.msra.mxu0 0.0
        %1767 = vmatprep.subr.mxu0 0.0
        %1768 = vmatpush1.msra.mxu0 0.0
        %1769 = vmatprep.subr.mxu0 0.0
        %1770 = vmatpush1.msra.mxu0 0.0
        %1771 = vmatprep.mubr.f32.mxu0 0.0
        %1772 = vmatmul.mubr.f32.gmra.mrb[0].mxu0 %v1705
        %v1773 = vpop.f32.mrb[0].mxu0
        %v1774 = vadd.f32 0.0, %v1773
        %v1775 = vpop.f32.mrb[0].mxu0
        %1776 = vdwg.mxu0
        %1778 = vrot.lane.b32.xlu0 %v1774, 24
        %v1779 = vpop.permute.xlu0 %1778
        %vm1781 = vcmask 261312
        %1782 = vst.msk [vmem:[%s527] sm:$0xff] %vm1781, %v1779
        %1783 = vrot.lane.b32.xlu0 %v543, 92
        %v1784 = vpop.permute.xlu0 %1783
        %1786 = vmatprep.subr.mxu0 0.0
        %1787 = vmatpush1.msra.mxu0 %v1784
        %1788 = vmatprep.subr.mxu0 0.0
        %1789 = vmatpush1.msra.mxu0 0.0
        %1790 = vmatprep.subr.mxu0 0.0
        %1791 = vmatpush1.msra.mxu0 0.0
        %1792 = vmatprep.subr.mxu0 0.0
        %1793 = vmatpush1.msra.mxu0 0.0
        %1794 = vmatprep.subr.mxu0 0.0
        %1795 = vmatpush1.msra.mxu0 0.0
        %1796 = vmatprep.subr.mxu0 0.0
        %1797 = vmatpush1.msra.mxu0 0.0
        %1798 = vmatprep.subr.mxu0 0.0
        %1799 = vmatpush1.msra.mxu0 0.0
        %1800 = vmatprep.subr.mxu0 0.0
        %1801 = vmatpush1.msra.mxu0 0.0
        %1802 = vmatprep.subr.mxu0 0.0
        %1803 = vmatpush1.msra.mxu0 0.0
        %1804 = vmatprep.subr.mxu0 0.0
        %1805 = vmatpush1.msra.mxu0 0.0
        %1806 = vmatprep.subr.mxu0 0.0
        %1807 = vmatpush1.msra.mxu0 0.0
        %1808 = vmatprep.subr.mxu0 0.0
        %1809 = vmatpush1.msra.mxu0 0.0
        %1810 = vmatprep.subr.mxu0 0.0
        %1811 = vmatpush1.msra.mxu0 0.0
        %1812 = vmatprep.subr.mxu0 0.0
        %1813 = vmatpush1.msra.mxu0 0.0
        %1814 = vmatprep.subr.mxu0 0.0
        %1815 = vmatpush1.msra.mxu0 0.0
        %1816 = vmatprep.subr.mxu0 0.0
        %1817 = vmatpush1.msra.mxu0 0.0
        %1818 = vmatprep.subr.mxu0 0.0
        %1819 = vmatpush1.msra.mxu0 0.0
        %1820 = vmatprep.subr.mxu0 0.0
        %1821 = vmatpush1.msra.mxu0 0.0
        %1822 = vmatprep.subr.mxu0 0.0
        %1823 = vmatpush1.msra.mxu0 0.0
        %1824 = vmatprep.subr.mxu0 0.0
        %1825 = vmatpush1.msra.mxu0 0.0
        %1826 = vmatprep.subr.mxu0 0.0
        %1827 = vmatpush1.msra.mxu0 0.0
        %1828 = vmatprep.subr.mxu0 0.0
        %1829 = vmatpush1.msra.mxu0 0.0
        %1830 = vmatprep.subr.mxu0 0.0
        %1831 = vmatpush1.msra.mxu0 0.0
        %1832 = vmatprep.subr.mxu0 0.0
        %1833 = vmatpush1.msra.mxu0 0.0
        %1834 = vmatprep.subr.mxu0 0.0
        %1835 = vmatpush1.msra.mxu0 0.0
        %1836 = vmatprep.subr.mxu0 0.0
        %1837 = vmatpush1.msra.mxu0 0.0
        %1838 = vmatprep.subr.mxu0 0.0
        %1839 = vmatpush1.msra.mxu0 0.0
        %1840 = vmatprep.subr.mxu0 0.0
        %1841 = vmatpush1.msra.mxu0 0.0
        %1842 = vmatprep.subr.mxu0 0.0
        %1843 = vmatpush1.msra.mxu0 0.0
        %1844 = vmatprep.subr.mxu0 0.0
        %1845 = vmatpush1.msra.mxu0 0.0
        %1846 = vmatprep.subr.mxu0 0.0
        %1847 = vmatpush1.msra.mxu0 0.0
        %1848 = vmatprep.subr.mxu0 0.0
        %1849 = vmatpush1.msra.mxu0 0.0
        %1850 = vmatprep.mubr.f32.mxu0 0.0
        %1851 = vmatmul.mubr.f32.gmra.mrb[0].mxu0 %v1705
        %v1852 = vpop.f32.mrb[0].mxu0
        %v1853 = vadd.f32 0.0, %v1852
        %v1854 = vpop.f32.mrb[0].mxu0
        %1855 = vdwg.mxu0
        %1857 = vrot.lane.b32.xlu0 %v1853, 36
        %v1858 = vpop.permute.xlu0 %1857
        %vm1860 = vcmask 392480
        %1861 = vst.msk [vmem:[%s531] sm:$0xff] %vm1860, %v1858
        %v1862 = vmul.f32 %v1700, %v544
        %v1863 = vmul.f32 %v1700, %v545
        %v1864 = vmul.f32 %v1700, %v546
        %v1865 = vmul.f32 %v1700, %v547
        %v1866 = vmul.f32 %v1700, %v548
        %v1867 = vmul.f32 %v1700, %v549
        %v1868 = vmul.f32 %v1700, %v550
        %v1869 = vmul.f32 %v1700, %v551
        %v1870 = vsel %vm647, %v1862, 0.0
        %1871 = vadd.xlane.f32.xlu0 %v1870
        %v1872 = vpop.xlane.xlu0 %1871
        %v1873 = vsel %vm647, %v1863, 0.0
        %1874 = vadd.xlane.f32.xlu0 %v1873
        %v1875 = vpop.xlane.xlu0 %1874
        %v1876 = vsel %vm647, %v1864, 0.0
        %1877 = vadd.xlane.f32.xlu0 %v1876
        %v1878 = vpop.xlane.xlu0 %1877
        %v1879 = vsel %vm647, %v1865, 0.0
        %1880 = vadd.xlane.f32.xlu0 %v1879
        %v1881 = vpop.xlane.xlu0 %1880
        %v1882 = vsel %vm647, %v1866, 0.0
        %1883 = vadd.xlane.f32.xlu0 %v1882
        %v1884 = vpop.xlane.xlu0 %1883
        %v1885 = vsel %vm647, %v1867, 0.0
        %1886 = vadd.xlane.f32.xlu0 %v1885
        %v1887 = vpop.xlane.xlu0 %1886
        %v1888 = vsel %vm647, %v1868, 0.0
        %1889 = vadd.xlane.f32.xlu0 %v1888
        %v1890 = vpop.xlane.xlu0 %1889
        %v1891 = vsel %vm647, %v1869, 0.0
        %1892 = vadd.xlane.f32.xlu0 %v1891
        %v1893 = vpop.xlane.xlu0 %1892
        %v1902 = vlaneseq
        %v1903 = vshrl.u32 %v1902, 7
        %v1904 = vsub.s32 %v846, %v1903
        %v1905 = vrot.slane %v1872, %v1904
        %v1906 = vlaneseq
        %v1907 = vshrl.u32 %v1906, 7
        %v1908 = vsub.s32 %v846, %v1907
        %v1909 = vrot.slane %v1875, %v1908
        %v1910 = vlaneseq
        %v1911 = vshrl.u32 %v1910, 7
        %v1912 = vsub.s32 %v846, %v1911
        %v1913 = vrot.slane %v1878, %v1912
        %v1914 = vlaneseq
        %v1915 = vshrl.u32 %v1914, 7
        %v1916 = vsub.s32 %v846, %v1915
        %v1917 = vrot.slane %v1881, %v1916
        %v1918 = vlaneseq
        %v1919 = vshrl.u32 %v1918, 7
        %v1920 = vsub.s32 %v846, %v1919
        %v1921 = vrot.slane %v1884, %v1920
        %v1922 = vlaneseq
        %v1923 = vshrl.u32 %v1922, 7
        %v1924 = vsub.s32 %v846, %v1923
        %v1925 = vrot.slane %v1887, %v1924
        %v1926 = vlaneseq
        %v1927 = vshrl.u32 %v1926, 7
        %v1928 = vsub.s32 %v846, %v1927
        %v1929 = vrot.slane %v1890, %v1928
        %v1930 = vlaneseq
        %v1931 = vshrl.u32 %v1930, 7
        %v1932 = vsub.s32 %v846, %v1931
        %v1933 = vrot.slane %v1893, %v1932
        %v1934 = vsel %vm879, %v1909, %v1905
        %v1935 = vsel %vm881, %v1913, %v1934
        %v1936 = vsel %vm883, %v1917, %v1935
        %v1937 = vsel %vm885, %v1921, %v1936
        %v1938 = vsel %vm887, %v1925, %v1937
        %v1939 = vsel %vm889, %v1929, %v1938
        %v1940 = vsel %vm891, %v1933, %v1939
        %1942 = vst.msk [vmem:[%s536 + $0x18] sm:$0xff] %vm647, %v1940
        %p1943 = scmp.lt.s32.totalorder %s25, 1
        %s1944 = scalar_select %p1943, %s25, 1
        %s1945 = smul.addr %s1944, 8
        %s1946 = scalar_lea.vmem %s9, %s1945
        %p1947 = scmp.lt.s32.totalorder %s25, 1
        %s1948 = scalar_select %p1947, %s25, 1
        %s1949 = smul.addr %s1948, 8
        %s1950 = scalar_lea.vmem %s10, %s1949
        %p1951 = scmp.lt.s32.totalorder %s25, 1
        %s1952 = scalar_select %p1951, %s25, 1
        %s1953 = smul.addr %s1952, 4
        %s1954 = smul.addr %s1953, 8
        %s1955 = scalar_lea.vmem %s11, %s1954
        // Predicated region
        $region65: #{_lambda_.11} parent=55 // pred_check
          %p1956 = pneg %p267
        $region66: #{_lambda_.11} parent=55 // pred_check_branch
          %1958 = sbr.rel (%p1956) target = $region68
        $region67: #{_lambda_.11} parent=55 // pred_region
          _
        $region68: #{_lambda_.11} parent=55 // pred_fallthru
          _
        // Predicated region
        $region69: #{_lambda_.11} parent=55 // pred_check
          %p1959 = pneg %p293
        $region70: #{_lambda_.11} parent=55 // pred_check_branch
          %1961 = sbr.rel (%p1959) target = $region72
        $region71: #{_lambda_.11} parent=55 // pred_region
          _
        $region72: #{_lambda_.11} parent=55 // pred_fallthru
          _
        // Predicated region
        $region73: #{_lambda_.11} parent=55 // pred_check
          %p1962 = pneg %p319
        $region74: #{_lambda_.11} parent=55 // pred_check_branch
          %1964 = sbr.rel (%p1962) target = $region76
        $region75: #{_lambda_.11} parent=55 // pred_region
          _
        $region76: #{_lambda_.11} parent=55 // pred_fallthru
          _
      $region56: #{_lambda_.11} parent=5 // pred_fallthru
        _
      %p1965 = scmp.le.s32.totalorder 2, %s20
      // Predicated region
      $region77: #{_lambda_.11} parent=5 // pred_check
        %p1966 = pneg %p1965
      $region78: #{_lambda_.11} parent=5 // pred_check_branch
        %1968 = sbr.rel (%p1966) target = $region80
      $region79: #{_lambda_.11} parent=5 // pred_region
        %s1969 = ssub.s32 %s20, 2
        // Predicated region
        $region81: #{_lambda_.11} parent=79 // pred_check
          %p1970 = pneg %p273
        $region82: #{_lambda_.11} parent=79 // pred_check_branch
          %1972 = sbr.rel (%p1970) target = $region84
        $region83: #{_lambda_.11} parent=79 // pred_region
          %p1973 = scmp.lt.s32.totalorder %s26, 1
          %s1974 = scalar_select %p1973, %s26, 1
          %s1975 = smul.addr %s1974, 8
          %s1976 = scalar_lea.vmem %s9, %s1975
        $region84: #{_lambda_.11} parent=79 // pred_fallthru
          _
        // Predicated region
        $region85: #{_lambda_.11} parent=79 // pred_check
          %p1977 = pneg %p299
        $region86: #{_lambda_.11} parent=79 // pred_check_branch
          %1979 = sbr.rel (%p1977) target = $region88
        $region87: #{_lambda_.11} parent=79 // pred_region
          %p1980 = scmp.lt.s32.totalorder %s26, 1
          %s1981 = scalar_select %p1980, %s26, 1
          %s1982 = smul.addr %s1981, 8
          %s1983 = scalar_lea.vmem %s10, %s1982
        $region88: #{_lambda_.11} parent=79 // pred_fallthru
          _
        // Predicated region
        $region89: #{_lambda_.11} parent=79 // pred_check
          %p1984 = pneg %p325
        $region90: #{_lambda_.11} parent=79 // pred_check_branch
          %1986 = sbr.rel (%p1984) target = $region92
        $region91: #{_lambda_.11} parent=79 // pred_region
          %p1987 = scmp.lt.s32.totalorder %s26, 1
          %s1988 = scalar_select %p1987, %s26, 1
          %s1989 = smul.addr %s1988, 4
          %s1990 = smul.addr %s1989, 8
          %s1991 = scalar_lea.vmem %s11, %s1990
        $region92: #{_lambda_.11} parent=79 // pred_fallthru
          _
      $region80: #{_lambda_.11} parent=5 // pred_fallthru
        _
    $region6: #{_lambda_.11} parent=1 // loop_footer
      %s24 = sadd.s32 1, %s20
    $region7: #{_lambda_.11} parent=1 // loop_footer_branch
      %19 = sbr.rel target = $region3
    $region8: #{_lambda_.11} parent=1 // loop_exit
      _
    %1992 = vsyncpa [#allocation3], 1
    %s1993 = scalar_lea.sflag [#allocation3], 1
    %1994 = vsyncpa %s1993, 1
    %1995 = vsyncpa [#allocation5], 1

// kernel: _lambda_.14
$region0: #{_lambda_.14}
  #allocation0 [shape = 'u32[]', space=smem, size = 0x4, offset = 0x4, fixed_abs, tag = 'smem constant byte address 0x4 - core index']
  #allocation1 [shape = 'u32[144,128]{1,0:T(1,128)}', space=vmem, size = 0x12000, scoped, tag = 'internal scratch']
  %s0 = inlined_call_operand.vmem [shape: f32[16,32], index: 0, kind: input, shape index: {}]
  %s1 = inlined_call_operand.vmem [shape: f32[32,9], index: 1, kind: input, shape index: {}]
  %s2 = inlined_call_operand.vmem [shape: f32[1,9], index: 2, kind: input, shape index: {}]
  %s3 = inlined_call_operand.vmem [shape: f32[16,9], index: 3, kind: output, shape index: {}]
  %s4 = sld [smem:[#allocation0]]
  $region22: #{_lambda_.14} parent=0
    _
  %s6 = ssub.s32 1, %s4
  %s7 = scalar_select 0, %s6, %s4
  // Predicated region
  $region2: #{_lambda_.14} parent=0 // pred_check
    _
  $region3: #{_lambda_.14} parent=0 // pred_check_branch
    %9 = sbr.rel (0) target = $region5
  $region4: #{_lambda_.14} parent=0 // pred_region
    _
  $region5: #{_lambda_.14} parent=0 // pred_fallthru
    _
  // Predicated region
  $region6: #{_lambda_.14} parent=0 // pred_check
    _
  $region7: #{_lambda_.14} parent=0 // pred_check_branch
    %11 = sbr.rel (0) target = $region9
  $region8: #{_lambda_.14} parent=0 // pred_region
    _
  $region9: #{_lambda_.14} parent=0 // pred_fallthru
    _
  // Predicated region
  $region10: #{_lambda_.14} parent=0 // pred_check
    _
  $region11: #{_lambda_.14} parent=0 // pred_check_branch
    %13 = sbr.rel (0) target = $region13
  $region12: #{_lambda_.14} parent=0 // pred_region
    _
  $region13: #{_lambda_.14} parent=0 // pred_fallthru
    _
  %v15 = vld [vmem:[%s0] sm:$0xff]
  %v16 = vld [vmem:[%s0 + $0x8] sm:$0xff]
  %v17 = vld [vmem:[%s1] sm:$0xff]
  %v18 = vld [vmem:[%s1 + $0x8] sm:$0xff]
  %v19 = vld [vmem:[%s1 + $0x10] sm:$0xff]
  %v20 = vld [vmem:[%s1 + $0x18] sm:$0xff]
  %v21 = vpack.c.bf16 %v16, %v15
  %v22 = vpack.c.bf16 %v18, %v17
  %v23 = vpack.c.bf16 %v20, %v19
  %v24 = vld [vmem:[%s2] sm:$0x1]
  %v26 = vlaneseq
  %v27 = vshrl.u32 %v26, 7
  %v28 = vsub.s32 0, %v27
  %v29 = vrot.slane %v24, %v28
  %vm31 = vcmask 261120
  %v33 = vsel %vm31, %v21, 0
  %35 = vmatprep.subr.bf16.mxu0 0
  %36 = vmatpush1.bf16.msra.mxu0 %v22
  %37 = vmatprep.subr.bf16.mxu0 0
  %38 = vmatpush1.bf16.msra.mxu0 %v23
  %39 = vmatprep.subr.bf16.mxu0 0
  %40 = vmatpush1.bf16.msra.mxu0 0
  %41 = vmatprep.subr.bf16.mxu0 0
  %42 = vmatpush1.bf16.msra.mxu0 0
  %43 = vmatprep.subr.bf16.mxu0 0
  %44 = vmatpush1.bf16.msra.mxu0 0
  %45 = vmatprep.subr.bf16.mxu0 0
  %46 = vmatpush1.bf16.msra.mxu0 0
  %47 = vmatprep.subr.bf16.mxu0 0
  %48 = vmatpush1.bf16.msra.mxu0 0
  %49 = vmatprep.subr.bf16.mxu0 0
  %50 = vmatpush1.bf16.msra.mxu0 0
  %51 = vmatprep.subr.bf16.mxu0 0
  %52 = vmatpush1.bf16.msra.mxu0 0
  %53 = vmatprep.subr.bf16.mxu0 0
  %54 = vmatpush1.bf16.msra.mxu0 0
  %55 = vmatprep.subr.bf16.mxu0 0
  %56 = vmatpush1.bf16.msra.mxu0 0
  %57 = vmatprep.subr.bf16.mxu0 0
  %58 = vmatpush1.bf16.msra.mxu0 0
  %59 = vmatprep.subr.bf16.mxu0 0
  %60 = vmatpush1.bf16.msra.mxu0 0
  %61 = vmatprep.subr.bf16.mxu0 0
  %62 = vmatpush1.bf16.msra.mxu0 0
  %63 = vmatprep.subr.bf16.mxu0 0
  %64 = vmatpush1.bf16.msra.mxu0 0
  %65 = vmatprep.subr.bf16.mxu0 0
  %66 = vmatpush1.bf16.msra.mxu0 0
  %67 = vmatprep.mubr.bf16.mxu0 0
  %68 = vmatmul.mubr.bf16.gmra.mrb[0].mxu0 %v33
  %v69 = vpop.f32.mrb[0].mxu0
  %v70 = vadd.f32 %v29, %v69
  %v71 = vpop.f32.mrb[0].mxu0
  %v72 = vpop.f32.mrb[0].mxu0
  %v73 = vadd.f32 %v29, %v72
  %v74 = vpop.f32.mrb[0].mxu0
  %75 = vdwg.mxu0
  %vm76 = vcmask 72704
  %77 = vst.msk [vmem:[%s3] sm:$0xff] %vm76, %v70
  %78 = vst.msk [vmem:[%s3 + $0x8] sm:$0xff] %vm76, %v73
  // Predicated region
  $region14: #{_lambda_.14} parent=0 // pred_check
    _
  $region15: #{_lambda_.14} parent=0 // pred_check_branch
    %80 = sbr.rel (0) target = $region17
  $region16: #{_lambda_.14} parent=0 // pred_region
    _
  $region17: #{_lambda_.14} parent=0 // pred_fallthru
    _
  // Predicated region
  $region18: #{_lambda_.14} parent=0 // pred_check
    _
  $region19: #{_lambda_.14} parent=0 // pred_check_branch
    %82 = sbr.rel (0) target = $region21
  $region20: #{_lambda_.14} parent=0 // pred_region
    _
  $region21: #{_lambda_.14} parent=0 // pred_fallthru
    _

// kernel: _lambda_.13
$region0: #{_lambda_.13}
  #allocation0 [shape = 'u32[]', space=smem, size = 0x4, offset = 0x4, fixed_abs, tag = 'smem constant byte address 0x4 - core index']
  #allocation1 [shape = 'u32[144,128]{1,0:T(1,128)}', space=vmem, size = 0x12000, scoped, tag = 'internal scratch']
  %s0 = inlined_call_operand.vmem [shape: f32[16,32], index: 0, kind: input, shape index: {}]
  %s1 = inlined_call_operand.vmem [shape: f32[32,32], index: 1, kind: input, shape index: {}]
  %s2 = inlined_call_operand.vmem [shape: f32[1,32], index: 2, kind: input, shape index: {}]
  %s3 = inlined_call_operand.vmem [shape: f32[32,32], index: 3, kind: input, shape index: {}]
  %s4 = inlined_call_operand.vmem [shape: f32[1,32], index: 4, kind: input, shape index: {}]
  %s5 = inlined_call_operand.vmem [shape: f32[32,32], index: 5, kind: input, shape index: {}]
  %s6 = inlined_call_operand.vmem [shape: f32[1,32], index: 6, kind: input, shape index: {}]
  %s7 = inlined_call_operand.vmem [shape: f32[1,32], index: 7, kind: input, shape index: {}]
  %s8 = inlined_call_operand.vmem [shape: f32[1,32], index: 8, kind: input, shape index: {}]
  %s9 = inlined_call_operand.vmem [shape: f32[16,32], index: 9, kind: output, shape index: {}]
  %s10 = sld [smem:[#allocation0]]
  $region46: #{_lambda_.13} parent=0
    _
  %s12 = ssub.s32 1, %s10
  %s13 = scalar_select 0, %s12, %s10
  // Predicated region
  $region2: #{_lambda_.13} parent=0 // pred_check
    _
  $region3: #{_lambda_.13} parent=0 // pred_check_branch
    %15 = sbr.rel (0) target = $region5
  $region4: #{_lambda_.13} parent=0 // pred_region
    _
  $region5: #{_lambda_.13} parent=0 // pred_fallthru
    _
  // Predicated region
  $region6: #{_lambda_.13} parent=0 // pred_check
    _
  $region7: #{_lambda_.13} parent=0 // pred_check_branch
    %17 = sbr.rel (0) target = $region9
  $region8: #{_lambda_.13} parent=0 // pred_region
    _
  $region9: #{_lambda_.13} parent=0 // pred_fallthru
    _
  // Predicated region
  $region10: #{_lambda_.13} parent=0 // pred_check
    _
  $region11: #{_lambda_.13} parent=0 // pred_check_branch
    %19 = sbr.rel (0) target = $region13
  $region12: #{_lambda_.13} parent=0 // pred_region
    _
  $region13: #{_lambda_.13} parent=0 // pred_fallthru
    _
  // Predicated region
  $region14: #{_lambda_.13} parent=0 // pred_check
    _
  $region15: #{_lambda_.13} parent=0 // pred_check_branch
    %21 = sbr.rel (0) target = $region17
  $region16: #{_lambda_.13} parent=0 // pred_region
    _
  $region17: #{_lambda_.13} parent=0 // pred_fallthru
    _
  // Predicated region
  $region18: #{_lambda_.13} parent=0 // pred_check
    _
  $region19: #{_lambda_.13} parent=0 // pred_check_branch
    %23 = sbr.rel (0) target = $region21
  $region20: #{_lambda_.13} parent=0 // pred_region
    _
  $region21: #{_lambda_.13} parent=0 // pred_fallthru
    _
  // Predicated region
  $region22: #{_lambda_.13} parent=0 // pred_check
    _
  $region23: #{_lambda_.13} parent=0 // pred_check_branch
    %25 = sbr.rel (0) target = $region25
  $region24: #{_lambda_.13} parent=0 // pred_region
    _
  $region25: #{_lambda_.13} parent=0 // pred_fallthru
    _
  // Predicated region
  $region26: #{_lambda_.13} parent=0 // pred_check
    _
  $region27: #{_lambda_.13} parent=0 // pred_check_branch
    %27 = sbr.rel (0) target = $region29
  $region28: #{_lambda_.13} parent=0 // pred_region
    _
  $region29: #{_lambda_.13} parent=0 // pred_fallthru
    _
  // Predicated region
  $region30: #{_lambda_.13} parent=0 // pred_check
    _
  $region31: #{_lambda_.13} parent=0 // pred_check_branch
    %29 = sbr.rel (0) target = $region33
  $region32: #{_lambda_.13} parent=0 // pred_region
    _
  $region33: #{_lambda_.13} parent=0 // pred_fallthru
    _
  // Predicated region
  $region34: #{_lambda_.13} parent=0 // pred_check
    _
  $region35: #{_lambda_.13} parent=0 // pred_check_branch
    %31 = sbr.rel (0) target = $region37
  $region36: #{_lambda_.13} parent=0 // pred_region
    _
  $region37: #{_lambda_.13} parent=0 // pred_fallthru
    _
  %v33 = vld [vmem:[%s0] sm:$0xff]
  %v34 = vld [vmem:[%s0 + $0x8] sm:$0xff]
  %v35 = vld [vmem:[%s1] sm:$0xff]
  %v36 = vld [vmem:[%s1 + $0x8] sm:$0xff]
  %v37 = vld [vmem:[%s1 + $0x10] sm:$0xff]
  %v38 = vld [vmem:[%s1 + $0x18] sm:$0xff]
  %v39 = vpack.c.bf16 %v34, %v33
  %v40 = vpack.c.bf16 %v36, %v35
  %v41 = vpack.c.bf16 %v38, %v37
  %v42 = vld [vmem:[%s2] sm:$0x1]
  %v44 = vlaneseq
  %v45 = vshrl.u32 %v44, 7
  %v46 = vsub.s32 0, %v45
  %v47 = vrot.slane %v42, %v46
  %vm49 = vcmask 261120
  %v51 = vsel %vm49, %v39, 0
  %53 = vmatprep.subr.bf16.mxu0 0
  %54 = vmatpush1.bf16.msra.mxu0 %v40
  %55 = vmatprep.subr.bf16.mxu0 0
  %56 = vmatpush1.bf16.msra.mxu0 %v41
  %57 = vmatprep.subr.bf16.mxu0 0
  %58 = vmatpush1.bf16.msra.mxu0 0
  %59 = vmatprep.subr.bf16.mxu0 0
  %60 = vmatpush1.bf16.msra.mxu0 0
  %61 = vmatprep.subr.bf16.mxu0 0
  %62 = vmatpush1.bf16.msra.mxu0 0
  %63 = vmatprep.subr.bf16.mxu0 0
  %64 = vmatpush1.bf16.msra.mxu0 0
  %65 = vmatprep.subr.bf16.mxu0 0
  %66 = vmatpush1.bf16.msra.mxu0 0
  %67 = vmatprep.subr.bf16.mxu0 0
  %68 = vmatpush1.bf16.msra.mxu0 0
  %69 = vmatprep.subr.bf16.mxu0 0
  %70 = vmatpush1.bf16.msra.mxu0 0
  %71 = vmatprep.subr.bf16.mxu0 0
  %72 = vmatpush1.bf16.msra.mxu0 0
  %73 = vmatprep.subr.bf16.mxu0 0
  %74 = vmatpush1.bf16.msra.mxu0 0
  %75 = vmatprep.subr.bf16.mxu0 0
  %76 = vmatpush1.bf16.msra.mxu0 0
  %77 = vmatprep.subr.bf16.mxu0 0
  %78 = vmatpush1.bf16.msra.mxu0 0
  %79 = vmatprep.subr.bf16.mxu0 0
  %80 = vmatpush1.bf16.msra.mxu0 0
  %81 = vmatprep.subr.bf16.mxu0 0
  %82 = vmatpush1.bf16.msra.mxu0 0
  %83 = vmatprep.subr.bf16.mxu0 0
  %84 = vmatpush1.bf16.msra.mxu0 0
  %85 = vmatprep.mubr.bf16.mxu0 0
  %86 = vmatmul.mubr.bf16.gmra.mrb[0].mxu0 %v51
  %v87 = vpop.f32.mrb[0].mxu0
  %v88 = vadd.f32 %v47, %v87
  %v89 = vpop.f32.mrb[0].mxu0
  %v90 = vpop.f32.mrb[0].mxu0
  %v91 = vadd.f32 %v47, %v90
  %v92 = vpop.f32.mrb[0].mxu0
  %93 = vdwg.mxu0
  %v94 = vmax.f32 %v88, 0.0
  %v95 = vmax.f32 %v91, 0.0
  %v96 = vld [vmem:[%s3] sm:$0xff]
  %v97 = vld [vmem:[%s3 + $0x8] sm:$0xff]
  %v98 = vld [vmem:[%s3 + $0x10] sm:$0xff]
  %v99 = vld [vmem:[%s3 + $0x18] sm:$0xff]
  %v100 = vpack.c.bf16 %v95, %v94
  %v101 = vpack.c.bf16 %v97, %v96
  %v102 = vpack.c.bf16 %v99, %v98
  %v103 = vld [vmem:[%s4] sm:$0x1]
  %v105 = vlaneseq
  %v106 = vshrl.u32 %v105, 7
  %v107 = vsub.s32 0, %v106
  %v108 = vrot.slane %v103, %v107
  %v111 = vsel %vm49, %v100, 0
  %113 = vmatprep.subr.bf16.mxu0 0
  %114 = vmatpush1.bf16.msra.mxu0 %v101
  %115 = vmatprep.subr.bf16.mxu0 0
  %116 = vmatpush1.bf16.msra.mxu0 %v102
  %117 = vmatprep.subr.bf16.mxu0 0
  %118 = vmatpush1.bf16.msra.mxu0 0
  %119 = vmatprep.subr.bf16.mxu0 0
  %120 = vmatpush1.bf16.msra.mxu0 0
  %121 = vmatprep.subr.bf16.mxu0 0
  %122 = vmatpush1.bf16.msra.mxu0 0
  %123 = vmatprep.subr.bf16.mxu0 0
  %124 = vmatpush1.bf16.msra.mxu0 0
  %125 = vmatprep.subr.bf16.mxu0 0
  %126 = vmatpush1.bf16.msra.mxu0 0
  %127 = vmatprep.subr.bf16.mxu0 0
  %128 = vmatpush1.bf16.msra.mxu0 0
  %129 = vmatprep.subr.bf16.mxu0 0
  %130 = vmatpush1.bf16.msra.mxu0 0
  %131 = vmatprep.subr.bf16.mxu0 0
  %132 = vmatpush1.bf16.msra.mxu0 0
  %133 = vmatprep.subr.bf16.mxu0 0
  %134 = vmatpush1.bf16.msra.mxu0 0
  %135 = vmatprep.subr.bf16.mxu0 0
  %136 = vmatpush1.bf16.msra.mxu0 0
  %137 = vmatprep.subr.bf16.mxu0 0
  %138 = vmatpush1.bf16.msra.mxu0 0
  %139 = vmatprep.subr.bf16.mxu0 0
  %140 = vmatpush1.bf16.msra.mxu0 0
  %141 = vmatprep.subr.bf16.mxu0 0
  %142 = vmatpush1.bf16.msra.mxu0 0
  %143 = vmatprep.subr.bf16.mxu0 0
  %144 = vmatpush1.bf16.msra.mxu0 0
  %145 = vmatprep.mubr.bf16.mxu0 0
  %146 = vmatmul.mubr.bf16.gmra.mrb[0].mxu0 %v111
  %v147 = vpop.f32.mrb[0].mxu0
  %v148 = vadd.f32 %v108, %v147
  %v149 = vpop.f32.mrb[0].mxu0
  %v150 = vpop.f32.mrb[0].mxu0
  %v151 = vadd.f32 %v108, %v150
  %v152 = vpop.f32.mrb[0].mxu0
  %153 = vdwg.mxu0
  %v154 = vmax.f32 %v148, 0.0
  %v155 = vmax.f32 %v151, 0.0
  %v156 = vld [vmem:[%s5] sm:$0xff]
  %v157 = vld [vmem:[%s5 + $0x8] sm:$0xff]
  %v158 = vld [vmem:[%s5 + $0x10] sm:$0xff]
  %v159 = vld [vmem:[%s5 + $0x18] sm:$0xff]
  %v160 = vpack.c.bf16 %v155, %v154
  %v161 = vpack.c.bf16 %v157, %v156
  %v162 = vpack.c.bf16 %v159, %v158
  %v163 = vld [vmem:[%s6] sm:$0x1]
  %v165 = vlaneseq
  %v166 = vshrl.u32 %v165, 7
  %v167 = vsub.s32 0, %v166
  %v168 = vrot.slane %v163, %v167
  %v171 = vsel %vm49, %v160, 0
  %173 = vmatprep.subr.bf16.mxu0 0
  %174 = vmatpush1.bf16.msra.mxu0 %v161
  %175 = vmatprep.subr.bf16.mxu0 0
  %176 = vmatpush1.bf16.msra.mxu0 %v162
  %177 = vmatprep.subr.bf16.mxu0 0
  %178 = vmatpush1.bf16.msra.mxu0 0
  %179 = vmatprep.subr.bf16.mxu0 0
  %180 = vmatpush1.bf16.msra.mxu0 0
  %181 = vmatprep.subr.bf16.mxu0 0
  %182 = vmatpush1.bf16.msra.mxu0 0
  %183 = vmatprep.subr.bf16.mxu0 0
  %184 = vmatpush1.bf16.msra.mxu0 0
  %185 = vmatprep.subr.bf16.mxu0 0
  %186 = vmatpush1.bf16.msra.mxu0 0
  %187 = vmatprep.subr.bf16.mxu0 0
  %188 = vmatpush1.bf16.msra.mxu0 0
  %189 = vmatprep.subr.bf16.mxu0 0
  %190 = vmatpush1.bf16.msra.mxu0 0
  %191 = vmatprep.subr.bf16.mxu0 0
  %192 = vmatpush1.bf16.msra.mxu0 0
  %193 = vmatprep.subr.bf16.mxu0 0
  %194 = vmatpush1.bf16.msra.mxu0 0
  %195 = vmatprep.subr.bf16.mxu0 0
  %196 = vmatpush1.bf16.msra.mxu0 0
  %197 = vmatprep.subr.bf16.mxu0 0
  %198 = vmatpush1.bf16.msra.mxu0 0
  %199 = vmatprep.subr.bf16.mxu0 0
  %200 = vmatpush1.bf16.msra.mxu0 0
  %201 = vmatprep.subr.bf16.mxu0 0
  %202 = vmatpush1.bf16.msra.mxu0 0
  %203 = vmatprep.subr.bf16.mxu0 0
  %204 = vmatpush1.bf16.msra.mxu0 0
  %205 = vmatprep.mubr.bf16.mxu0 0
  %206 = vmatmul.mubr.bf16.gmra.mrb[0].mxu0 %v171
  %v207 = vpop.f32.mrb[0].mxu0
  %v208 = vadd.f32 %v168, %v207
  %v209 = vpop.f32.mrb[0].mxu0
  %v210 = vpop.f32.mrb[0].mxu0
  %v211 = vadd.f32 %v168, %v210
  %v212 = vpop.f32.mrb[0].mxu0
  %213 = vdwg.mxu0
  %v214 = vadd.f32 %v208, %v33
  %v215 = vadd.f32 %v211, %v34
  %v216 = vsel %vm49, %v214, 0.0
  %217 = vadd.xlane.f32.xlu0 %v216
  %v218 = vpop.xlane.xlu0 %217
  %v219 = vsel %vm49, %v215, 0.0
  %220 = vadd.xlane.f32.xlu0 %v219
  %v221 = vpop.xlane.xlu0 %220
  %v222 = vrcp.pop 32.0
  %v223 = vmul.f32 %v218, %v222
  %v224 = vmul.f32 %v221, %v222
  %v225 = vsub.f32 %v214, %v223
  %v226 = vsub.f32 %v215, %v224
  %v227 = vmul.f32 %v225, %v225
  %v228 = vmul.f32 %v226, %v226
  %v229 = vsel %vm49, %v227, 0.0
  %230 = vadd.xlane.f32.xlu0 %v229
  %v231 = vpop.xlane.xlu0 %230
  %v232 = vsel %vm49, %v228, 0.0
  %233 = vadd.xlane.f32.xlu0 %v232
  %v234 = vpop.xlane.xlu0 %233
  %v235 = vmul.f32 %v231, %v222
  %v236 = vmul.f32 %v234, %v222
  %v237 = vadd.f32 %v235, 1e-05
  %v238 = vadd.f32 %v236, 1e-05
  %v239 = vrsqrt.pop %v237
  %v240 = vrsqrt.pop %v238
  %v241 = vmul.f32 %v225, %v239
  %v242 = vmul.f32 %v226, %v240
  %v243 = vld [vmem:[%s7] sm:$0x1]
  %v245 = vlaneseq
  %v246 = vshrl.u32 %v245, 7
  %v247 = vsub.s32 0, %v246
  %v248 = vrot.slane %v243, %v247
  %v250 = vmul.f32 %v241, %v248
  %v251 = vmul.f32 %v242, %v248
  %v252 = vld [vmem:[%s8] sm:$0x1]
  %v254 = vlaneseq
  %v255 = vshrl.u32 %v254, 7
  %v256 = vsub.s32 0, %v255
  %v257 = vrot.slane %v252, %v256
  %v259 = vadd.f32 %v250, %v257
  %v260 = vadd.f32 %v251, %v257
  %261 = vst.msk [vmem:[%s9] sm:$0xff] %vm49, %v259
  %262 = vst.msk [vmem:[%s9 + $0x8] sm:$0xff] %vm49, %v260
  // Predicated region
  $region38: #{_lambda_.13} parent=0 // pred_check
    _
  $region39: #{_lambda_.13} parent=0 // pred_check_branch
    %264 = sbr.rel (0) target = $region41
  $region40: #{_lambda_.13} parent=0 // pred_region
    _
  $region41: #{_lambda_.13} parent=0 // pred_fallthru
    _
  // Predicated region
  $region42: #{_lambda_.13} parent=0 // pred_check
    _
  $region43: #{_lambda_.13} parent=0 // pred_check_branch
    %266 = sbr.rel (0) target = $region45
  $region44: #{_lambda_.13} parent=0 // pred_region
    _
  $region45: #{_lambda_.13} parent=0 // pred_fallthru
    _

// kernel: _lambda_.12
$region0: #{_lambda_.12}
  #allocation0 [shape = 'u32[]', space=smem, size = 0x4, offset = 0x4, fixed_abs, tag = 'smem constant byte address 0x4 - core index']
  #allocation1 [shape = 'u32[144,128]{1,0:T(1,128)}', space=vmem, size = 0x12000, scoped, tag = 'internal scratch']
  %s0 = inlined_call_operand.vmem [shape: f32[16,128], index: 0, kind: input, shape index: {}]
  %s1 = inlined_call_operand.vmem [shape: f32[16,32], index: 1, kind: input, shape index: {}]
  %s2 = inlined_call_operand.vmem [shape: f32[128,32], index: 2, kind: input, shape index: {}]
  %s3 = inlined_call_operand.vmem [shape: f32[1,32], index: 3, kind: input, shape index: {}]
  %s4 = inlined_call_operand.vmem [shape: f32[1,32], index: 4, kind: input, shape index: {}]
  %s5 = inlined_call_operand.vmem [shape: f32[1,32], index: 5, kind: input, shape index: {}]
  %s6 = inlined_call_operand.vmem [shape: f32[16,32], index: 6, kind: output, shape index: {}]
  %s7 = sld [smem:[#allocation0]]
  $region34: #{_lambda_.12} parent=0
    _
  %s9 = ssub.s32 1, %s7
  %s10 = scalar_select 0, %s9, %s7
  // Predicated region
  $region2: #{_lambda_.12} parent=0 // pred_check
    _
  $region3: #{_lambda_.12} parent=0 // pred_check_branch
    %12 = sbr.rel (0) target = $region5
  $region4: #{_lambda_.12} parent=0 // pred_region
    _
  $region5: #{_lambda_.12} parent=0 // pred_fallthru
    _
  // Predicated region
  $region6: #{_lambda_.12} parent=0 // pred_check
    _
  $region7: #{_lambda_.12} parent=0 // pred_check_branch
    %14 = sbr.rel (0) target = $region9
  $region8: #{_lambda_.12} parent=0 // pred_region
    _
  $region9: #{_lambda_.12} parent=0 // pred_fallthru
    _
  // Predicated region
  $region10: #{_lambda_.12} parent=0 // pred_check
    _
  $region11: #{_lambda_.12} parent=0 // pred_check_branch
    %16 = sbr.rel (0) target = $region13
  $region12: #{_lambda_.12} parent=0 // pred_region
    _
  $region13: #{_lambda_.12} parent=0 // pred_fallthru
    _
  // Predicated region
  $region14: #{_lambda_.12} parent=0 // pred_check
    _
  $region15: #{_lambda_.12} parent=0 // pred_check_branch
    %18 = sbr.rel (0) target = $region17
  $region16: #{_lambda_.12} parent=0 // pred_region
    _
  $region17: #{_lambda_.12} parent=0 // pred_fallthru
    _
  // Predicated region
  $region18: #{_lambda_.12} parent=0 // pred_check
    _
  $region19: #{_lambda_.12} parent=0 // pred_check_branch
    %20 = sbr.rel (0) target = $region21
  $region20: #{_lambda_.12} parent=0 // pred_region
    _
  $region21: #{_lambda_.12} parent=0 // pred_fallthru
    _
  // Predicated region
  $region22: #{_lambda_.12} parent=0 // pred_check
    _
  $region23: #{_lambda_.12} parent=0 // pred_check_branch
    %22 = sbr.rel (0) target = $region25
  $region24: #{_lambda_.12} parent=0 // pred_region
    _
  $region25: #{_lambda_.12} parent=0 // pred_fallthru
    _
  %v24 = vld [vmem:[%s0] sm:$0xff]
  %v25 = vld [vmem:[%s0 + $0x8] sm:$0xff]
  %v26 = vld [vmem:[%s2] sm:$0xff]
  %v27 = vld [vmem:[%s2 + $0x8] sm:$0xff]
  %v28 = vld [vmem:[%s2 + $0x10] sm:$0xff]
  %v29 = vld [vmem:[%s2 + $0x18] sm:$0xff]
  %v30 = vld [vmem:[%s2 + $0x20] sm:$0xff]
  %v31 = vld [vmem:[%s2 + $0x28] sm:$0xff]
  %v32 = vld [vmem:[%s2 + $0x30] sm:$0xff]
  %v33 = vld [vmem:[%s2 + $0x38] sm:$0xff]
  %v34 = vld [vmem:[%s2 + $0x40] sm:$0xff]
  %v35 = vld [vmem:[%s2 + $0x48] sm:$0xff]
  %v36 = vld [vmem:[%s2 + $0x50] sm:$0xff]
  %v37 = vld [vmem:[%s2 + $0x58] sm:$0xff]
  %v38 = vld [vmem:[%s2 + $0x60] sm:$0xff]
  %v39 = vld [vmem:[%s2 + $0x68] sm:$0xff]
  %v40 = vld [vmem:[%s2 + $0x70] sm:$0xff]
  %v41 = vld [vmem:[%s2 + $0x78] sm:$0xff]
  %v42 = vpack.c.bf16 %v25, %v24
  %v43 = vpack.c.bf16 %v27, %v26
  %v44 = vpack.c.bf16 %v29, %v28
  %v45 = vpack.c.bf16 %v31, %v30
  %v46 = vpack.c.bf16 %v33, %v32
  %v47 = vpack.c.bf16 %v35, %v34
  %v48 = vpack.c.bf16 %v37, %v36
  %v49 = vpack.c.bf16 %v39, %v38
  %v50 = vpack.c.bf16 %v41, %v40
  %v51 = vld [vmem:[%s3] sm:$0x1]
  %v53 = vlaneseq
  %v54 = vshrl.u32 %v53, 7
  %v55 = vsub.s32 0, %v54
  %v56 = vrot.slane %v51, %v55
  %58 = vmatprep.subr.bf16.mxu0 0
  %59 = vmatpush1.bf16.msra.mxu0 %v43
  %60 = vmatprep.subr.bf16.mxu0 0
  %61 = vmatpush1.bf16.msra.mxu0 %v44
  %62 = vmatprep.subr.bf16.mxu0 0
  %63 = vmatpush1.bf16.msra.mxu0 %v45
  %64 = vmatprep.subr.bf16.mxu0 0
  %65 = vmatpush1.bf16.msra.mxu0 %v46
  %66 = vmatprep.subr.bf16.mxu0 0
  %67 = vmatpush1.bf16.msra.mxu0 %v47
  %68 = vmatprep.subr.bf16.mxu0 0
  %69 = vmatpush1.bf16.msra.mxu0 %v48
  %70 = vmatprep.subr.bf16.mxu0 0
  %71 = vmatpush1.bf16.msra.mxu0 %v49
  %72 = vmatprep.subr.bf16.mxu0 0
  %73 = vmatpush1.bf16.msra.mxu0 %v50
  %74 = vmatprep.subr.bf16.mxu0 0
  %75 = vmatpush1.bf16.msra.mxu0 0
  %76 = vmatprep.subr.bf16.mxu0 0
  %77 = vmatpush1.bf16.msra.mxu0 0
  %78 = vmatprep.subr.bf16.mxu0 0
  %79 = vmatpush1.bf16.msra.mxu0 0
  %80 = vmatprep.subr.bf16.mxu0 0
  %81 = vmatpush1.bf16.msra.mxu0 0
  %82 = vmatprep.subr.bf16.mxu0 0
  %83 = vmatpush1.bf16.msra.mxu0 0
  %84 = vmatprep.subr.bf16.mxu0 0
  %85 = vmatpush1.bf16.msra.mxu0 0
  %86 = vmatprep.subr.bf16.mxu0 0
  %87 = vmatpush1.bf16.msra.mxu0 0
  %88 = vmatprep.subr.bf16.mxu0 0
  %89 = vmatpush1.bf16.msra.mxu0 0
  %90 = vmatprep.mubr.bf16.mxu0 0
  %91 = vmatmul.mubr.bf16.gmra.mrb[0].mxu0 %v42
  %v92 = vpop.f32.mrb[0].mxu0
  %v93 = vadd.f32 %v56, %v92
  %v94 = vpop.f32.mrb[0].mxu0
  %v95 = vpop.f32.mrb[0].mxu0
  %v96 = vadd.f32 %v56, %v95
  %v97 = vpop.f32.mrb[0].mxu0
  %98 = vdwg.mxu0
  %v99 = vld [vmem:[%s1] sm:$0xff]
  %v100 = vld [vmem:[%s1 + $0x8] sm:$0xff]
  %v101 = vadd.f32 %v93, %v99
  %v102 = vadd.f32 %v96, %v100
  %vm103 = vcmask 261120
  %v104 = vsel %vm103, %v101, 0.0
  %105 = vadd.xlane.f32.xlu0 %v104
  %v106 = vpop.xlane.xlu0 %105
  %v107 = vsel %vm103, %v102, 0.0
  %108 = vadd.xlane.f32.xlu0 %v107
  %v109 = vpop.xlane.xlu0 %108
  %v110 = vrcp.pop 32.0
  %v111 = vmul.f32 %v106, %v110
  %v112 = vmul.f32 %v109, %v110
  %v113 = vsub.f32 %v101, %v111
  %v114 = vsub.f32 %v102, %v112
  %v115 = vmul.f32 %v113, %v113
  %v116 = vmul.f32 %v114, %v114
  %v117 = vsel %vm103, %v115, 0.0
  %118 = vadd.xlane.f32.xlu0 %v117
  %v119 = vpop.xlane.xlu0 %118
  %v120 = vsel %vm103, %v116, 0.0
  %121 = vadd.xlane.f32.xlu0 %v120
  %v122 = vpop.xlane.xlu0 %121
  %v123 = vmul.f32 %v119, %v110
  %v124 = vmul.f32 %v122, %v110
  %v125 = vadd.f32 %v123, 1e-05
  %v126 = vadd.f32 %v124, 1e-05
  %v127 = vrsqrt.pop %v125
  %v128 = vrsqrt.pop %v126
  %v129 = vmul.f32 %v113, %v127
  %v130 = vmul.f32 %v114, %v128
  %v131 = vld [vmem:[%s4] sm:$0x1]
  %v133 = vlaneseq
  %v134 = vshrl.u32 %v133, 7
  %v135 = vsub.s32 0, %v134
  %v136 = vrot.slane %v131, %v135
  %v138 = vmul.f32 %v129, %v136
  %v139 = vmul.f32 %v130, %v136
  %v140 = vld [vmem:[%s5] sm:$0x1]
  %v142 = vlaneseq
  %v143 = vshrl.u32 %v142, 7
  %v144 = vsub.s32 0, %v143
  %v145 = vrot.slane %v140, %v144
  %v147 = vadd.f32 %v138, %v145
  %v148 = vadd.f32 %v139, %v145
  %149 = vst.msk [vmem:[%s6] sm:$0xff] %vm103, %v147
  %150 = vst.msk [vmem:[%s6 + $0x8] sm:$0xff] %vm103, %v148
  // Predicated region
  $region26: #{_lambda_.12} parent=0 // pred_check
    _
  $region27: #{_lambda_.12} parent=0 // pred_check_branch
    %152 = sbr.rel (0) target = $region29
  $region28: #{_lambda_.12} parent=0 // pred_region
    _
  $region29: #{_lambda_.12} parent=0 // pred_fallthru
    _
  // Predicated region
  $region30: #{_lambda_.12} parent=0 // pred_check
    _
  $region31: #{_lambda_.12} parent=0 // pred_check_branch
    %154 = sbr.rel (0) target = $region33
  $region32: #{_lambda_.12} parent=0 // pred_region
    _
  $region33: #{_lambda_.12} parent=0 // pred_fallthru
    _

</llo_original>
